<compile_context>
chip_gen: v5e
topology: v5e:2x2
jax: 0.10.0
libtpu: 0.0.40
codegen_flags: <defaults>
</compile_context>

<pallas_src>
import functools

import jax
import jax.numpy as jnp
from jax.experimental import pallas as pl
from jax.experimental.pallas import tpu as pltpu


# ----------------------------- helpers --------------------------------------

def _round_up(x, m):
    return (x + m - 1) // m * m


def _cdiv(a, b):
    return -(-a // b)


def _silu(x):
    # x * sigmoid(x) == 0.5 * x * (1 + tanh(x/2)) : exactly one EUP transcendental.
    return 0.5 * x * (1.0 + jnp.tanh(0.5 * x))


# ----------------------------- Pallas kernels -------------------------------

def _fused_backbone_kernel(cols_ref, w1_ref, b1_ref, w2_ref, b2_ref, o_ref,
                           *, tq, n_pad):
    """Stem matmul + SiLU + head 1x1 matmul + SiLU + global-sum pooling.

    Grid = (B, S, NJ).  The (8, C) output block is resident across the inner NJ
    (spatial-tile) axis and accumulates 8-sublane partial sums; the cross-sublane
    reduce and the 1/HW scaling happen outside the kernel on a tiny array.
    BN scales are pre-folded into w1/w2, so epilogues are bias-add + SiLU only.
    """
    j = pl.program_id(2)

    @pl.when(j == 0)
    def _():
        o_ref[...] = jnp.zeros_like(o_ref)

    # stem conv as matmul: (tq, 27) @ (27, 48), f32 accumulation
    h = jnp.dot(cols_ref[...], w1_ref[...], preferred_element_type=jnp.float32)
    h = _silu(h + b1_ref[...])

    # head 1x1 conv as matmul: (tq, 48) @ (48, 1792), f32 accumulation
    y = jnp.dot(h.astype(w2_ref.dtype), w2_ref[...],
                preferred_element_type=jnp.float32)
    y = _silu(y + b2_ref[...])

    # pool: tile-aligned regroup (tq, C) -> (tq//8, 8, C) and reduce with VPU adds;
    # keeps the hot-loop store lane/sublane dense (no per-step XLU reduce or 1-row RMW).
    o_ref[...] = o_ref[...] + jnp.sum(y.reshape(tq // 8, 8, y.shape[-1]), axis=0)

    if n_pad:
        # Padded im2col rows are all-zero, so each contributes the same constant vector
        # silu(silu(b1) @ w2 + b2).  Subtract that exact contribution once, at the very
        # last grid step, instead of masking (tq, 1792) selects every step.
        last = jnp.logical_and(pl.program_id(1) == pl.num_programs(1) - 1,
                               j == pl.num_programs(2) - 1)

        @pl.when(last)
        def _():
            h_pad = _silu(b1_ref[...]).astype(w2_ref.dtype)          # (1, 48)
            y_pad = jnp.dot(h_pad, w2_ref[...],
                            preferred_element_type=jnp.float32)
            y_pad = _silu(y_pad + b2_ref[...])                       # (1, C)
            o_ref[0:1, :] = o_ref[0:1, :] - jnp.float32(n_pad) * y_pad


def _classifier_kernel(x_ref, w1_ref, b1_ref, w2_ref, b2_ref, o_ref):
    """Fused Linear(1792,512) + SiLU + Linear(512, 7-padded).  Dropouts are identity."""
    h = jnp.dot(x_ref[...], w1_ref[...], preferred_element_type=jnp.float32)
    h = _silu(h + b1_ref[...])
    o = jnp.dot(h.astype(w2_ref.dtype), w2_ref[...],
                preferred_element_type=jnp.float32)
    o_ref[...] = o + b2_ref[...]


# ----------------------------- pallas_call wrappers --------------------------

def fused_backbone(cols, w1, b1, w2, b2, *, tq, n_pad):
    """cols: (B, S, NJ*tq, 27) bf16 -> (B, S, 8, 1792) f32 partial pooled sums."""
    B, S, R, K1 = cols.shape
    C1 = w1.shape[1]
    C2 = w2.shape[1]
    nj = R // tq
    kernel = functools.partial(_fused_backbone_kernel, tq=tq, n_pad=n_pad)
    cost = pl.CostEstimate(
        flops=2 * B * S * R * (K1 * C1 + C1 * C2),
        transcendentals=B * S * R * (C1 + C2),
        bytes_accessed=(cols.size * 2 + (K1 * C1 + C1 * C2) * 2
                        + B * S * 8 * C2 * 4),
    )
    return pl.pallas_call(
        kernel,
        out_shape=jax.ShapeDtypeStruct((B, S, 8, C2), jnp.float32),
        grid=(B, S, nj),
        in_specs=[
            pl.BlockSpec((None, None, tq, K1), lambda b, s, j: (b, s, j, 0)),
            pl.BlockSpec((K1, C1), lambda b, s, j: (0, 0)),
            pl.BlockSpec((1, C1), lambda b, s, j: (0, 0)),
            pl.BlockSpec((C1, C2), lambda b, s, j: (0, 0)),
            pl.BlockSpec((1, C2), lambda b, s, j: (0, 0)),
        ],
        out_specs=pl.BlockSpec((None, None, 8, C2), lambda b, s, j: (b, s, 0, 0)),
        compiler_params=pltpu.CompilerParams(
            dimension_semantics=("parallel", "parallel", "arbitrary"),
            vmem_limit_bytes=48 * 1024 * 1024,
        ),
        cost_estimate=cost,
    )(cols, w1, b1, w2, b2)


def classifier_head(pooled, w1, b1, w2, b2):
    """pooled: (B, 1792) bf16 -> (B, 128) f32 logits (cols >= 7 are zero-padded)."""
    B, K1 = pooled.shape
    _, N1 = w1.shape
    _, N2 = w2.shape
    return pl.pallas_call(
        _classifier_kernel,
        out_shape=jax.ShapeDtypeStruct((B, N2), jnp.float32),
        grid=(1,),
        in_specs=[
            pl.BlockSpec((B, K1), lambda i: (0, 0)),
            pl.BlockSpec((K1, N1), lambda i: (0, 0)),
            pl.BlockSpec((1, N1), lambda i: (0, 0)),
            pl.BlockSpec((N1, N2), lambda i: (0, 0)),
            pl.BlockSpec((1, N2), lambda i: (0, 0)),
        ],
        out_specs=pl.BlockSpec((B, N2), lambda i: (0, 0)),
        compiler_params=pltpu.CompilerParams(dimension_semantics=("arbitrary",)),
    )(pooled, w1, b1, w2, b2)


# ----------------------------- glue (plain JAX) ------------------------------

def im2col(x_nhwc, kh, kw, stride, pad):
    """Extract conv patches -> (B, Ho*Wo, kh*kw*Cin) rows (row order: kh, kw, Cin)."""
    B, H, W, C = x_nhwc.shape
    xpad = jnp.pad(x_nhwc, ((0, 0), (pad, pad), (pad, pad), (0, 0)))
    Ho = (H + 2 * pad - kh) // stride + 1
    Wo = (W + 2 * pad - kw) // stride + 1
    cols = []
    for i in range(kh):
        for j in range(kw):
            cols.append(
                xpad[:, i:i + (Ho - 1) * stride + 1:stride,
                        j:j + (Wo - 1) * stride + 1:stride, :]
            )
    patches = jnp.stack(cols, axis=-2)            # (B, Ho, Wo, kh*kw, C)
    return patches.reshape(B, Ho * Wo, kh * kw * C), Ho, Wo


def fold_bn(gamma, beta, mean, var, eps=1e-3):    # torchvision EfficientNet BN eps
    scale = gamma / jnp.sqrt(var + eps)
    bias = beta - mean * scale
    return scale, bias


def init_params(key):
    ks = jax.random.split(key, 8)

    def conv_w(k, kh, kw, cin, cout):
        fan_in = kh * kw * cin
        return jax.random.normal(k, (kh, kw, cin, cout), jnp.float32) * (2.0 / fan_in) ** 0.5

    def bn_params(k, c):
        k1, k2, k3, k4 = jax.random.split(k, 4)
        gamma = 1.0 + 0.1 * jax.random.normal(k1, (c,), jnp.float32)
        beta = 0.1 * jax.random.normal(k2, (c,), jnp.float32)
        mean = 0.1 * jax.random.normal(k3, (c,), jnp.float32)
        var = 0.5 + jax.random.uniform(k4, (c,), jnp.float32)
        return gamma, beta, mean, var

    def linear_wb(k, cin, cout):
        k1, k2 = jax.random.split(k)
        w = jax.random.normal(k1, (cin, cout), jnp.float32) * (1.0 / cin) ** 0.5
        b = 0.01 * jax.random.normal(k2, (cout,), jnp.float32)
        return w, b

    fc1_w, fc1_b = linear_wb(ks[4], 1792, 512)
    fc2_w, fc2_b = linear_wb(ks[5], 512, 7)
    return {
        "stem_w": conv_w(ks[0], 3, 3, 3, 48),      # EfficientNet-B4 stem: 3 -> 48
        "stem_bn": bn_params(ks[1], 48),
        "head_w": conv_w(ks[2], 1, 1, 48, 1792),   # bridged 1x1 head conv -> 1792
        "head_bn": bn_params(ks[3], 1792),
        "fc1_w": fc1_w, "fc1_b": fc1_b,            # classifier Linear(1792, 512)
        "fc2_w": fc2_w, "fc2_b": fc2_b,            # classifier Linear(512, 7)
    }


def prepare_params(raw):
    """One-time: fold BN (scale into weight columns), matmul layout, cast bf16, pad fc2."""
    s0, b0 = fold_bn(*raw["stem_bn"])
    s1, b1 = fold_bn(*raw["head_bn"])
    stem_w = (raw["stem_w"].reshape(-1, 48) * s0[None, :]).astype(jnp.bfloat16)
    head_w = (raw["head_w"].reshape(-1, 1792) * s1[None, :]).astype(jnp.bfloat16)
    n_cls = raw["fc2_w"].shape[1]
    n_cls_p = _round_up(n_cls, 128)
    fc2_w = jnp.zeros((raw["fc2_w"].shape[0], n_cls_p), jnp.bfloat16)
    fc2_w = fc2_w.at[:, :n_cls].set(raw["fc2_w"].astype(jnp.bfloat16))
    fc2_b = jnp.zeros((1, n_cls_p), jnp.float32).at[0, :n_cls].set(raw["fc2_b"])
    return {
        "stem_w": stem_w,                                   # (27, 48) bf16, BN folded
        "stem_bias": b0.reshape(1, -1).astype(jnp.float32),
        "head_w": head_w,                                   # (48, 1792) bf16, BN folded
        "head_bias": b1.reshape(1, -1).astype(jnp.float32),
        "fc1_w": raw["fc1_w"].astype(jnp.bfloat16),
        "fc1_b": raw["fc1_b"].reshape(1, -1).astype(jnp.float32),
        "fc2_w": fc2_w,
        "fc2_b": fc2_b,
    }


def emotion_model_forward(params, x_nchw):
    """x_nchw: (B, 3, H, W) float32 -> (B, 7) logits."""
    x = jnp.transpose(x_nchw, (0, 2, 3, 1)).astype(jnp.bfloat16)   # NCHW -> NHWC, bf16
    B = x.shape[0]

    # stem im2col rows (plain JAX; see TODO about in-kernel gather)
    cols, Ho, Wo = im2col(x, 3, 3, 2, 1)                    # (B, HW, 27)
    HW = Ho * Wo

    # tiling: split the spatial reduction in two (keeps both v7x TCs busy at small B),
    # big row tiles to amortise per-grid-step overhead.
    S = 2
    per_split = _cdiv(HW, S)
    TQ = min(1024, _round_up(per_split, 8))
    NJ = _cdiv(per_split, TQ)
    HWp = S * NJ * TQ
    n_pad = HWp - HW
    if n_pad:
        cols = jnp.pad(cols, ((0, 0), (0, n_pad), (0, 0)))
    cols = cols.reshape(B, S, NJ * TQ, cols.shape[-1])

    # TODO(synk): MBConv stages skipped (see header note).

    # fused stem conv + head 1x1 conv + BN + SiLU + global-sum pool (single kernel)
    acc = fused_backbone(cols, params["stem_w"], params["stem_bias"],
                         params["head_w"], params["head_bias"],
                         tq=TQ, n_pad=n_pad)                # (B, S, 8, 1792) f32
    pooled = acc.sum(axis=(1, 2)) * (1.0 / HW)              # (B, 1792) f32 mean pool

    # classifier: Dropout(id) -> Linear(1792,512) -> SiLU -> Dropout(id) -> Linear(512,7)
    logits = classifier_head(pooled.astype(jnp.bfloat16),
                             params["fc1_w"], params["fc1_b"],
                             params["fc2_w"], params["fc2_b"])  # (B, 128) padded
    return logits[:, :7]


if __name__ == "__main__":
    key = jax.random.PRNGKey(0)
    kx, kp = jax.random.split(key)
    x = jax.random.normal(kx, (2, 3, 32, 32), jnp.float32)   # small NCHW image batch
    params = prepare_params(init_params(kp))

    fwd = jax.jit(emotion_model_forward)
    out = jax.block_until_ready(fwd(params, x))
    assert out.shape == (2, 7), out.shape
    assert bool(jnp.all(jnp.isfinite(out)))
    print("KERNEL_OK")
</pallas_src>

<mosaic_0001>
module attributes {stable_mosaic.version = 11 : i64} {
  func.func @_fused_backbone_kernel(%arg0: i32, %arg1: i32, %arg2: i32, %arg3: memref<1x1x128x27xbf16, #tpu.memory_space<vmem>>, %arg4: memref<27x48xbf16, #tpu.memory_space<vmem>>, %arg5: memref<1x48xf32, #tpu.memory_space<vmem>>, %arg6: memref<48x1792xbf16, #tpu.memory_space<vmem>>, %arg7: memref<1x1792xf32, #tpu.memory_space<vmem>>, %arg8: memref<1x1x8x1792xf32, #tpu.memory_space<vmem>>) attributes {dimension_semantics = [#tpu.dimension_semantics<parallel>, #tpu.dimension_semantics<parallel>, #tpu.dimension_semantics<arbitrary>], iteration_bounds = array<i64: 2, 2, 1>, scalar_prefetch = 0 : i64, scratch_operands = 0 : i64, tpu.core_type = #tpu.core_type<tc>, window_params = [{transform_indices = @transform_0, window_bounds = array<i64: 1, 1, 128, 27>}, {pipeline_mode = #tpu.pipeline_mode<synchronous>, transform_indices = @transform_1, window_bounds = array<i64: 27, 48>}, {pipeline_mode = #tpu.pipeline_mode<synchronous>, transform_indices = @transform_2, window_bounds = array<i64: 1, 48>}, {pipeline_mode = #tpu.pipeline_mode<synchronous>, transform_indices = @transform_3, window_bounds = array<i64: 48, 1792>}, {pipeline_mode = #tpu.pipeline_mode<synchronous>, transform_indices = @transform_4, window_bounds = array<i64: 1, 1792>}, {transform_indices = @transform_5, window_bounds = array<i64: 1, 1, 8, 1792>}]} {
    %c0_i32 = arith.constant 0 : i32
    %0 = arith.cmpi eq, %arg2, %c0_i32 : i32
    %1 = arith.extui %0 : i1 to i32
    %c0_i32_0 = arith.constant 0 : i32
    %2 = arith.cmpi ne, %1, %c0_i32_0 : i32
    scf.if %2 {
      %cst_28 = arith.constant 0.000000e+00 : f32
      %40 = vector.broadcast %cst_28 : f32 to vector<8x1792xf32>
      %c0_29 = arith.constant 0 : index
      %c0_30 = arith.constant 0 : index
      %c0_31 = arith.constant 0 : index
      %c0_32 = arith.constant 0 : index
      %41 = vector.load %arg8[%c0_29, %c0_30, %c0_31, %c0_32] : memref<1x1x8x1792xf32, #tpu.memory_space<vmem>>, vector<1x1x8x1792xf32>
      %42 = vector.shape_cast %41 : vector<1x1x8x1792xf32> to vector<8x1792xf32>
      %43 = vector.shape_cast %40 : vector<8x1792xf32> to vector<1x1x8x1792xf32>
      tpu.vector_store %arg8[%c0_29, %c0_30, %c0_31, %c0_32], %43 {strides = array<i32>} : memref<1x1x8x1792xf32, #tpu.memory_space<vmem>>, vector<1x1x8x1792xf32>,
    } else {
    }
    %c0 = arith.constant 0 : index
    %c0_1 = arith.constant 0 : index
    %c0_2 = arith.constant 0 : index
    %c0_3 = arith.constant 0 : index
    %3 = vector.load %arg3[%c0, %c0_1, %c0_2, %c0_3] : memref<1x1x128x27xbf16, #tpu.memory_space<vmem>>, vector<1x1x128x27xbf16>
    %4 = vector.shape_cast %3 : vector<1x1x128x27xbf16> to vector<128x27xbf16>
    %c0_4 = arith.constant 0 : index
    %c0_5 = arith.constant 0 : index
    %5 = vector.load %arg4[%c0_4, %c0_5] : memref<27x48xbf16, #tpu.memory_space<vmem>>, vector<27x48xbf16>
    %cst = arith.constant dense<0.000000e+00> : vector<128x48xf32>
    %6 = tpu.matmul %4, %5, %cst {dimension_numbers = #tpu.dot_dimension_numbers<[1], [0], [0], [1], [0, 0, 1, 1], [], []>} : vector<128x27xbf16>, vector<27x48xbf16>, vector<128x48xf32> -> vector<128x48xf32>
    %c0_6 = arith.constant 0 : index
    %c0_7 = arith.constant 0 : index
    %7 = vector.load %arg5[%c0_6, %c0_7] : memref<1x48xf32, #tpu.memory_space<vmem>>, vector<1x48xf32>
    %8 = vector.broadcast %7 : vector<1x48xf32> to vector<128x48xf32>
    %9 = arith.addf %6, %8 : vector<128x48xf32>
    %cst_8 = arith.constant 5.000000e-01 : f32
    %10 = vector.broadcast %cst_8 : f32 to vector<128x48xf32>
    %11 = arith.mulf %10, %9 : vector<128x48xf32>
    %cst_9 = arith.constant 5.000000e-01 : f32
    %12 = vector.broadcast %cst_9 : f32 to vector<128x48xf32>
    %13 = arith.mulf %12, %9 : vector<128x48xf32>
    %14 = math.tanh %13 : vector<128x48xf32>
    %cst_10 = arith.constant 1.000000e+00 : f32
    %15 = vector.broadcast %cst_10 : f32 to vector<128x48xf32>
    %16 = arith.addf %15, %14 : vector<128x48xf32>
    %17 = arith.mulf %11, %16 : vector<128x48xf32>
    %18 = arith.truncf %17 : vector<128x48xf32> to vector<128x48xbf16>
    %c0_11 = arith.constant 0 : index
    %c0_12 = arith.constant 0 : index
    %19 = vector.load %arg6[%c0_11, %c0_12] : memref<48x1792xbf16, #tpu.memory_space<vmem>>, vector<48x1792xbf16>
    %cst_13 = arith.constant dense<0.000000e+00> : vector<128x1792xf32>
    %20 = tpu.matmul %18, %19, %cst_13 {dimension_numbers = #tpu.dot_dimension_numbers<[1], [0], [0], [1], [0, 0, 1, 1], [], []>} : vector<128x48xbf16>, vector<48x1792xbf16>, vector<128x1792xf32> -> vector<128x1792xf32>
    %c0_14 = arith.constant 0 : index
    %c0_15 = arith.constant 0 : index
    %21 = vector.load %arg7[%c0_14, %c0_15] : memref<1x1792xf32, #tpu.memory_space<vmem>>, vector<1x1792xf32>
    %22 = vector.broadcast %21 : vector<1x1792xf32> to vector<128x1792xf32>
    %23 = arith.addf %20, %22 : vector<128x1792xf32>
    %cst_16 = arith.constant 5.000000e-01 : f32
    %24 = vector.broadcast %cst_16 : f32 to vector<128x1792xf32>
    %25 = arith.mulf %24, %23 : vector<128x1792xf32>
    %cst_17 = arith.constant 5.000000e-01 : f32
    %26 = vector.broadcast %cst_17 : f32 to vector<128x1792xf32>
    %27 = arith.mulf %26, %23 : vector<128x1792xf32>
    %28 = math.tanh %27 : vector<128x1792xf32>
    %cst_18 = arith.constant 1.000000e+00 : f32
    %29 = vector.broadcast %cst_18 : f32 to vector<128x1792xf32>
    %30 = arith.addf %29, %28 : vector<128x1792xf32>
    %31 = arith.mulf %25, %30 : vector<128x1792xf32>
    %c0_19 = arith.constant 0 : index
    %c0_20 = arith.constant 0 : index
    %c0_21 = arith.constant 0 : index
    %c0_22 = arith.constant 0 : index
    %32 = vector.load %arg8[%c0_19, %c0_20, %c0_21, %c0_22] : memref<1x1x8x1792xf32, #tpu.memory_space<vmem>>, vector<1x1x8x1792xf32>
    %33 = vector.shape_cast %32 : vector<1x1x8x1792xf32> to vector<8x1792xf32>
    %34 = vector.shape_cast %31 : vector<128x1792xf32> to vector<16x8x1792xf32>
    %cst_23 = arith.constant dense<0.000000e+00> : vector<8x1792xf32>
    %35 = vector.multi_reduction <add>, %34, %cst_23 [0] : vector<16x8x1792xf32> to vector<8x1792xf32>
    %36 = arith.addf %33, %35 : vector<8x1792xf32>
    %c0_24 = arith.constant 0 : index
    %c0_25 = arith.constant 0 : index
    %c0_26 = arith.constant 0 : index
    %c0_27 = arith.constant 0 : index
    %37 = vector.load %arg8[%c0_24, %c0_25, %c0_26, %c0_27] : memref<1x1x8x1792xf32, #tpu.memory_space<vmem>>, vector<1x1x8x1792xf32>
    %38 = vector.shape_cast %37 : vector<1x1x8x1792xf32> to vector<8x1792xf32>
    %39 = vector.shape_cast %36 : vector<8x1792xf32> to vector<1x1x8x1792xf32>
    tpu.vector_store %arg8[%c0_24, %c0_25, %c0_26, %c0_27], %39 {strides = array<i32>} : memref<1x1x8x1792xf32, #tpu.memory_space<vmem>>, vector<1x1x8x1792xf32>,
    return
  }
  func.func @transform_0(%arg0: i32, %arg1: i32, %arg2: i32) -> (i32, i32, i32, i32) {
    %c0_i32 = arith.constant 0 : i32
    %c0_i32_0 = arith.constant 0 : i32
    return %arg0, %arg1, %arg2, %c0_i32 : i32, i32, i32, i32
  }
  func.func @transform_1(%arg0: i32, %arg1: i32, %arg2: i32) -> (i32, i32) {
    %c0_i32 = arith.constant 0 : i32
    %c0_i32_0 = arith.constant 0 : i32
    %c0_i32_1 = arith.constant 0 : i32
    return %c0_i32, %c0_i32_0 : i32, i32
  }
  func.func @transform_2(%arg0: i32, %arg1: i32, %arg2: i32) -> (i32, i32) {
    %c0_i32 = arith.constant 0 : i32
    %c0_i32_0 = arith.constant 0 : i32
    %c0_i32_1 = arith.constant 0 : i32
    return %c0_i32, %c0_i32_0 : i32, i32
  }
  func.func @transform_3(%arg0: i32, %arg1: i32, %arg2: i32) -> (i32, i32) {
    %c0_i32 = arith.constant 0 : i32
    %c0_i32_0 = arith.constant 0 : i32
    %c0_i32_1 = arith.constant 0 : i32
    return %c0_i32, %c0_i32_0 : i32, i32
  }
  func.func @transform_4(%arg0: i32, %arg1: i32, %arg2: i32) -> (i32, i32) {
    %c0_i32 = arith.constant 0 : i32
    %c0_i32_0 = arith.constant 0 : i32
    %c0_i32_1 = arith.constant 0 : i32
    return %c0_i32, %c0_i32_0 : i32, i32
  }
  func.func @transform_5(%arg0: i32, %arg1: i32, %arg2: i32) -> (i32, i32, i32, i32) {
    %c0_i32 = arith.constant 0 : i32
    %c0_i32_0 = arith.constant 0 : i32
    %c0_i32_1 = arith.constant 0 : i32
    return %arg0, %arg1, %c0_i32, %c0_i32_0 : i32, i32, i32, i32
  }
}

module attributes {stable_mosaic.version = 11 : i64} {
  func.func @_classifier_kernel(%arg0: i32, %arg1: memref<2x1792xbf16, #tpu.memory_space<vmem>>, %arg2: memref<1792x512xbf16, #tpu.memory_space<vmem>>, %arg3: memref<1x512xf32, #tpu.memory_space<vmem>>, %arg4: memref<512x128xbf16, #tpu.memory_space<vmem>>, %arg5: memref<1x128xf32, #tpu.memory_space<vmem>>, %arg6: memref<2x128xf32, #tpu.memory_space<vmem>>) attributes {dimension_semantics = [#tpu.dimension_semantics<arbitrary>], iteration_bounds = array<i64: 1>, scalar_prefetch = 0 : i64, scratch_operands = 0 : i64, tpu.core_type = #tpu.core_type<tc>, window_params = [{pipeline_mode = #tpu.pipeline_mode<synchronous>, transform_indices = @transform_0, window_bounds = array<i64: 2, 1792>}, {pipeline_mode = #tpu.pipeline_mode<synchronous>, transform_indices = @transform_1, window_bounds = array<i64: 1792, 512>}, {pipeline_mode = #tpu.pipeline_mode<synchronous>, transform_indices = @transform_2, window_bounds = array<i64: 1, 512>}, {pipeline_mode = #tpu.pipeline_mode<synchronous>, transform_indices = @transform_3, window_bounds = array<i64: 512, 128>}, {pipeline_mode = #tpu.pipeline_mode<synchronous>, transform_indices = @transform_4, window_bounds = array<i64: 1, 128>}, {pipeline_mode = #tpu.pipeline_mode<synchronous>, transform_indices = @transform_5, window_bounds = array<i64: 2, 128>}]} {
    %c0 = arith.constant 0 : index
    %c0_0 = arith.constant 0 : index
    %0 = vector.load %arg1[%c0, %c0_0] : memref<2x1792xbf16, #tpu.memory_space<vmem>>, vector<2x1792xbf16>
    %c0_1 = arith.constant 0 : index
    %c0_2 = arith.constant 0 : index
    %1 = vector.load %arg2[%c0_1, %c0_2] : memref<1792x512xbf16, #tpu.memory_space<vmem>>, vector<1792x512xbf16>
    %cst = arith.constant dense<0.000000e+00> : vector<2x512xf32>
    %2 = tpu.matmul %0, %1, %cst {dimension_numbers = #tpu.dot_dimension_numbers<[1], [0], [0], [1], [0, 0, 1, 1], [], []>} : vector<2x1792xbf16>, vector<1792x512xbf16>, vector<2x512xf32> -> vector<2x512xf32>
    %c0_3 = arith.constant 0 : index
    %c0_4 = arith.constant 0 : index
    %3 = vector.load %arg3[%c0_3, %c0_4] : memref<1x512xf32, #tpu.memory_space<vmem>>, vector<1x512xf32>
    %4 = vector.broadcast %3 : vector<1x512xf32> to vector<2x512xf32>
    %5 = arith.addf %2, %4 : vector<2x512xf32>
    %cst_5 = arith.constant 5.000000e-01 : f32
    %6 = vector.broadcast %cst_5 : f32 to vector<2x512xf32>
    %7 = arith.mulf %6, %5 : vector<2x512xf32>
    %cst_6 = arith.constant 5.000000e-01 : f32
    %8 = vector.broadcast %cst_6 : f32 to vector<2x512xf32>
    %9 = arith.mulf %8, %5 : vector<2x512xf32>
    %10 = math.tanh %9 : vector<2x512xf32>
    %cst_7 = arith.constant 1.000000e+00 : f32
    %11 = vector.broadcast %cst_7 : f32 to vector<2x512xf32>
    %12 = arith.addf %11, %10 : vector<2x512xf32>
    %13 = arith.mulf %7, %12 : vector<2x512xf32>
    %14 = arith.truncf %13 : vector<2x512xf32> to vector<2x512xbf16>
    %c0_8 = arith.constant 0 : index
    %c0_9 = arith.constant 0 : index
    %15 = vector.load %arg4[%c0_8, %c0_9] : memref<512x128xbf16, #tpu.memory_space<vmem>>, vector<512x128xbf16>
    %cst_10 = arith.constant dense<0.000000e+00> : vector<2x128xf32>
    %16 = tpu.matmul %14, %15, %cst_10 {dimension_numbers = #tpu.dot_dimension_numbers<[1], [0], [0], [1], [0, 0, 1, 1], [], []>} : vector<2x512xbf16>, vector<512x128xbf16>, vector<2x128xf32> -> vector<2x128xf32>
    %c0_11 = arith.constant 0 : index
    %c0_12 = arith.constant 0 : index
    %17 = vector.load %arg5[%c0_11, %c0_12] : memref<1x128xf32, #tpu.memory_space<vmem>>, vector<1x128xf32>
    %18 = vector.broadcast %17 : vector<1x128xf32> to vector<2x128xf32>
    %19 = arith.addf %16, %18 : vector<2x128xf32>
    %c0_13 = arith.constant 0 : index
    %c0_14 = arith.constant 0 : index
    %20 = vector.load %arg6[%c0_13, %c0_14] : memref<2x128xf32, #tpu.memory_space<vmem>>, vector<2x128xf32>
    tpu.vector_store %arg6[%c0_13, %c0_14], %19 {strides = array<i32>} : memref<2x128xf32, #tpu.memory_space<vmem>>, vector<2x128xf32>,
    return
  }
  func.func @transform_0(%arg0: i32) -> (i32, i32) {
    %c0_i32 = arith.constant 0 : i32
    %c0_i32_0 = arith.constant 0 : i32
    %c0_i32_1 = arith.constant 0 : i32
    return %c0_i32, %c0_i32_0 : i32, i32
  }
  func.func @transform_1(%arg0: i32) -> (i32, i32) {
    %c0_i32 = arith.constant 0 : i32
    %c0_i32_0 = arith.constant 0 : i32
    %c0_i32_1 = arith.constant 0 : i32
    return %c0_i32, %c0_i32_0 : i32, i32
  }
  func.func @transform_2(%arg0: i32) -> (i32, i32) {
    %c0_i32 = arith.constant 0 : i32
    %c0_i32_0 = arith.constant 0 : i32
    %c0_i32_1 = arith.constant 0 : i32
    return %c0_i32, %c0_i32_0 : i32, i32
  }
  func.func @transform_3(%arg0: i32) -> (i32, i32) {
    %c0_i32 = arith.constant 0 : i32
    %c0_i32_0 = arith.constant 0 : i32
    %c0_i32_1 = arith.constant 0 : i32
    return %c0_i32, %c0_i32_0 : i32, i32
  }
  func.func @transform_4(%arg0: i32) -> (i32, i32) {
    %c0_i32 = arith.constant 0 : i32
    %c0_i32_0 = arith.constant 0 : i32
    %c0_i32_1 = arith.constant 0 : i32
    return %c0_i32, %c0_i32_0 : i32, i32
  }
  func.func @transform_5(%arg0: i32) -> (i32, i32) {
    %c0_i32 = arith.constant 0 : i32
    %c0_i32_0 = arith.constant 0 : i32
    %c0_i32_1 = arith.constant 0 : i32
    return %c0_i32, %c0_i32_0 : i32, i32
  }
}

</mosaic_0001>

<llo_original>
// kernel: emotion_model_forward.2
$region0: #{emotion_model_forward.2}
  #allocation0 [shape = 'u32[]', space=smem, size = 0x4, offset = 0x4, fixed_abs, tag = 'smem constant byte address 0x4 - core index']
  #allocation1 [shape = 'u32[72,128]{1,0:T(1,128)}', space=vmem, size = 0x9000, scoped, tag = 'internal scratch']
  %s0 = inlined_call_operand.vmem [shape: bf16[2,2,128,27], index: 0, kind: input, shape index: {}]
  %s1 = inlined_call_operand.vmem [shape: bf16[27,48], index: 1, kind: input, shape index: {}]
  %s2 = inlined_call_operand.vmem [shape: f32[1,48], index: 2, kind: input, shape index: {}]
  %s3 = inlined_call_operand.vmem [shape: bf16[48,1792], index: 3, kind: input, shape index: {}]
  %s4 = inlined_call_operand.vmem [shape: f32[1,1792], index: 4, kind: input, shape index: {}]
  %s5 = inlined_call_operand.vmem [shape: f32[2,2,8,1792], index: 5, kind: output, shape index: {}]
  %s6 = sld [smem:[#allocation0]]
  $region57: #{emotion_model_forward.2} parent=0
    _
  %s8 = ssub.s32 1, %s6
  %s9 = scalar_select 0, %s8, %s6
  loop: start=0, step=1, limit=6
  $region2: #{emotion_model_forward.2} parent=0 // loop_pre_header
    _
  $region3: #{emotion_model_forward.2} parent=0 // loop_header
    %s11 = sphi 0, %s15
    %p12 = scmp.ge.s32.totalorder %s11, 6
    %s18 = sphi 0, %s37
    %s19 = sphi 0, %s33
    %s20 = sphi 0, %s29
    %s21 = sphi 0, %s18
    %s22 = sphi 0, %s19
    %s23 = sphi 0, %s20
    %s24 = sphi 0, %s21
    %s25 = sphi 0, %s22
    %s26 = sphi 0, %s23
    %s44 = sphi 0, %s46
    %s47 = sphi 0, %s44
    %s48 = sphi 0, %s47
    %s64 = sphi 0, %s48
    %s68 = sphi 0, %s68
    %s70 = sphi 0, %s68
    %s71 = sphi 0, %s70
    %s85 = sphi 0, %s71
    %s89 = sphi 0, %s89
    %s91 = sphi 0, %s89
    %s92 = sphi 0, %s91
    %s106 = sphi 0, %s92
    %s110 = sphi 0, %s110
    %s112 = sphi 0, %s110
    %s113 = sphi 0, %s112
    %s127 = sphi 0, %s113
    %s131 = sphi 0, %s131
    %s133 = sphi 0, %s131
    %s134 = sphi 0, %s133
    %s148 = sphi 0, %s134
    %s156 = sphi 0, %s158
    %s159 = sphi 0, %s156
    %s160 = sphi 0, %s159
    %s176 = sphi 0, %s160
  $region4: #{emotion_model_forward.2} parent=0 // loop_header_branch
    %14 = sbr.rel (%p12) target = $region8
  $region5: #{emotion_model_forward.2} parent=0 // loop_body
    %s16 = ssub.s32 %s11, 1
    %s17 = ssub.s32 %s11, 2
    %s27 = sadd.s32 1, %s20
    %p28 = scmp.ge.s32.totalorder %s27, 1
    %s29 = scalar_select %p28, 0, %s27
    %s30 = sadd.s32 1, %s19
    %s31 = scalar_select %p28, %s30, %s19
    %p32 = scmp.ge.s32.totalorder %s31, 2
    %s33 = scalar_select %p32, 0, %s31
    %s34 = sadd.s32 1, %s18
    %s35 = scalar_select %p32, %s34, %s18
    %p36 = scmp.ge.s32.totalorder %s35, 2
    %s37 = scalar_select %p36, 0, %s35
    %s38 = ssub.s32 %s18, %s37
    %s39 = ssub.s32 %s19, %s33
    %s40 = sor.u32 %s38, %s39
    %s41 = ssub.s32 %s20, %s29
    %s42 = sor.u32 %s40, %s41
    %p43 = scmp.eq.s32.totalorder %s42, 0
    %s45 = sadd.s32 %s44, 1
    %s46 = scalar_select %p43, %s44, %s45
    %p49 = pneg %p43
    %p50 = scmp.eq.s32.totalorder %s11, 3
    %p51 = por %p49, %p50
    %p52 = scmp.ne.s32.totalorder %s44, %s47
    %p53 = scmp.eq.s32.totalorder %s11, 0
    %p54 = por %p52, %p53
    %p55 = scmp.ne.s32.totalorder %s44, %s47
    %p56 = scmp.eq.s32.totalorder %s16, 3
    %p57 = por %p55, %p56
    %p58 = scmp.ne.s32.totalorder %s47, %s48
    %p59 = scmp.eq.s32.totalorder %s16, 0
    %p60 = por %p58, %p59
    %p61 = scmp.ne.s32.totalorder %s47, %s48
    %p62 = scmp.eq.s32.totalorder %s17, 3
    %p63 = por %p61, %p62
    %p65 = scmp.ne.s32.totalorder %s48, %s64
    %p66 = scmp.eq.s32.totalorder %s17, 0
    %p67 = por %p65, %p66
    %s69 = sadd.s32 %s68, 1
    %p72 = scmp.eq.s32.totalorder %s11, 3
    %p73 = scmp.ne.s32.totalorder %s68, %s70
    %p74 = scmp.eq.s32.totalorder %s11, 0
    %p75 = por %p73, %p74
    %p76 = scmp.ne.s32.totalorder %s68, %s70
    %p77 = scmp.eq.s32.totalorder %s16, 3
    %p78 = por %p76, %p77
    %p79 = scmp.ne.s32.totalorder %s70, %s71
    %p80 = scmp.eq.s32.totalorder %s16, 0
    %p81 = por %p79, %p80
    %p82 = scmp.ne.s32.totalorder %s70, %s71
    %p83 = scmp.eq.s32.totalorder %s17, 3
    %p84 = por %p82, %p83
    %p86 = scmp.ne.s32.totalorder %s71, %s85
    %p87 = scmp.eq.s32.totalorder %s17, 0
    %p88 = por %p86, %p87
    %s90 = sadd.s32 %s89, 1
    %p93 = scmp.eq.s32.totalorder %s11, 3
    %p94 = scmp.ne.s32.totalorder %s89, %s91
    %p95 = scmp.eq.s32.totalorder %s11, 0
    %p96 = por %p94, %p95
    %p97 = scmp.ne.s32.totalorder %s89, %s91
    %p98 = scmp.eq.s32.totalorder %s16, 3
    %p99 = por %p97, %p98
    %p100 = scmp.ne.s32.totalorder %s91, %s92
    %p101 = scmp.eq.s32.totalorder %s16, 0
    %p102 = por %p100, %p101
    %p103 = scmp.ne.s32.totalorder %s91, %s92
    %p104 = scmp.eq.s32.totalorder %s17, 3
    %p105 = por %p103, %p104
    %p107 = scmp.ne.s32.totalorder %s92, %s106
    %p108 = scmp.eq.s32.totalorder %s17, 0
    %p109 = por %p107, %p108
    %s111 = sadd.s32 %s110, 1
    %p114 = scmp.eq.s32.totalorder %s11, 3
    %p115 = scmp.ne.s32.totalorder %s110, %s112
    %p116 = scmp.eq.s32.totalorder %s11, 0
    %p117 = por %p115, %p116
    %p118 = scmp.ne.s32.totalorder %s110, %s112
    %p119 = scmp.eq.s32.totalorder %s16, 3
    %p120 = por %p118, %p119
    %p121 = scmp.ne.s32.totalorder %s112, %s113
    %p122 = scmp.eq.s32.totalorder %s16, 0
    %p123 = por %p121, %p122
    %p124 = scmp.ne.s32.totalorder %s112, %s113
    %p125 = scmp.eq.s32.totalorder %s17, 3
    %p126 = por %p124, %p125
    %p128 = scmp.ne.s32.totalorder %s113, %s127
    %p129 = scmp.eq.s32.totalorder %s17, 0
    %p130 = por %p128, %p129
    %s132 = sadd.s32 %s131, 1
    %p135 = scmp.eq.s32.totalorder %s11, 3
    %p136 = scmp.ne.s32.totalorder %s131, %s133
    %p137 = scmp.eq.s32.totalorder %s11, 0
    %p138 = por %p136, %p137
    %p139 = scmp.ne.s32.totalorder %s131, %s133
    %p140 = scmp.eq.s32.totalorder %s16, 3
    %p141 = por %p139, %p140
    %p142 = scmp.ne.s32.totalorder %s133, %s134
    %p143 = scmp.eq.s32.totalorder %s16, 0
    %p144 = por %p142, %p143
    %p145 = scmp.ne.s32.totalorder %s133, %s134
    %p146 = scmp.eq.s32.totalorder %s17, 3
    %p147 = por %p145, %p146
    %p149 = scmp.ne.s32.totalorder %s134, %s148
    %p150 = scmp.eq.s32.totalorder %s17, 0
    %p151 = por %p149, %p150
    %s152 = ssub.s32 %s18, %s37
    %s153 = ssub.s32 %s19, %s33
    %s154 = sor.u32 %s152, %s153
    %p155 = scmp.eq.s32.totalorder %s154, 0
    %s157 = sadd.s32 %s156, 1
    %s158 = scalar_select %p155, %s156, %s157
    %p161 = pneg %p155
    %p162 = scmp.eq.s32.totalorder %s11, 3
    %p163 = por %p161, %p162
    %p164 = scmp.ne.s32.totalorder %s156, %s159
    %p165 = scmp.eq.s32.totalorder %s11, 0
    %p166 = por %p164, %p165
    %p167 = scmp.ne.s32.totalorder %s156, %s159
    %p168 = scmp.eq.s32.totalorder %s16, 3
    %p169 = por %p167, %p168
    %p170 = scmp.ne.s32.totalorder %s159, %s160
    %p171 = scmp.eq.s32.totalorder %s16, 0
    %p172 = por %p170, %p171
    %p173 = scmp.ne.s32.totalorder %s159, %s160
    %p174 = scmp.eq.s32.totalorder %s17, 3
    %p175 = por %p173, %p174
    %p177 = scmp.ne.s32.totalorder %s160, %s176
    %p178 = scmp.eq.s32.totalorder %s17, 0
    %p179 = por %p177, %p178
    %p180 = scmp.le.s32.totalorder 1, %s11
    %p181 = scmp.lt.s32.totalorder %s11, 5
    %p182 = pnand %p180, %p181
    %p183 = pneg %p182
    // Predicated region
    $region9: #{emotion_model_forward.2} parent=5 // pred_check
      _
    $region10: #{emotion_model_forward.2} parent=5 // pred_check_branch
      %185 = sbr.rel (%p182) target = $region12
    $region11: #{emotion_model_forward.2} parent=5 // pred_region
      %s186 = ssub.s32 %s11, 1
      // Predicated region
      $region13: #{emotion_model_forward.2} parent=11 // pred_check
        %p187 = pneg %p81
      $region14: #{emotion_model_forward.2} parent=11 // pred_check_branch
        %189 = sbr.rel (%p187) target = $region16
      $region15: #{emotion_model_forward.2} parent=11 // pred_region
        _
      $region16: #{emotion_model_forward.2} parent=11 // pred_fallthru
        _
      // Predicated region
      $region17: #{emotion_model_forward.2} parent=11 // pred_check
        %p190 = pneg %p102
      $region18: #{emotion_model_forward.2} parent=11 // pred_check_branch
        %192 = sbr.rel (%p190) target = $region20
      $region19: #{emotion_model_forward.2} parent=11 // pred_region
        _
      $region20: #{emotion_model_forward.2} parent=11 // pred_fallthru
        _
      // Predicated region
      $region21: #{emotion_model_forward.2} parent=11 // pred_check
        %p193 = pneg %p123
      $region22: #{emotion_model_forward.2} parent=11 // pred_check_branch
        %195 = sbr.rel (%p193) target = $region24
      $region23: #{emotion_model_forward.2} parent=11 // pred_region
        _
      $region24: #{emotion_model_forward.2} parent=11 // pred_fallthru
        _
      // Predicated region
      $region25: #{emotion_model_forward.2} parent=11 // pred_check
        %p196 = pneg %p144
      $region26: #{emotion_model_forward.2} parent=11 // pred_check_branch
        %198 = sbr.rel (%p196) target = $region28
      $region27: #{emotion_model_forward.2} parent=11 // pred_region
        _
      $region28: #{emotion_model_forward.2} parent=11 // pred_fallthru
        _
    $region12: #{emotion_model_forward.2} parent=5 // pred_fallthru
      _
    %p199 = scmp.lt.s32.totalorder %s11, 4
    // Predicated region
    $region29: #{emotion_model_forward.2} parent=5 // pred_check
      %p200 = pneg %p199
    $region30: #{emotion_model_forward.2} parent=5 // pred_check_branch
      %202 = sbr.rel (%p200) target = $region32
    $region31: #{emotion_model_forward.2} parent=5 // pred_region
      // Predicated region
      $region33: #{emotion_model_forward.2} parent=31 // pred_check
        %p203 = pneg %p54
      $region34: #{emotion_model_forward.2} parent=31 // pred_check_branch
        %205 = sbr.rel (%p203) target = $region36
      $region35: #{emotion_model_forward.2} parent=31 // pred_region
        %s206 = smul.u32 16, %s20
        %p207 = scmp.lt.s32.totalorder %s18, 1
        %s208 = scalar_select %p207, %s18, 1
        %p209 = scmp.lt.s32.totalorder %s19, 1
        %s210 = scalar_select %p209, %s19, 1
        %p211 = scmp.lt.s32.totalorder %s206, 15
        %s212 = scalar_select %p211, %s206, 15
        %s213 = smul.addr %s210, 16
        %s214 = sadd.s32 %s212, %s213
        %s215 = smul.addr %s208, 32
        %s216 = sadd.s32 %s214, %s215
        %s217 = smul.addr %s216, 4
        %s218 = scalar_lea.vmem %s0, %s217
        %s219 = smul.u32 16, %s20
      $region36: #{emotion_model_forward.2} parent=31 // pred_fallthru
        _
    $region32: #{emotion_model_forward.2} parent=5 // pred_fallthru
      _
    %p220 = scmp.le.s32.totalorder 1, %s11
    %p221 = scmp.lt.s32.totalorder %s11, 5
    %p222 = pnand %p220, %p221
    %p223 = pneg %p222
    // Predicated region
    $region37: #{emotion_model_forward.2} parent=5 // pred_check
      _
    $region38: #{emotion_model_forward.2} parent=5 // pred_check_branch
      %225 = sbr.rel (%p222) target = $region40
    $region39: #{emotion_model_forward.2} parent=5 // pred_region
      %s226 = ssub.s32 %s11, 1
      %s227 = smul.u32 16, %s23
      %p228 = scmp.lt.s32.totalorder %s21, 1
      %s229 = scalar_select %p228, %s21, 1
      %p230 = scmp.lt.s32.totalorder %s22, 1
      %s231 = scalar_select %p230, %s22, 1
      %p232 = scmp.lt.s32.totalorder %s227, 15
      %s233 = scalar_select %p232, %s227, 15
      %s234 = smul.addr %s231, 16
      %s235 = sadd.s32 %s233, %s234
      %s236 = smul.addr %s229, 32
      %s237 = sadd.s32 %s235, %s236
      %s238 = smul.addr %s237, 4
      %s239 = scalar_lea.vmem %s0, %s238
      %p240 = pneg %p60
      %p241 = pneg %p57
      %p242 = pneg %p81
      %p243 = pneg %p78
      %p244 = pneg %p102
      %p245 = pneg %p99
      %p246 = pneg %p123
      %p247 = pneg %p120
      %p248 = pneg %p144
      %p249 = pneg %p141
      %p250 = pneg %p172
      %p251 = pneg %p169
      %p252 = scmp.lt.s32.totalorder %s21, 1
      %s253 = scalar_select %p252, %s21, 1
      %p254 = scmp.lt.s32.totalorder %s22, 1
      %s255 = scalar_select %p254, %s22, 1
      %s256 = smul.addr %s255, 14
      %s257 = smul.addr %s253, 28
      %s258 = sadd.s32 %s256, %s257
      %s259 = smul.addr %s258, 8
      %s260 = scalar_lea.vmem %s5, %s259
      %s261 = smul.u32 16, %s23
      %p262 = scmp.lt.s32.totalorder %s21, 1
      %s263 = scalar_select %p262, %s21, 1
      %p264 = scmp.lt.s32.totalorder %s22, 1
      %s265 = scalar_select %p264, %s22, 1
      %p266 = scmp.lt.s32.totalorder %s261, 15
      %s267 = scalar_select %p266, %s261, 15
      %s268 = smul.addr %s265, 16
      %s269 = sadd.s32 %s267, %s268
      %s270 = smul.addr %s263, 32
      %s271 = sadd.s32 %s269, %s270
      %s272 = smul.addr %s271, 4
      %s273 = scalar_lea.vmem %s0, %s272
      %s274 = smul.u32 16, %s23
      %p275 = scmp.lt.s32.totalorder %s21, 1
      %s276 = scalar_select %p275, %s21, 1
      %p277 = scmp.lt.s32.totalorder %s22, 1
      %s278 = scalar_select %p277, %s22, 1
      %s279 = smul.addr %s278, 14
      %s280 = smul.addr %s276, 28
      %s281 = sadd.s32 %s279, %s280
      %s282 = smul.addr %s281, 8
      %s283 = scalar_lea.vmem %s5, %s282
      %p285 = scmp.eq.s32.totalorder %s23, 0
      // Predicated region
      $region41: #{emotion_model_forward.2} parent=39 // pred_check
        %p286 = pneg %p285
      $region42: #{emotion_model_forward.2} parent=39 // pred_check_branch
        %288 = sbr.rel (%p286) target = $region44
      $region43: #{emotion_model_forward.2} parent=39 // pred_region
        %289 = vst [vmem:[%s283] sm:$0xff] 0.0
        %290 = vst [vmem:[%s283 + $0x8] sm:$0xff] 0.0
        %291 = vst [vmem:[%s283 + $0x10] sm:$0xff] 0.0
        %292 = vst [vmem:[%s283 + $0x18] sm:$0xff] 0.0
        %293 = vst [vmem:[%s283 + $0x20] sm:$0xff] 0.0
        %294 = vst [vmem:[%s283 + $0x28] sm:$0xff] 0.0
        %295 = vst [vmem:[%s283 + $0x30] sm:$0xff] 0.0
        %296 = vst [vmem:[%s283 + $0x38] sm:$0xff] 0.0
        %297 = vst [vmem:[%s283 + $0x40] sm:$0xff] 0.0
        %298 = vst [vmem:[%s283 + $0x48] sm:$0xff] 0.0
        %299 = vst [vmem:[%s283 + $0x50] sm:$0xff] 0.0
        %300 = vst [vmem:[%s283 + $0x58] sm:$0xff] 0.0
        %301 = vst [vmem:[%s283 + $0x60] sm:$0xff] 0.0
        %302 = vst [vmem:[%s283 + $0x68] sm:$0xff] 0.0
      $region44: #{emotion_model_forward.2} parent=39 // pred_fallthru
        _
      %v303 = vld [vmem:[%s273] sm:$0xf]
      %v304 = vld [vmem:[%s273 + $0x4] sm:$0xf]
      %v305 = vld [vmem:[%s273 + $0x8] sm:$0xf]
      %v306 = vld [vmem:[%s273 + $0xc] sm:$0xf]
      %v307 = vld [vmem:[%s273 + $0x10] sm:$0xf]
      %v308 = vld [vmem:[%s273 + $0x14] sm:$0xf]
      %v309 = vld [vmem:[%s273 + $0x18] sm:$0xf]
      %v310 = vld [vmem:[%s273 + $0x1c] sm:$0xf]
      %v311 = vld [vmem:[%s273 + $0x20] sm:$0xf]
      %v312 = vld [vmem:[%s273 + $0x24] sm:$0xf]
      %v313 = vld [vmem:[%s273 + $0x28] sm:$0xf]
      %v314 = vld [vmem:[%s273 + $0x2c] sm:$0xf]
      %v315 = vld [vmem:[%s273 + $0x30] sm:$0xf]
      %v316 = vld [vmem:[%s273 + $0x34] sm:$0xf]
      %v317 = vld [vmem:[%s273 + $0x38] sm:$0xf]
      %v318 = vld [vmem:[%s273 + $0x3c] sm:$0xf]
      %v319 = vld [vmem:[%s1] sm:$0xf]
      %v320 = vld [vmem:[%s1 + $0x4] sm:$0xf]
      %v321 = vld [vmem:[%s1 + $0x8] sm:$0xf]
      %v322 = vld [vmem:[%s1 + $0xc] sm:$0x3]
      %v323 = vld [vmem:[%s2] sm:$0x1]
      %v325 = vperm.slane %v323, 0
      %v343 = vunpack.c.l.b16 %v303
      %v344 = vunpack.c.l.b16 %v304
      %v345 = vunpack.c.l.b16 %v305
      %v346 = vunpack.c.l.b16 %v306
      %v347 = vunpack.c.l.b16 %v307
      %v348 = vunpack.c.l.b16 %v308
      %v349 = vunpack.c.l.b16 %v309
      %v350 = vunpack.c.l.b16 %v310
      %v351 = vunpack.c.l.b16 %v311
      %v352 = vunpack.c.l.b16 %v312
      %v353 = vunpack.c.l.b16 %v313
      %v354 = vunpack.c.l.b16 %v314
      %v355 = vunpack.c.l.b16 %v315
      %v356 = vunpack.c.l.b16 %v316
      %v357 = vunpack.c.l.b16 %v317
      %v358 = vunpack.c.l.b16 %v318
      %v359 = vpack.c.b16 %v344, %v343
      %v360 = vpack.c.b16 %v346, %v345
      %v361 = vpack.c.b16 %v348, %v347
      %v362 = vpack.c.b16 %v350, %v349
      %v363 = vpack.c.b16 %v352, %v351
      %v364 = vpack.c.b16 %v354, %v353
      %v365 = vpack.c.b16 %v356, %v355
      %v366 = vpack.c.b16 %v358, %v357
      %v371 = vunpack.c.l.b16 %v319
      %v372 = vunpack.c.l.b16 %v320
      %v373 = vunpack.c.l.b16 %v321
      %v374 = vunpack.c.l.b16 %v322
      %v375 = vpack.c.b16 %v372, %v371
      %v376 = vpack.c.b16 %v374, %v373
      %vm378 = vcmask 220160
      %v380 = vsel %vm378, %v359, 0
      %v383 = vsel %vm378, %v360, 0
      %v386 = vsel %vm378, %v361, 0
      %v389 = vsel %vm378, %v362, 0
      %v392 = vsel %vm378, %v363, 0
      %v395 = vsel %vm378, %v364, 0
      %v398 = vsel %vm378, %v365, 0
      %v401 = vsel %vm378, %v366, 0
      %vm403 = vcmask 1044480
      %vm404 = vcmask 1045504
      %v405 = vsel %vm403, 4294967295, 65535
      %v406 = vsel %vm404, %v405, 0
      %v408 = vand.u32 %v376, %v406
      %410 = vmatpush.bf16.msra.mxu0 0
      %411 = vmatpush.bf16.msra.mxu0 0
      %412 = vmatpush.bf16.msra.mxu0 0
      %413 = vmatpush.bf16.msra.mxu0 0
      %414 = vmatpush.bf16.msra.mxu0 0
      %415 = vmatpush.bf16.msra.mxu0 0
      %416 = vmatpush.bf16.msra.mxu0 %v408
      %417 = vmatpush.bf16.msra.mxu0 %v375
      %418 = vmatmul.bf16.gmra.mxu0 %v380
      %v419 = vpop.f32.mrf.mxu0
      %v420 = vadd.f32 %v325, %v419
      %v421 = vpop.f32.mrf.mxu0
      %v422 = vadd.f32 %v325, %v421
      %423 = vmatmul.bf16.gmra.mxu0 %v383
      %v424 = vpop.f32.mrf.mxu0
      %v425 = vadd.f32 %v325, %v424
      %v426 = vpop.f32.mrf.mxu0
      %v427 = vadd.f32 %v325, %v426
      %428 = vmatmul.bf16.gmra.mxu0 %v386
      %v429 = vpop.f32.mrf.mxu0
      %v430 = vadd.f32 %v325, %v429
      %v431 = vpop.f32.mrf.mxu0
      %v432 = vadd.f32 %v325, %v431
      %433 = vmatmul.bf16.gmra.mxu0 %v389
      %v434 = vpop.f32.mrf.mxu0
      %v435 = vadd.f32 %v325, %v434
      %v436 = vpop.f32.mrf.mxu0
      %v437 = vadd.f32 %v325, %v436
      %438 = vmatmul.bf16.gmra.mxu0 %v392
      %v439 = vpop.f32.mrf.mxu0
      %v440 = vadd.f32 %v325, %v439
      %v441 = vpop.f32.mrf.mxu0
      %v442 = vadd.f32 %v325, %v441
      %443 = vmatmul.bf16.gmra.mxu0 %v395
      %v444 = vpop.f32.mrf.mxu0
      %v445 = vadd.f32 %v325, %v444
      %v446 = vpop.f32.mrf.mxu0
      %v447 = vadd.f32 %v325, %v446
      %448 = vmatmul.bf16.gmra.mxu0 %v398
      %v449 = vpop.f32.mrf.mxu0
      %v450 = vadd.f32 %v325, %v449
      %v451 = vpop.f32.mrf.mxu0
      %v452 = vadd.f32 %v325, %v451
      %453 = vmatmul.bf16.gmra.mxu0 %v401
      %v454 = vpop.f32.mrf.mxu0
      %v455 = vadd.f32 %v325, %v454
      %v456 = vpop.f32.mrf.mxu0
      %v457 = vadd.f32 %v325, %v456
      %458 = vdwg.mxu0
      %v459 = vmul.f32 %v420, 0.5
      %v460 = vmul.f32 %v422, 0.5
      %v461 = vmul.f32 %v425, 0.5
      %v462 = vmul.f32 %v427, 0.5
      %v463 = vmul.f32 %v430, 0.5
      %v464 = vmul.f32 %v432, 0.5
      %v465 = vmul.f32 %v435, 0.5
      %v466 = vmul.f32 %v437, 0.5
      %v467 = vmul.f32 %v440, 0.5
      %v468 = vmul.f32 %v442, 0.5
      %v469 = vmul.f32 %v445, 0.5
      %v470 = vmul.f32 %v447, 0.5
      %v471 = vmul.f32 %v450, 0.5
      %v472 = vmul.f32 %v452, 0.5
      %v473 = vmul.f32 %v455, 0.5
      %v474 = vmul.f32 %v457, 0.5
      %v475 = vtanh.pop %v459
      %v476 = vtanh.pop %v460
      %v477 = vtanh.pop %v461
      %v478 = vtanh.pop %v462
      %v479 = vtanh.pop %v463
      %v480 = vtanh.pop %v464
      %v481 = vtanh.pop %v465
      %v482 = vtanh.pop %v466
      %v483 = vtanh.pop %v467
      %v484 = vtanh.pop %v468
      %v485 = vtanh.pop %v469
      %v486 = vtanh.pop %v470
      %v487 = vtanh.pop %v471
      %v488 = vtanh.pop %v472
      %v489 = vtanh.pop %v473
      %v490 = vtanh.pop %v474
      %v491 = vadd.f32 %v475, 1.0
      %v492 = vadd.f32 %v476, 1.0
      %v493 = vadd.f32 %v477, 1.0
      %v494 = vadd.f32 %v478, 1.0
      %v495 = vadd.f32 %v479, 1.0
      %v496 = vadd.f32 %v480, 1.0
      %v497 = vadd.f32 %v481, 1.0
      %v498 = vadd.f32 %v482, 1.0
      %v499 = vadd.f32 %v483, 1.0
      %v500 = vadd.f32 %v484, 1.0
      %v501 = vadd.f32 %v485, 1.0
      %v502 = vadd.f32 %v486, 1.0
      %v503 = vadd.f32 %v487, 1.0
      %v504 = vadd.f32 %v488, 1.0
      %v505 = vadd.f32 %v489, 1.0
      %v506 = vadd.f32 %v490, 1.0
      %v507 = vmul.f32 %v459, %v491
      %v508 = vmul.f32 %v460, %v492
      %v509 = vmul.f32 %v461, %v493
      %v510 = vmul.f32 %v462, %v494
      %v511 = vmul.f32 %v463, %v495
      %v512 = vmul.f32 %v464, %v496
      %v513 = vmul.f32 %v465, %v497
      %v514 = vmul.f32 %v466, %v498
      %v515 = vmul.f32 %v467, %v499
      %v516 = vmul.f32 %v468, %v500
      %v517 = vmul.f32 %v469, %v501
      %v518 = vmul.f32 %v470, %v502
      %v519 = vmul.f32 %v471, %v503
      %v520 = vmul.f32 %v472, %v504
      %v521 = vmul.f32 %v473, %v505
      %v522 = vmul.f32 %v474, %v506
      %v523 = vpack.c.bf16 %v508, %v507
      %v524 = vpack.c.bf16 %v510, %v509
      %v525 = vpack.c.bf16 %v512, %v511
      %v526 = vpack.c.bf16 %v514, %v513
      %v527 = vpack.c.bf16 %v516, %v515
      %v528 = vpack.c.bf16 %v518, %v517
      %v529 = vpack.c.bf16 %v520, %v519
      %v530 = vpack.c.bf16 %v522, %v521
      %v531 = vld [vmem:[%s3] sm:$0xff]
      %v532 = vld [vmem:[%s3 + $0x8] sm:$0xff]
      %v533 = vld [vmem:[%s3 + $0x10] sm:$0xff]
      %v534 = vld [vmem:[%s3 + $0x18] sm:$0xff]
      %v535 = vld [vmem:[%s3 + $0x20] sm:$0xff]
      %v536 = vld [vmem:[%s3 + $0x28] sm:$0xff]
      %v537 = vld [vmem:[%s3 + $0x30] sm:$0xff]
      %v538 = vld [vmem:[%s3 + $0x38] sm:$0xff]
      %v539 = vld [vmem:[%s3 + $0x40] sm:$0xff]
      %v540 = vld [vmem:[%s3 + $0x48] sm:$0xff]
      %v541 = vld [vmem:[%s3 + $0x50] sm:$0xff]
      %v542 = vld [vmem:[%s3 + $0x58] sm:$0xff]
      %v543 = vld [vmem:[%s3 + $0x60] sm:$0xff]
      %v544 = vld [vmem:[%s3 + $0x68] sm:$0xff]
      %v545 = vld [vmem:[%s3 + $0x70] sm:$0xff]
      %v546 = vld [vmem:[%s3 + $0x78] sm:$0xff]
      %v547 = vld [vmem:[%s3 + $0x80] sm:$0xff]
      %v548 = vld [vmem:[%s3 + $0x88] sm:$0xff]
      %v549 = vld [vmem:[%s3 + $0x90] sm:$0xff]
      %v550 = vld [vmem:[%s3 + $0x98] sm:$0xff]
      %v551 = vld [vmem:[%s3 + $0xa0] sm:$0xff]
      %v552 = vld [vmem:[%s3 + $0xa8] sm:$0xff]
      %v553 = vld [vmem:[%s3 + $0xb0] sm:$0xff]
      %v554 = vld [vmem:[%s3 + $0xb8] sm:$0xff]
      %v555 = vld [vmem:[%s3 + $0xc0] sm:$0xff]
      %v556 = vld [vmem:[%s3 + $0xc8] sm:$0xff]
      %v557 = vld [vmem:[%s3 + $0xd0] sm:$0xff]
      %v558 = vld [vmem:[%s3 + $0xd8] sm:$0xff]
      %v559 = vld [vmem:[%s3 + $0xe0] sm:$0xff]
      %v560 = vld [vmem:[%s3 + $0xe8] sm:$0xff]
      %v561 = vld [vmem:[%s3 + $0xf0] sm:$0xff]
      %v562 = vld [vmem:[%s3 + $0xf8] sm:$0xff]
      %v563 = vld [vmem:[%s3 + $0x100] sm:$0xff]
      %v564 = vld [vmem:[%s3 + $0x108] sm:$0xff]
      %v565 = vld [vmem:[%s3 + $0x110] sm:$0xff]
      %v566 = vld [vmem:[%s3 + $0x118] sm:$0xff]
      %v567 = vld [vmem:[%s3 + $0x120] sm:$0xff]
      %v568 = vld [vmem:[%s3 + $0x128] sm:$0xff]
      %v569 = vld [vmem:[%s3 + $0x130] sm:$0xff]
      %v570 = vld [vmem:[%s3 + $0x138] sm:$0xff]
      %v571 = vld [vmem:[%s3 + $0x140] sm:$0xff]
      %v572 = vld [vmem:[%s3 + $0x148] sm:$0xff]
      %v573 = vld [vmem:[%s4] sm:$0xff]
      %v574 = vld [vmem:[%s4 + $0x8] sm:$0x3f]
      %v577 = vperm.slane %v573, 0
      %v578 = vperm.slane %v573, 1
      %v579 = vperm.slane %v573, 2
      %v580 = vperm.slane %v573, 3
      %v581 = vperm.slane %v573, 4
      %v582 = vperm.slane %v573, 5
      %v583 = vperm.slane %v573, 6
      %v584 = vperm.slane %v573, 7
      %v585 = vperm.slane %v574, 0
      %v586 = vperm.slane %v574, 1
      %v587 = vperm.slane %v574, 2
      %v588 = vperm.slane %v574, 3
      %v589 = vperm.slane %v574, 4
      %v590 = vperm.slane %v574, 5
      %v647 = vunpack.c.l.b16 %v531
      %v648 = vunpack.c.h.b16 %v531
      %v649 = vunpack.c.l.b16 %v532
      %v650 = vunpack.c.h.b16 %v532
      %v651 = vunpack.c.l.b16 %v533
      %v652 = vunpack.c.h.b16 %v533
      %v653 = vunpack.c.l.b16 %v534
      %v654 = vunpack.c.h.b16 %v534
      %v655 = vunpack.c.l.b16 %v535
      %v656 = vunpack.c.h.b16 %v535
      %v657 = vunpack.c.l.b16 %v536
      %v658 = vunpack.c.h.b16 %v536
      %v659 = vunpack.c.l.b16 %v537
      %v660 = vunpack.c.h.b16 %v537
      %v661 = vunpack.c.l.b16 %v538
      %v662 = vunpack.c.h.b16 %v538
      %v663 = vunpack.c.l.b16 %v539
      %v664 = vunpack.c.h.b16 %v539
      %v665 = vunpack.c.l.b16 %v540
      %v666 = vunpack.c.h.b16 %v540
      %v667 = vunpack.c.l.b16 %v541
      %v668 = vunpack.c.h.b16 %v541
      %v669 = vunpack.c.l.b16 %v542
      %v670 = vunpack.c.h.b16 %v542
      %v671 = vunpack.c.l.b16 %v543
      %v672 = vunpack.c.h.b16 %v543
      %v673 = vunpack.c.l.b16 %v544
      %v674 = vunpack.c.h.b16 %v544
      %v675 = vunpack.c.l.b16 %v545
      %v676 = vunpack.c.h.b16 %v545
      %v677 = vunpack.c.l.b16 %v546
      %v678 = vunpack.c.h.b16 %v546
      %v679 = vunpack.c.l.b16 %v547
      %v680 = vunpack.c.h.b16 %v547
      %v681 = vunpack.c.l.b16 %v548
      %v682 = vunpack.c.h.b16 %v548
      %v683 = vunpack.c.l.b16 %v549
      %v684 = vunpack.c.h.b16 %v549
      %v685 = vunpack.c.l.b16 %v550
      %v686 = vunpack.c.h.b16 %v550
      %v687 = vunpack.c.l.b16 %v551
      %v688 = vunpack.c.h.b16 %v551
      %v689 = vunpack.c.l.b16 %v552
      %v690 = vunpack.c.h.b16 %v552
      %v691 = vunpack.c.l.b16 %v553
      %v692 = vunpack.c.h.b16 %v553
      %v693 = vunpack.c.l.b16 %v554
      %v694 = vunpack.c.h.b16 %v554
      %v695 = vunpack.c.l.b16 %v555
      %v696 = vunpack.c.h.b16 %v555
      %v697 = vunpack.c.l.b16 %v556
      %v698 = vunpack.c.h.b16 %v556
      %v699 = vunpack.c.l.b16 %v557
      %v700 = vunpack.c.h.b16 %v557
      %v701 = vunpack.c.l.b16 %v558
      %v702 = vunpack.c.h.b16 %v558
      %v703 = vunpack.c.l.b16 %v559
      %v704 = vunpack.c.h.b16 %v559
      %v705 = vunpack.c.l.b16 %v560
      %v706 = vunpack.c.h.b16 %v560
      %v707 = vunpack.c.l.b16 %v561
      %v708 = vunpack.c.h.b16 %v561
      %v709 = vunpack.c.l.b16 %v562
      %v710 = vunpack.c.h.b16 %v562
      %v711 = vunpack.c.l.b16 %v563
      %v712 = vunpack.c.h.b16 %v563
      %v713 = vunpack.c.l.b16 %v564
      %v714 = vunpack.c.h.b16 %v564
      %v715 = vunpack.c.l.b16 %v565
      %v716 = vunpack.c.h.b16 %v565
      %v717 = vunpack.c.l.b16 %v566
      %v718 = vunpack.c.h.b16 %v566
      %v719 = vunpack.c.l.b16 %v567
      %v720 = vunpack.c.h.b16 %v567
      %v721 = vunpack.c.l.b16 %v568
      %v722 = vunpack.c.h.b16 %v568
      %v723 = vunpack.c.l.b16 %v569
      %v724 = vunpack.c.h.b16 %v569
      %v725 = vunpack.c.l.b16 %v570
      %v726 = vunpack.c.h.b16 %v570
      %v727 = vunpack.c.l.b16 %v571
      %v728 = vunpack.c.h.b16 %v571
      %v729 = vunpack.c.l.b16 %v572
      %v730 = vunpack.c.h.b16 %v572
      %v731 = vpack.c.b16 %v661, %v647
      %v732 = vpack.c.b16 %v662, %v648
      %v733 = vpack.c.b16 %v663, %v649
      %v734 = vpack.c.b16 %v664, %v650
      %v735 = vpack.c.b16 %v665, %v651
      %v736 = vpack.c.b16 %v666, %v652
      %v737 = vpack.c.b16 %v667, %v653
      %v738 = vpack.c.b16 %v668, %v654
      %v739 = vpack.c.b16 %v669, %v655
      %v740 = vpack.c.b16 %v670, %v656
      %v741 = vpack.c.b16 %v671, %v657
      %v742 = vpack.c.b16 %v672, %v658
      %v743 = vpack.c.b16 %v673, %v659
      %v744 = vpack.c.b16 %v674, %v660
      %v745 = vpack.c.b16 %v689, %v675
      %v746 = vpack.c.b16 %v690, %v676
      %v747 = vpack.c.b16 %v691, %v677
      %v748 = vpack.c.b16 %v692, %v678
      %v749 = vpack.c.b16 %v693, %v679
      %v750 = vpack.c.b16 %v694, %v680
      %v751 = vpack.c.b16 %v695, %v681
      %v752 = vpack.c.b16 %v696, %v682
      %v753 = vpack.c.b16 %v697, %v683
      %v754 = vpack.c.b16 %v698, %v684
      %v755 = vpack.c.b16 %v699, %v685
      %v756 = vpack.c.b16 %v700, %v686
      %v757 = vpack.c.b16 %v701, %v687
      %v758 = vpack.c.b16 %v702, %v688
      %v759 = vpack.c.b16 %v717, %v703
      %v760 = vpack.c.b16 %v718, %v704
      %v761 = vpack.c.b16 %v719, %v705
      %v762 = vpack.c.b16 %v720, %v706
      %v763 = vpack.c.b16 %v721, %v707
      %v764 = vpack.c.b16 %v722, %v708
      %v765 = vpack.c.b16 %v723, %v709
      %v766 = vpack.c.b16 %v724, %v710
      %v767 = vpack.c.b16 %v725, %v711
      %v768 = vpack.c.b16 %v726, %v712
      %v769 = vpack.c.b16 %v727, %v713
      %v770 = vpack.c.b16 %v728, %v714
      %v771 = vpack.c.b16 %v729, %v715
      %v772 = vpack.c.b16 %v730, %v716
      %vm815 = vcmask 392192
      %v817 = vsel %vm815, %v523, 0
      %v820 = vsel %vm815, %v524, 0
      %v823 = vsel %vm815, %v525, 0
      %v826 = vsel %vm815, %v526, 0
      %v829 = vsel %vm815, %v527, 0
      %v832 = vsel %vm815, %v528, 0
      %v835 = vsel %vm815, %v529, 0
      %v838 = vsel %vm815, %v530, 0
      %840 = vmatpush.bf16.msra.mxu0 0
      %841 = vmatpush.bf16.msra.mxu0 0
      %842 = vmatpush.bf16.msra.mxu0 0
      %843 = vmatpush.bf16.msra.mxu0 0
      %844 = vmatpush.bf16.msra.mxu0 0
      %845 = vmatpush.bf16.msra.mxu0 %v759
      %846 = vmatpush.bf16.msra.mxu0 %v745
      %847 = vmatpush.bf16.msra.mxu0 %v731
      %848 = vmatmul.bf16.gmra.mxu0 %v817
      %v849 = vpop.f32.mrf.mxu0
      %v850 = vadd.f32 %v577, %v849
      %v851 = vpop.f32.mrf.mxu0
      %v852 = vadd.f32 %v577, %v851
      %853 = vmatmul.bf16.gmra.mxu0 %v820
      %v854 = vpop.f32.mrf.mxu0
      %v855 = vadd.f32 %v577, %v854
      %v856 = vpop.f32.mrf.mxu0
      %v857 = vadd.f32 %v577, %v856
      %858 = vmatmul.bf16.gmra.mxu0 %v823
      %v859 = vpop.f32.mrf.mxu0
      %v860 = vadd.f32 %v577, %v859
      %v861 = vpop.f32.mrf.mxu0
      %v862 = vadd.f32 %v577, %v861
      %863 = vmatmul.bf16.gmra.mxu0 %v826
      %v864 = vpop.f32.mrf.mxu0
      %v865 = vadd.f32 %v577, %v864
      %v866 = vpop.f32.mrf.mxu0
      %v867 = vadd.f32 %v577, %v866
      %868 = vmatmul.bf16.gmra.mxu0 %v829
      %v869 = vpop.f32.mrf.mxu0
      %v870 = vadd.f32 %v577, %v869
      %v871 = vpop.f32.mrf.mxu0
      %v872 = vadd.f32 %v577, %v871
      %873 = vmatmul.bf16.gmra.mxu0 %v832
      %v874 = vpop.f32.mrf.mxu0
      %v875 = vadd.f32 %v577, %v874
      %v876 = vpop.f32.mrf.mxu0
      %v877 = vadd.f32 %v577, %v876
      %878 = vmatmul.bf16.gmra.mxu0 %v835
      %v879 = vpop.f32.mrf.mxu0
      %v880 = vadd.f32 %v577, %v879
      %v881 = vpop.f32.mrf.mxu0
      %v882 = vadd.f32 %v577, %v881
      %883 = vmatmul.bf16.gmra.mxu0 %v838
      %v884 = vpop.f32.mrf.mxu0
      %v885 = vadd.f32 %v577, %v884
      %v886 = vpop.f32.mrf.mxu0
      %v887 = vadd.f32 %v577, %v886
      %888 = vdwg.mxu0
      %889 = vmatpush.bf16.msra.mxu0 0
      %890 = vmatpush.bf16.msra.mxu0 0
      %891 = vmatpush.bf16.msra.mxu0 0
      %892 = vmatpush.bf16.msra.mxu0 0
      %893 = vmatpush.bf16.msra.mxu0 0
      %894 = vmatpush.bf16.msra.mxu0 %v760
      %895 = vmatpush.bf16.msra.mxu0 %v746
      %896 = vmatpush.bf16.msra.mxu0 %v732
      %897 = vmatmul.bf16.gmra.mxu0 %v817
      %v898 = vpop.f32.mrf.mxu0
      %v899 = vadd.f32 %v578, %v898
      %v900 = vpop.f32.mrf.mxu0
      %v901 = vadd.f32 %v578, %v900
      %902 = vmatmul.bf16.gmra.mxu0 %v820
      %v903 = vpop.f32.mrf.mxu0
      %v904 = vadd.f32 %v578, %v903
      %v905 = vpop.f32.mrf.mxu0
      %v906 = vadd.f32 %v578, %v905
      %907 = vmatmul.bf16.gmra.mxu0 %v823
      %v908 = vpop.f32.mrf.mxu0
      %v909 = vadd.f32 %v578, %v908
      %v910 = vpop.f32.mrf.mxu0
      %v911 = vadd.f32 %v578, %v910
      %912 = vmatmul.bf16.gmra.mxu0 %v826
      %v913 = vpop.f32.mrf.mxu0
      %v914 = vadd.f32 %v578, %v913
      %v915 = vpop.f32.mrf.mxu0
      %v916 = vadd.f32 %v578, %v915
      %917 = vmatmul.bf16.gmra.mxu0 %v829
      %v918 = vpop.f32.mrf.mxu0
      %v919 = vadd.f32 %v578, %v918
      %v920 = vpop.f32.mrf.mxu0
      %v921 = vadd.f32 %v578, %v920
      %922 = vmatmul.bf16.gmra.mxu0 %v832
      %v923 = vpop.f32.mrf.mxu0
      %v924 = vadd.f32 %v578, %v923
      %v925 = vpop.f32.mrf.mxu0
      %v926 = vadd.f32 %v578, %v925
      %927 = vmatmul.bf16.gmra.mxu0 %v835
      %v928 = vpop.f32.mrf.mxu0
      %v929 = vadd.f32 %v578, %v928
      %v930 = vpop.f32.mrf.mxu0
      %v931 = vadd.f32 %v578, %v930
      %932 = vmatmul.bf16.gmra.mxu0 %v838
      %v933 = vpop.f32.mrf.mxu0
      %v934 = vadd.f32 %v578, %v933
      %v935 = vpop.f32.mrf.mxu0
      %v936 = vadd.f32 %v578, %v935
      %937 = vdwg.mxu0
      %938 = vmatpush.bf16.msra.mxu0 0
      %939 = vmatpush.bf16.msra.mxu0 0
      %940 = vmatpush.bf16.msra.mxu0 0
      %941 = vmatpush.bf16.msra.mxu0 0
      %942 = vmatpush.bf16.msra.mxu0 0
      %943 = vmatpush.bf16.msra.mxu0 %v761
      %944 = vmatpush.bf16.msra.mxu0 %v747
      %945 = vmatpush.bf16.msra.mxu0 %v733
      %946 = vmatmul.bf16.gmra.mxu0 %v817
      %v947 = vpop.f32.mrf.mxu0
      %v948 = vadd.f32 %v579, %v947
      %v949 = vpop.f32.mrf.mxu0
      %v950 = vadd.f32 %v579, %v949
      %951 = vmatmul.bf16.gmra.mxu0 %v820
      %v952 = vpop.f32.mrf.mxu0
      %v953 = vadd.f32 %v579, %v952
      %v954 = vpop.f32.mrf.mxu0
      %v955 = vadd.f32 %v579, %v954
      %956 = vmatmul.bf16.gmra.mxu0 %v823
      %v957 = vpop.f32.mrf.mxu0
      %v958 = vadd.f32 %v579, %v957
      %v959 = vpop.f32.mrf.mxu0
      %v960 = vadd.f32 %v579, %v959
      %961 = vmatmul.bf16.gmra.mxu0 %v826
      %v962 = vpop.f32.mrf.mxu0
      %v963 = vadd.f32 %v579, %v962
      %v964 = vpop.f32.mrf.mxu0
      %v965 = vadd.f32 %v579, %v964
      %966 = vmatmul.bf16.gmra.mxu0 %v829
      %v967 = vpop.f32.mrf.mxu0
      %v968 = vadd.f32 %v579, %v967
      %v969 = vpop.f32.mrf.mxu0
      %v970 = vadd.f32 %v579, %v969
      %971 = vmatmul.bf16.gmra.mxu0 %v832
      %v972 = vpop.f32.mrf.mxu0
      %v973 = vadd.f32 %v579, %v972
      %v974 = vpop.f32.mrf.mxu0
      %v975 = vadd.f32 %v579, %v974
      %976 = vmatmul.bf16.gmra.mxu0 %v835
      %v977 = vpop.f32.mrf.mxu0
      %v978 = vadd.f32 %v579, %v977
      %v979 = vpop.f32.mrf.mxu0
      %v980 = vadd.f32 %v579, %v979
      %981 = vmatmul.bf16.gmra.mxu0 %v838
      %v982 = vpop.f32.mrf.mxu0
      %v983 = vadd.f32 %v579, %v982
      %v984 = vpop.f32.mrf.mxu0
      %v985 = vadd.f32 %v579, %v984
      %986 = vdwg.mxu0
      %987 = vmatpush.bf16.msra.mxu0 0
      %988 = vmatpush.bf16.msra.mxu0 0
      %989 = vmatpush.bf16.msra.mxu0 0
      %990 = vmatpush.bf16.msra.mxu0 0
      %991 = vmatpush.bf16.msra.mxu0 0
      %992 = vmatpush.bf16.msra.mxu0 %v762
      %993 = vmatpush.bf16.msra.mxu0 %v748
      %994 = vmatpush.bf16.msra.mxu0 %v734
      %995 = vmatmul.bf16.gmra.mxu0 %v817
      %v996 = vpop.f32.mrf.mxu0
      %v997 = vadd.f32 %v580, %v996
      %v998 = vpop.f32.mrf.mxu0
      %v999 = vadd.f32 %v580, %v998
      %1000 = vmatmul.bf16.gmra.mxu0 %v820
      %v1001 = vpop.f32.mrf.mxu0
      %v1002 = vadd.f32 %v580, %v1001
      %v1003 = vpop.f32.mrf.mxu0
      %v1004 = vadd.f32 %v580, %v1003
      %1005 = vmatmul.bf16.gmra.mxu0 %v823
      %v1006 = vpop.f32.mrf.mxu0
      %v1007 = vadd.f32 %v580, %v1006
      %v1008 = vpop.f32.mrf.mxu0
      %v1009 = vadd.f32 %v580, %v1008
      %1010 = vmatmul.bf16.gmra.mxu0 %v826
      %v1011 = vpop.f32.mrf.mxu0
      %v1012 = vadd.f32 %v580, %v1011
      %v1013 = vpop.f32.mrf.mxu0
      %v1014 = vadd.f32 %v580, %v1013
      %1015 = vmatmul.bf16.gmra.mxu0 %v829
      %v1016 = vpop.f32.mrf.mxu0
      %v1017 = vadd.f32 %v580, %v1016
      %v1018 = vpop.f32.mrf.mxu0
      %v1019 = vadd.f32 %v580, %v1018
      %1020 = vmatmul.bf16.gmra.mxu0 %v832
      %v1021 = vpop.f32.mrf.mxu0
      %v1022 = vadd.f32 %v580, %v1021
      %v1023 = vpop.f32.mrf.mxu0
      %v1024 = vadd.f32 %v580, %v1023
      %1025 = vmatmul.bf16.gmra.mxu0 %v835
      %v1026 = vpop.f32.mrf.mxu0
      %v1027 = vadd.f32 %v580, %v1026
      %v1028 = vpop.f32.mrf.mxu0
      %v1029 = vadd.f32 %v580, %v1028
      %1030 = vmatmul.bf16.gmra.mxu0 %v838
      %v1031 = vpop.f32.mrf.mxu0
      %v1032 = vadd.f32 %v580, %v1031
      %v1033 = vpop.f32.mrf.mxu0
      %v1034 = vadd.f32 %v580, %v1033
      %1035 = vdwg.mxu0
      %1036 = vmatpush.bf16.msra.mxu0 0
      %1037 = vmatpush.bf16.msra.mxu0 0
      %1038 = vmatpush.bf16.msra.mxu0 0
      %1039 = vmatpush.bf16.msra.mxu0 0
      %1040 = vmatpush.bf16.msra.mxu0 0
      %1041 = vmatpush.bf16.msra.mxu0 %v763
      %1042 = vmatpush.bf16.msra.mxu0 %v749
      %1043 = vmatpush.bf16.msra.mxu0 %v735
      %1044 = vmatmul.bf16.gmra.mxu0 %v817
      %v1045 = vpop.f32.mrf.mxu0
      %v1046 = vadd.f32 %v581, %v1045
      %v1047 = vpop.f32.mrf.mxu0
      %v1048 = vadd.f32 %v581, %v1047
      %1049 = vmatmul.bf16.gmra.mxu0 %v820
      %v1050 = vpop.f32.mrf.mxu0
      %v1051 = vadd.f32 %v581, %v1050
      %v1052 = vpop.f32.mrf.mxu0
      %v1053 = vadd.f32 %v581, %v1052
      %1054 = vmatmul.bf16.gmra.mxu0 %v823
      %v1055 = vpop.f32.mrf.mxu0
      %v1056 = vadd.f32 %v581, %v1055
      %v1057 = vpop.f32.mrf.mxu0
      %v1058 = vadd.f32 %v581, %v1057
      %1059 = vmatmul.bf16.gmra.mxu0 %v826
      %v1060 = vpop.f32.mrf.mxu0
      %v1061 = vadd.f32 %v581, %v1060
      %v1062 = vpop.f32.mrf.mxu0
      %v1063 = vadd.f32 %v581, %v1062
      %1064 = vmatmul.bf16.gmra.mxu0 %v829
      %v1065 = vpop.f32.mrf.mxu0
      %v1066 = vadd.f32 %v581, %v1065
      %v1067 = vpop.f32.mrf.mxu0
      %v1068 = vadd.f32 %v581, %v1067
      %1069 = vmatmul.bf16.gmra.mxu0 %v832
      %v1070 = vpop.f32.mrf.mxu0
      %v1071 = vadd.f32 %v581, %v1070
      %v1072 = vpop.f32.mrf.mxu0
      %v1073 = vadd.f32 %v581, %v1072
      %1074 = vmatmul.bf16.gmra.mxu0 %v835
      %v1075 = vpop.f32.mrf.mxu0
      %v1076 = vadd.f32 %v581, %v1075
      %v1077 = vpop.f32.mrf.mxu0
      %v1078 = vadd.f32 %v581, %v1077
      %1079 = vmatmul.bf16.gmra.mxu0 %v838
      %v1080 = vpop.f32.mrf.mxu0
      %v1081 = vadd.f32 %v581, %v1080
      %v1082 = vpop.f32.mrf.mxu0
      %v1083 = vadd.f32 %v581, %v1082
      %1084 = vdwg.mxu0
      %1085 = vmatpush.bf16.msra.mxu0 0
      %1086 = vmatpush.bf16.msra.mxu0 0
      %1087 = vmatpush.bf16.msra.mxu0 0
      %1088 = vmatpush.bf16.msra.mxu0 0
      %1089 = vmatpush.bf16.msra.mxu0 0
      %1090 = vmatpush.bf16.msra.mxu0 %v764
      %1091 = vmatpush.bf16.msra.mxu0 %v750
      %1092 = vmatpush.bf16.msra.mxu0 %v736
      %1093 = vmatmul.bf16.gmra.mxu0 %v817
      %v1094 = vpop.f32.mrf.mxu0
      %v1095 = vadd.f32 %v582, %v1094
      %v1096 = vpop.f32.mrf.mxu0
      %v1097 = vadd.f32 %v582, %v1096
      %1098 = vmatmul.bf16.gmra.mxu0 %v820
      %v1099 = vpop.f32.mrf.mxu0
      %v1100 = vadd.f32 %v582, %v1099
      %v1101 = vpop.f32.mrf.mxu0
      %v1102 = vadd.f32 %v582, %v1101
      %1103 = vmatmul.bf16.gmra.mxu0 %v823
      %v1104 = vpop.f32.mrf.mxu0
      %v1105 = vadd.f32 %v582, %v1104
      %v1106 = vpop.f32.mrf.mxu0
      %v1107 = vadd.f32 %v582, %v1106
      %1108 = vmatmul.bf16.gmra.mxu0 %v826
      %v1109 = vpop.f32.mrf.mxu0
      %v1110 = vadd.f32 %v582, %v1109
      %v1111 = vpop.f32.mrf.mxu0
      %v1112 = vadd.f32 %v582, %v1111
      %1113 = vmatmul.bf16.gmra.mxu0 %v829
      %v1114 = vpop.f32.mrf.mxu0
      %v1115 = vadd.f32 %v582, %v1114
      %v1116 = vpop.f32.mrf.mxu0
      %v1117 = vadd.f32 %v582, %v1116
      %1118 = vmatmul.bf16.gmra.mxu0 %v832
      %v1119 = vpop.f32.mrf.mxu0
      %v1120 = vadd.f32 %v582, %v1119
      %v1121 = vpop.f32.mrf.mxu0
      %v1122 = vadd.f32 %v582, %v1121
      %1123 = vmatmul.bf16.gmra.mxu0 %v835
      %v1124 = vpop.f32.mrf.mxu0
      %v1125 = vadd.f32 %v582, %v1124
      %v1126 = vpop.f32.mrf.mxu0
      %v1127 = vadd.f32 %v582, %v1126
      %1128 = vmatmul.bf16.gmra.mxu0 %v838
      %v1129 = vpop.f32.mrf.mxu0
      %v1130 = vadd.f32 %v582, %v1129
      %v1131 = vpop.f32.mrf.mxu0
      %v1132 = vadd.f32 %v582, %v1131
      %1133 = vdwg.mxu0
      %1134 = vmatpush.bf16.msra.mxu0 0
      %1135 = vmatpush.bf16.msra.mxu0 0
      %1136 = vmatpush.bf16.msra.mxu0 0
      %1137 = vmatpush.bf16.msra.mxu0 0
      %1138 = vmatpush.bf16.msra.mxu0 0
      %1139 = vmatpush.bf16.msra.mxu0 %v765
      %1140 = vmatpush.bf16.msra.mxu0 %v751
      %1141 = vmatpush.bf16.msra.mxu0 %v737
      %1142 = vmatmul.bf16.gmra.mxu0 %v817
      %v1143 = vpop.f32.mrf.mxu0
      %v1144 = vadd.f32 %v583, %v1143
      %v1145 = vpop.f32.mrf.mxu0
      %v1146 = vadd.f32 %v583, %v1145
      %1147 = vmatmul.bf16.gmra.mxu0 %v820
      %v1148 = vpop.f32.mrf.mxu0
      %v1149 = vadd.f32 %v583, %v1148
      %v1150 = vpop.f32.mrf.mxu0
      %v1151 = vadd.f32 %v583, %v1150
      %1152 = vmatmul.bf16.gmra.mxu0 %v823
      %v1153 = vpop.f32.mrf.mxu0
      %v1154 = vadd.f32 %v583, %v1153
      %v1155 = vpop.f32.mrf.mxu0
      %v1156 = vadd.f32 %v583, %v1155
      %1157 = vmatmul.bf16.gmra.mxu0 %v826
      %v1158 = vpop.f32.mrf.mxu0
      %v1159 = vadd.f32 %v583, %v1158
      %v1160 = vpop.f32.mrf.mxu0
      %v1161 = vadd.f32 %v583, %v1160
      %1162 = vmatmul.bf16.gmra.mxu0 %v829
      %v1163 = vpop.f32.mrf.mxu0
      %v1164 = vadd.f32 %v583, %v1163
      %v1165 = vpop.f32.mrf.mxu0
      %v1166 = vadd.f32 %v583, %v1165
      %1167 = vmatmul.bf16.gmra.mxu0 %v832
      %v1168 = vpop.f32.mrf.mxu0
      %v1169 = vadd.f32 %v583, %v1168
      %v1170 = vpop.f32.mrf.mxu0
      %v1171 = vadd.f32 %v583, %v1170
      %1172 = vmatmul.bf16.gmra.mxu0 %v835
      %v1173 = vpop.f32.mrf.mxu0
      %v1174 = vadd.f32 %v583, %v1173
      %v1175 = vpop.f32.mrf.mxu0
      %v1176 = vadd.f32 %v583, %v1175
      %1177 = vmatmul.bf16.gmra.mxu0 %v838
      %v1178 = vpop.f32.mrf.mxu0
      %v1179 = vadd.f32 %v583, %v1178
      %v1180 = vpop.f32.mrf.mxu0
      %v1181 = vadd.f32 %v583, %v1180
      %1182 = vdwg.mxu0
      %1183 = vmatpush.bf16.msra.mxu0 0
      %1184 = vmatpush.bf16.msra.mxu0 0
      %1185 = vmatpush.bf16.msra.mxu0 0
      %1186 = vmatpush.bf16.msra.mxu0 0
      %1187 = vmatpush.bf16.msra.mxu0 0
      %1188 = vmatpush.bf16.msra.mxu0 %v766
      %1189 = vmatpush.bf16.msra.mxu0 %v752
      %1190 = vmatpush.bf16.msra.mxu0 %v738
      %1191 = vmatmul.bf16.gmra.mxu0 %v817
      %v1192 = vpop.f32.mrf.mxu0
      %v1193 = vadd.f32 %v584, %v1192
      %v1194 = vpop.f32.mrf.mxu0
      %v1195 = vadd.f32 %v584, %v1194
      %1196 = vmatmul.bf16.gmra.mxu0 %v820
      %v1197 = vpop.f32.mrf.mxu0
      %v1198 = vadd.f32 %v584, %v1197
      %v1199 = vpop.f32.mrf.mxu0
      %v1200 = vadd.f32 %v584, %v1199
      %1201 = vmatmul.bf16.gmra.mxu0 %v823
      %v1202 = vpop.f32.mrf.mxu0
      %v1203 = vadd.f32 %v584, %v1202
      %v1204 = vpop.f32.mrf.mxu0
      %v1205 = vadd.f32 %v584, %v1204
      %1206 = vmatmul.bf16.gmra.mxu0 %v826
      %v1207 = vpop.f32.mrf.mxu0
      %v1208 = vadd.f32 %v584, %v1207
      %v1209 = vpop.f32.mrf.mxu0
      %v1210 = vadd.f32 %v584, %v1209
      %1211 = vmatmul.bf16.gmra.mxu0 %v829
      %v1212 = vpop.f32.mrf.mxu0
      %v1213 = vadd.f32 %v584, %v1212
      %v1214 = vpop.f32.mrf.mxu0
      %v1215 = vadd.f32 %v584, %v1214
      %1216 = vmatmul.bf16.gmra.mxu0 %v832
      %v1217 = vpop.f32.mrf.mxu0
      %v1218 = vadd.f32 %v584, %v1217
      %v1219 = vpop.f32.mrf.mxu0
      %v1220 = vadd.f32 %v584, %v1219
      %1221 = vmatmul.bf16.gmra.mxu0 %v835
      %v1222 = vpop.f32.mrf.mxu0
      %v1223 = vadd.f32 %v584, %v1222
      %v1224 = vpop.f32.mrf.mxu0
      %v1225 = vadd.f32 %v584, %v1224
      %1226 = vmatmul.bf16.gmra.mxu0 %v838
      %v1227 = vpop.f32.mrf.mxu0
      %v1228 = vadd.f32 %v584, %v1227
      %v1229 = vpop.f32.mrf.mxu0
      %v1230 = vadd.f32 %v584, %v1229
      %1231 = vdwg.mxu0
      %1232 = vmatpush.bf16.msra.mxu0 0
      %1233 = vmatpush.bf16.msra.mxu0 0
      %1234 = vmatpush.bf16.msra.mxu0 0
      %1235 = vmatpush.bf16.msra.mxu0 0
      %1236 = vmatpush.bf16.msra.mxu0 0
      %1237 = vmatpush.bf16.msra.mxu0 %v767
      %1238 = vmatpush.bf16.msra.mxu0 %v753
      %1239 = vmatpush.bf16.msra.mxu0 %v739
      %1240 = vmatmul.bf16.gmra.mxu0 %v817
      %v1241 = vpop.f32.mrf.mxu0
      %v1242 = vadd.f32 %v585, %v1241
      %v1243 = vpop.f32.mrf.mxu0
      %v1244 = vadd.f32 %v585, %v1243
      %1245 = vmatmul.bf16.gmra.mxu0 %v820
      %v1246 = vpop.f32.mrf.mxu0
      %v1247 = vadd.f32 %v585, %v1246
      %v1248 = vpop.f32.mrf.mxu0
      %v1249 = vadd.f32 %v585, %v1248
      %1250 = vmatmul.bf16.gmra.mxu0 %v823
      %v1251 = vpop.f32.mrf.mxu0
      %v1252 = vadd.f32 %v585, %v1251
      %v1253 = vpop.f32.mrf.mxu0
      %v1254 = vadd.f32 %v585, %v1253
      %1255 = vmatmul.bf16.gmra.mxu0 %v826
      %v1256 = vpop.f32.mrf.mxu0
      %v1257 = vadd.f32 %v585, %v1256
      %v1258 = vpop.f32.mrf.mxu0
      %v1259 = vadd.f32 %v585, %v1258
      %1260 = vmatmul.bf16.gmra.mxu0 %v829
      %v1261 = vpop.f32.mrf.mxu0
      %v1262 = vadd.f32 %v585, %v1261
      %v1263 = vpop.f32.mrf.mxu0
      %v1264 = vadd.f32 %v585, %v1263
      %1265 = vmatmul.bf16.gmra.mxu0 %v832
      %v1266 = vpop.f32.mrf.mxu0
      %v1267 = vadd.f32 %v585, %v1266
      %v1268 = vpop.f32.mrf.mxu0
      %v1269 = vadd.f32 %v585, %v1268
      %1270 = vmatmul.bf16.gmra.mxu0 %v835
      %v1271 = vpop.f32.mrf.mxu0
      %v1272 = vadd.f32 %v585, %v1271
      %v1273 = vpop.f32.mrf.mxu0
      %v1274 = vadd.f32 %v585, %v1273
      %1275 = vmatmul.bf16.gmra.mxu0 %v838
      %v1276 = vpop.f32.mrf.mxu0
      %v1277 = vadd.f32 %v585, %v1276
      %v1278 = vpop.f32.mrf.mxu0
      %v1279 = vadd.f32 %v585, %v1278
      %1280 = vdwg.mxu0
      %1281 = vmatpush.bf16.msra.mxu0 0
      %1282 = vmatpush.bf16.msra.mxu0 0
      %1283 = vmatpush.bf16.msra.mxu0 0
      %1284 = vmatpush.bf16.msra.mxu0 0
      %1285 = vmatpush.bf16.msra.mxu0 0
      %1286 = vmatpush.bf16.msra.mxu0 %v768
      %1287 = vmatpush.bf16.msra.mxu0 %v754
      %1288 = vmatpush.bf16.msra.mxu0 %v740
      %1289 = vmatmul.bf16.gmra.mxu0 %v817
      %v1290 = vpop.f32.mrf.mxu0
      %v1291 = vadd.f32 %v586, %v1290
      %v1292 = vpop.f32.mrf.mxu0
      %v1293 = vadd.f32 %v586, %v1292
      %1294 = vmatmul.bf16.gmra.mxu0 %v820
      %v1295 = vpop.f32.mrf.mxu0
      %v1296 = vadd.f32 %v586, %v1295
      %v1297 = vpop.f32.mrf.mxu0
      %v1298 = vadd.f32 %v586, %v1297
      %1299 = vmatmul.bf16.gmra.mxu0 %v823
      %v1300 = vpop.f32.mrf.mxu0
      %v1301 = vadd.f32 %v586, %v1300
      %v1302 = vpop.f32.mrf.mxu0
      %v1303 = vadd.f32 %v586, %v1302
      %1304 = vmatmul.bf16.gmra.mxu0 %v826
      %v1305 = vpop.f32.mrf.mxu0
      %v1306 = vadd.f32 %v586, %v1305
      %v1307 = vpop.f32.mrf.mxu0
      %v1308 = vadd.f32 %v586, %v1307
      %1309 = vmatmul.bf16.gmra.mxu0 %v829
      %v1310 = vpop.f32.mrf.mxu0
      %v1311 = vadd.f32 %v586, %v1310
      %v1312 = vpop.f32.mrf.mxu0
      %v1313 = vadd.f32 %v586, %v1312
      %1314 = vmatmul.bf16.gmra.mxu0 %v832
      %v1315 = vpop.f32.mrf.mxu0
      %v1316 = vadd.f32 %v586, %v1315
      %v1317 = vpop.f32.mrf.mxu0
      %v1318 = vadd.f32 %v586, %v1317
      %1319 = vmatmul.bf16.gmra.mxu0 %v835
      %v1320 = vpop.f32.mrf.mxu0
      %v1321 = vadd.f32 %v586, %v1320
      %v1322 = vpop.f32.mrf.mxu0
      %v1323 = vadd.f32 %v586, %v1322
      %1324 = vmatmul.bf16.gmra.mxu0 %v838
      %v1325 = vpop.f32.mrf.mxu0
      %v1326 = vadd.f32 %v586, %v1325
      %v1327 = vpop.f32.mrf.mxu0
      %v1328 = vadd.f32 %v586, %v1327
      %1329 = vdwg.mxu0
      %1330 = vmatpush.bf16.msra.mxu0 0
      %1331 = vmatpush.bf16.msra.mxu0 0
      %1332 = vmatpush.bf16.msra.mxu0 0
      %1333 = vmatpush.bf16.msra.mxu0 0
      %1334 = vmatpush.bf16.msra.mxu0 0
      %1335 = vmatpush.bf16.msra.mxu0 %v769
      %1336 = vmatpush.bf16.msra.mxu0 %v755
      %1337 = vmatpush.bf16.msra.mxu0 %v741
      %1338 = vmatmul.bf16.gmra.mxu0 %v817
      %v1339 = vpop.f32.mrf.mxu0
      %v1340 = vadd.f32 %v587, %v1339
      %v1341 = vpop.f32.mrf.mxu0
      %v1342 = vadd.f32 %v587, %v1341
      %1343 = vmatmul.bf16.gmra.mxu0 %v820
      %v1344 = vpop.f32.mrf.mxu0
      %v1345 = vadd.f32 %v587, %v1344
      %v1346 = vpop.f32.mrf.mxu0
      %v1347 = vadd.f32 %v587, %v1346
      %1348 = vmatmul.bf16.gmra.mxu0 %v823
      %v1349 = vpop.f32.mrf.mxu0
      %v1350 = vadd.f32 %v587, %v1349
      %v1351 = vpop.f32.mrf.mxu0
      %v1352 = vadd.f32 %v587, %v1351
      %1353 = vmatmul.bf16.gmra.mxu0 %v826
      %v1354 = vpop.f32.mrf.mxu0
      %v1355 = vadd.f32 %v587, %v1354
      %v1356 = vpop.f32.mrf.mxu0
      %v1357 = vadd.f32 %v587, %v1356
      %1358 = vmatmul.bf16.gmra.mxu0 %v829
      %v1359 = vpop.f32.mrf.mxu0
      %v1360 = vadd.f32 %v587, %v1359
      %v1361 = vpop.f32.mrf.mxu0
      %v1362 = vadd.f32 %v587, %v1361
      %1363 = vmatmul.bf16.gmra.mxu0 %v832
      %v1364 = vpop.f32.mrf.mxu0
      %v1365 = vadd.f32 %v587, %v1364
      %v1366 = vpop.f32.mrf.mxu0
      %v1367 = vadd.f32 %v587, %v1366
      %1368 = vmatmul.bf16.gmra.mxu0 %v835
      %v1369 = vpop.f32.mrf.mxu0
      %v1370 = vadd.f32 %v587, %v1369
      %v1371 = vpop.f32.mrf.mxu0
      %v1372 = vadd.f32 %v587, %v1371
      %1373 = vmatmul.bf16.gmra.mxu0 %v838
      %v1374 = vpop.f32.mrf.mxu0
      %v1375 = vadd.f32 %v587, %v1374
      %v1376 = vpop.f32.mrf.mxu0
      %v1377 = vadd.f32 %v587, %v1376
      %1378 = vdwg.mxu0
      %1379 = vmatpush.bf16.msra.mxu0 0
      %1380 = vmatpush.bf16.msra.mxu0 0
      %1381 = vmatpush.bf16.msra.mxu0 0
      %1382 = vmatpush.bf16.msra.mxu0 0
      %1383 = vmatpush.bf16.msra.mxu0 0
      %1384 = vmatpush.bf16.msra.mxu0 %v770
      %1385 = vmatpush.bf16.msra.mxu0 %v756
      %1386 = vmatpush.bf16.msra.mxu0 %v742
      %1387 = vmatmul.bf16.gmra.mxu0 %v817
      %v1388 = vpop.f32.mrf.mxu0
      %v1389 = vadd.f32 %v588, %v1388
      %v1390 = vpop.f32.mrf.mxu0
      %v1391 = vadd.f32 %v588, %v1390
      %1392 = vmatmul.bf16.gmra.mxu0 %v820
      %v1393 = vpop.f32.mrf.mxu0
      %v1394 = vadd.f32 %v588, %v1393
      %v1395 = vpop.f32.mrf.mxu0
      %v1396 = vadd.f32 %v588, %v1395
      %1397 = vmatmul.bf16.gmra.mxu0 %v823
      %v1398 = vpop.f32.mrf.mxu0
      %v1399 = vadd.f32 %v588, %v1398
      %v1400 = vpop.f32.mrf.mxu0
      %v1401 = vadd.f32 %v588, %v1400
      %1402 = vmatmul.bf16.gmra.mxu0 %v826
      %v1403 = vpop.f32.mrf.mxu0
      %v1404 = vadd.f32 %v588, %v1403
      %v1405 = vpop.f32.mrf.mxu0
      %v1406 = vadd.f32 %v588, %v1405
      %1407 = vmatmul.bf16.gmra.mxu0 %v829
      %v1408 = vpop.f32.mrf.mxu0
      %v1409 = vadd.f32 %v588, %v1408
      %v1410 = vpop.f32.mrf.mxu0
      %v1411 = vadd.f32 %v588, %v1410
      %1412 = vmatmul.bf16.gmra.mxu0 %v832
      %v1413 = vpop.f32.mrf.mxu0
      %v1414 = vadd.f32 %v588, %v1413
      %v1415 = vpop.f32.mrf.mxu0
      %v1416 = vadd.f32 %v588, %v1415
      %1417 = vmatmul.bf16.gmra.mxu0 %v835
      %v1418 = vpop.f32.mrf.mxu0
      %v1419 = vadd.f32 %v588, %v1418
      %v1420 = vpop.f32.mrf.mxu0
      %v1421 = vadd.f32 %v588, %v1420
      %1422 = vmatmul.bf16.gmra.mxu0 %v838
      %v1423 = vpop.f32.mrf.mxu0
      %v1424 = vadd.f32 %v588, %v1423
      %v1425 = vpop.f32.mrf.mxu0
      %v1426 = vadd.f32 %v588, %v1425
      %1427 = vdwg.mxu0
      %1428 = vmatpush.bf16.msra.mxu0 0
      %1429 = vmatpush.bf16.msra.mxu0 0
      %1430 = vmatpush.bf16.msra.mxu0 0
      %1431 = vmatpush.bf16.msra.mxu0 0
      %1432 = vmatpush.bf16.msra.mxu0 0
      %1433 = vmatpush.bf16.msra.mxu0 %v771
      %1434 = vmatpush.bf16.msra.mxu0 %v757
      %1435 = vmatpush.bf16.msra.mxu0 %v743
      %1436 = vmatmul.bf16.gmra.mxu0 %v817
      %v1437 = vpop.f32.mrf.mxu0
      %v1438 = vadd.f32 %v589, %v1437
      %v1439 = vpop.f32.mrf.mxu0
      %v1440 = vadd.f32 %v589, %v1439
      %1441 = vmatmul.bf16.gmra.mxu0 %v820
      %v1442 = vpop.f32.mrf.mxu0
      %v1443 = vadd.f32 %v589, %v1442
      %v1444 = vpop.f32.mrf.mxu0
      %v1445 = vadd.f32 %v589, %v1444
      %1446 = vmatmul.bf16.gmra.mxu0 %v823
      %v1447 = vpop.f32.mrf.mxu0
      %v1448 = vadd.f32 %v589, %v1447
      %v1449 = vpop.f32.mrf.mxu0
      %v1450 = vadd.f32 %v589, %v1449
      %1451 = vmatmul.bf16.gmra.mxu0 %v826
      %v1452 = vpop.f32.mrf.mxu0
      %v1453 = vadd.f32 %v589, %v1452
      %v1454 = vpop.f32.mrf.mxu0
      %v1455 = vadd.f32 %v589, %v1454
      %1456 = vmatmul.bf16.gmra.mxu0 %v829
      %v1457 = vpop.f32.mrf.mxu0
      %v1458 = vadd.f32 %v589, %v1457
      %v1459 = vpop.f32.mrf.mxu0
      %v1460 = vadd.f32 %v589, %v1459
      %1461 = vmatmul.bf16.gmra.mxu0 %v832
      %v1462 = vpop.f32.mrf.mxu0
      %v1463 = vadd.f32 %v589, %v1462
      %v1464 = vpop.f32.mrf.mxu0
      %v1465 = vadd.f32 %v589, %v1464
      %1466 = vmatmul.bf16.gmra.mxu0 %v835
      %v1467 = vpop.f32.mrf.mxu0
      %v1468 = vadd.f32 %v589, %v1467
      %v1469 = vpop.f32.mrf.mxu0
      %v1470 = vadd.f32 %v589, %v1469
      %1471 = vmatmul.bf16.gmra.mxu0 %v838
      %v1472 = vpop.f32.mrf.mxu0
      %v1473 = vadd.f32 %v589, %v1472
      %v1474 = vpop.f32.mrf.mxu0
      %v1475 = vadd.f32 %v589, %v1474
      %1476 = vdwg.mxu0
      %1477 = vmatpush.bf16.msra.mxu0 0
      %1478 = vmatpush.bf16.msra.mxu0 0
      %1479 = vmatpush.bf16.msra.mxu0 0
      %1480 = vmatpush.bf16.msra.mxu0 0
      %1481 = vmatpush.bf16.msra.mxu0 0
      %1482 = vmatpush.bf16.msra.mxu0 %v772
      %1483 = vmatpush.bf16.msra.mxu0 %v758
      %1484 = vmatpush.bf16.msra.mxu0 %v744
      %1485 = vmatmul.bf16.gmra.mxu0 %v817
      %v1486 = vpop.f32.mrf.mxu0
      %v1487 = vadd.f32 %v590, %v1486
      %v1488 = vpop.f32.mrf.mxu0
      %v1489 = vadd.f32 %v590, %v1488
      %1490 = vmatmul.bf16.gmra.mxu0 %v820
      %v1491 = vpop.f32.mrf.mxu0
      %v1492 = vadd.f32 %v590, %v1491
      %v1493 = vpop.f32.mrf.mxu0
      %v1494 = vadd.f32 %v590, %v1493
      %1495 = vmatmul.bf16.gmra.mxu0 %v823
      %v1496 = vpop.f32.mrf.mxu0
      %v1497 = vadd.f32 %v590, %v1496
      %v1498 = vpop.f32.mrf.mxu0
      %v1499 = vadd.f32 %v590, %v1498
      %1500 = vmatmul.bf16.gmra.mxu0 %v826
      %v1501 = vpop.f32.mrf.mxu0
      %v1502 = vadd.f32 %v590, %v1501
      %v1503 = vpop.f32.mrf.mxu0
      %v1504 = vadd.f32 %v590, %v1503
      %1505 = vmatmul.bf16.gmra.mxu0 %v829
      %v1506 = vpop.f32.mrf.mxu0
      %v1507 = vadd.f32 %v590, %v1506
      %v1508 = vpop.f32.mrf.mxu0
      %v1509 = vadd.f32 %v590, %v1508
      %1510 = vmatmul.bf16.gmra.mxu0 %v832
      %v1511 = vpop.f32.mrf.mxu0
      %v1512 = vadd.f32 %v590, %v1511
      %v1513 = vpop.f32.mrf.mxu0
      %v1514 = vadd.f32 %v590, %v1513
      %1515 = vmatmul.bf16.gmra.mxu0 %v835
      %v1516 = vpop.f32.mrf.mxu0
      %v1517 = vadd.f32 %v590, %v1516
      %v1518 = vpop.f32.mrf.mxu0
      %v1519 = vadd.f32 %v590, %v1518
      %1520 = vmatmul.bf16.gmra.mxu0 %v838
      %v1521 = vpop.f32.mrf.mxu0
      %v1522 = vadd.f32 %v590, %v1521
      %v1523 = vpop.f32.mrf.mxu0
      %v1524 = vadd.f32 %v590, %v1523
      %1525 = vdwg.mxu0
      %v1526 = vmul.f32 %v850, 0.5
      %v1527 = vmul.f32 %v899, 0.5
      %v1528 = vmul.f32 %v948, 0.5
      %v1529 = vmul.f32 %v997, 0.5
      %v1530 = vmul.f32 %v1046, 0.5
      %v1531 = vmul.f32 %v1095, 0.5
      %v1532 = vmul.f32 %v1144, 0.5
      %v1533 = vmul.f32 %v1193, 0.5
      %v1534 = vmul.f32 %v1242, 0.5
      %v1535 = vmul.f32 %v1291, 0.5
      %v1536 = vmul.f32 %v1340, 0.5
      %v1537 = vmul.f32 %v1389, 0.5
      %v1538 = vmul.f32 %v1438, 0.5
      %v1539 = vmul.f32 %v1487, 0.5
      %v1540 = vmul.f32 %v852, 0.5
      %v1541 = vmul.f32 %v901, 0.5
      %v1542 = vmul.f32 %v950, 0.5
      %v1543 = vmul.f32 %v999, 0.5
      %v1544 = vmul.f32 %v1048, 0.5
      %v1545 = vmul.f32 %v1097, 0.5
      %v1546 = vmul.f32 %v1146, 0.5
      %v1547 = vmul.f32 %v1195, 0.5
      %v1548 = vmul.f32 %v1244, 0.5
      %v1549 = vmul.f32 %v1293, 0.5
      %v1550 = vmul.f32 %v1342, 0.5
      %v1551 = vmul.f32 %v1391, 0.5
      %v1552 = vmul.f32 %v1440, 0.5
      %v1553 = vmul.f32 %v1489, 0.5
      %v1554 = vmul.f32 %v855, 0.5
      %v1555 = vmul.f32 %v904, 0.5
      %v1556 = vmul.f32 %v953, 0.5
      %v1557 = vmul.f32 %v1002, 0.5
      %v1558 = vmul.f32 %v1051, 0.5
      %v1559 = vmul.f32 %v1100, 0.5
      %v1560 = vmul.f32 %v1149, 0.5
      %v1561 = vmul.f32 %v1198, 0.5
      %v1562 = vmul.f32 %v1247, 0.5
      %v1563 = vmul.f32 %v1296, 0.5
      %v1564 = vmul.f32 %v1345, 0.5
      %v1565 = vmul.f32 %v1394, 0.5
      %v1566 = vmul.f32 %v1443, 0.5
      %v1567 = vmul.f32 %v1492, 0.5
      %v1568 = vmul.f32 %v857, 0.5
      %v1569 = vmul.f32 %v906, 0.5
      %v1570 = vmul.f32 %v955, 0.5
      %v1571 = vmul.f32 %v1004, 0.5
      %v1572 = vmul.f32 %v1053, 0.5
      %v1573 = vmul.f32 %v1102, 0.5
      %v1574 = vmul.f32 %v1151, 0.5
      %v1575 = vmul.f32 %v1200, 0.5
      %v1576 = vmul.f32 %v1249, 0.5
      %v1577 = vmul.f32 %v1298, 0.5
      %v1578 = vmul.f32 %v1347, 0.5
      %v1579 = vmul.f32 %v1396, 0.5
      %v1580 = vmul.f32 %v1445, 0.5
      %v1581 = vmul.f32 %v1494, 0.5
      %v1582 = vmul.f32 %v860, 0.5
      %v1583 = vmul.f32 %v909, 0.5
      %v1584 = vmul.f32 %v958, 0.5
      %v1585 = vmul.f32 %v1007, 0.5
      %v1586 = vmul.f32 %v1056, 0.5
      %v1587 = vmul.f32 %v1105, 0.5
      %v1588 = vmul.f32 %v1154, 0.5
      %v1589 = vmul.f32 %v1203, 0.5
      %v1590 = vmul.f32 %v1252, 0.5
      %v1591 = vmul.f32 %v1301, 0.5
      %v1592 = vmul.f32 %v1350, 0.5
      %v1593 = vmul.f32 %v1399, 0.5
      %v1594 = vmul.f32 %v1448, 0.5
      %v1595 = vmul.f32 %v1497, 0.5
      %v1596 = vmul.f32 %v862, 0.5
      %v1597 = vmul.f32 %v911, 0.5
      %v1598 = vmul.f32 %v960, 0.5
      %v1599 = vmul.f32 %v1009, 0.5
      %v1600 = vmul.f32 %v1058, 0.5
      %v1601 = vmul.f32 %v1107, 0.5
      %v1602 = vmul.f32 %v1156, 0.5
      %v1603 = vmul.f32 %v1205, 0.5
      %v1604 = vmul.f32 %v1254, 0.5
      %v1605 = vmul.f32 %v1303, 0.5
      %v1606 = vmul.f32 %v1352, 0.5
      %v1607 = vmul.f32 %v1401, 0.5
      %v1608 = vmul.f32 %v1450, 0.5
      %v1609 = vmul.f32 %v1499, 0.5
      %v1610 = vmul.f32 %v865, 0.5
      %v1611 = vmul.f32 %v914, 0.5
      %v1612 = vmul.f32 %v963, 0.5
      %v1613 = vmul.f32 %v1012, 0.5
      %v1614 = vmul.f32 %v1061, 0.5
      %v1615 = vmul.f32 %v1110, 0.5
      %v1616 = vmul.f32 %v1159, 0.5
      %v1617 = vmul.f32 %v1208, 0.5
      %v1618 = vmul.f32 %v1257, 0.5
      %v1619 = vmul.f32 %v1306, 0.5
      %v1620 = vmul.f32 %v1355, 0.5
      %v1621 = vmul.f32 %v1404, 0.5
      %v1622 = vmul.f32 %v1453, 0.5
      %v1623 = vmul.f32 %v1502, 0.5
      %v1624 = vmul.f32 %v867, 0.5
      %v1625 = vmul.f32 %v916, 0.5
      %v1626 = vmul.f32 %v965, 0.5
      %v1627 = vmul.f32 %v1014, 0.5
      %v1628 = vmul.f32 %v1063, 0.5
      %v1629 = vmul.f32 %v1112, 0.5
      %v1630 = vmul.f32 %v1161, 0.5
      %v1631 = vmul.f32 %v1210, 0.5
      %v1632 = vmul.f32 %v1259, 0.5
      %v1633 = vmul.f32 %v1308, 0.5
      %v1634 = vmul.f32 %v1357, 0.5
      %v1635 = vmul.f32 %v1406, 0.5
      %v1636 = vmul.f32 %v1455, 0.5
      %v1637 = vmul.f32 %v1504, 0.5
      %v1638 = vmul.f32 %v870, 0.5
      %v1639 = vmul.f32 %v919, 0.5
      %v1640 = vmul.f32 %v968, 0.5
      %v1641 = vmul.f32 %v1017, 0.5
      %v1642 = vmul.f32 %v1066, 0.5
      %v1643 = vmul.f32 %v1115, 0.5
      %v1644 = vmul.f32 %v1164, 0.5
      %v1645 = vmul.f32 %v1213, 0.5
      %v1646 = vmul.f32 %v1262, 0.5
      %v1647 = vmul.f32 %v1311, 0.5
      %v1648 = vmul.f32 %v1360, 0.5
      %v1649 = vmul.f32 %v1409, 0.5
      %v1650 = vmul.f32 %v1458, 0.5
      %v1651 = vmul.f32 %v1507, 0.5
      %v1652 = vmul.f32 %v872, 0.5
      %v1653 = vmul.f32 %v921, 0.5
      %v1654 = vmul.f32 %v970, 0.5
      %v1655 = vmul.f32 %v1019, 0.5
      %v1656 = vmul.f32 %v1068, 0.5
      %v1657 = vmul.f32 %v1117, 0.5
      %v1658 = vmul.f32 %v1166, 0.5
      %v1659 = vmul.f32 %v1215, 0.5
      %v1660 = vmul.f32 %v1264, 0.5
      %v1661 = vmul.f32 %v1313, 0.5
      %v1662 = vmul.f32 %v1362, 0.5
      %v1663 = vmul.f32 %v1411, 0.5
      %v1664 = vmul.f32 %v1460, 0.5
      %v1665 = vmul.f32 %v1509, 0.5
      %v1666 = vmul.f32 %v875, 0.5
      %v1667 = vmul.f32 %v924, 0.5
      %v1668 = vmul.f32 %v973, 0.5
      %v1669 = vmul.f32 %v1022, 0.5
      %v1670 = vmul.f32 %v1071, 0.5
      %v1671 = vmul.f32 %v1120, 0.5
      %v1672 = vmul.f32 %v1169, 0.5
      %v1673 = vmul.f32 %v1218, 0.5
      %v1674 = vmul.f32 %v1267, 0.5
      %v1675 = vmul.f32 %v1316, 0.5
      %v1676 = vmul.f32 %v1365, 0.5
      %v1677 = vmul.f32 %v1414, 0.5
      %v1678 = vmul.f32 %v1463, 0.5
      %v1679 = vmul.f32 %v1512, 0.5
      %v1680 = vmul.f32 %v877, 0.5
      %v1681 = vmul.f32 %v926, 0.5
      %v1682 = vmul.f32 %v975, 0.5
      %v1683 = vmul.f32 %v1024, 0.5
      %v1684 = vmul.f32 %v1073, 0.5
      %v1685 = vmul.f32 %v1122, 0.5
      %v1686 = vmul.f32 %v1171, 0.5
      %v1687 = vmul.f32 %v1220, 0.5
      %v1688 = vmul.f32 %v1269, 0.5
      %v1689 = vmul.f32 %v1318, 0.5
      %v1690 = vmul.f32 %v1367, 0.5
      %v1691 = vmul.f32 %v1416, 0.5
      %v1692 = vmul.f32 %v1465, 0.5
      %v1693 = vmul.f32 %v1514, 0.5
      %v1694 = vmul.f32 %v880, 0.5
      %v1695 = vmul.f32 %v929, 0.5
      %v1696 = vmul.f32 %v978, 0.5
      %v1697 = vmul.f32 %v1027, 0.5
      %v1698 = vmul.f32 %v1076, 0.5
      %v1699 = vmul.f32 %v1125, 0.5
      %v1700 = vmul.f32 %v1174, 0.5
      %v1701 = vmul.f32 %v1223, 0.5
      %v1702 = vmul.f32 %v1272, 0.5
      %v1703 = vmul.f32 %v1321, 0.5
      %v1704 = vmul.f32 %v1370, 0.5
      %v1705 = vmul.f32 %v1419, 0.5
      %v1706 = vmul.f32 %v1468, 0.5
      %v1707 = vmul.f32 %v1517, 0.5
      %v1708 = vmul.f32 %v882, 0.5
      %v1709 = vmul.f32 %v931, 0.5
      %v1710 = vmul.f32 %v980, 0.5
      %v1711 = vmul.f32 %v1029, 0.5
      %v1712 = vmul.f32 %v1078, 0.5
      %v1713 = vmul.f32 %v1127, 0.5
      %v1714 = vmul.f32 %v1176, 0.5
      %v1715 = vmul.f32 %v1225, 0.5
      %v1716 = vmul.f32 %v1274, 0.5
      %v1717 = vmul.f32 %v1323, 0.5
      %v1718 = vmul.f32 %v1372, 0.5
      %v1719 = vmul.f32 %v1421, 0.5
      %v1720 = vmul.f32 %v1470, 0.5
      %v1721 = vmul.f32 %v1519, 0.5
      %v1722 = vmul.f32 %v885, 0.5
      %v1723 = vmul.f32 %v934, 0.5
      %v1724 = vmul.f32 %v983, 0.5
      %v1725 = vmul.f32 %v1032, 0.5
      %v1726 = vmul.f32 %v1081, 0.5
      %v1727 = vmul.f32 %v1130, 0.5
      %v1728 = vmul.f32 %v1179, 0.5
      %v1729 = vmul.f32 %v1228, 0.5
      %v1730 = vmul.f32 %v1277, 0.5
      %v1731 = vmul.f32 %v1326, 0.5
      %v1732 = vmul.f32 %v1375, 0.5
      %v1733 = vmul.f32 %v1424, 0.5
      %v1734 = vmul.f32 %v1473, 0.5
      %v1735 = vmul.f32 %v1522, 0.5
      %v1736 = vmul.f32 %v887, 0.5
      %v1737 = vmul.f32 %v936, 0.5
      %v1738 = vmul.f32 %v985, 0.5
      %v1739 = vmul.f32 %v1034, 0.5
      %v1740 = vmul.f32 %v1083, 0.5
      %v1741 = vmul.f32 %v1132, 0.5
      %v1742 = vmul.f32 %v1181, 0.5
      %v1743 = vmul.f32 %v1230, 0.5
      %v1744 = vmul.f32 %v1279, 0.5
      %v1745 = vmul.f32 %v1328, 0.5
      %v1746 = vmul.f32 %v1377, 0.5
      %v1747 = vmul.f32 %v1426, 0.5
      %v1748 = vmul.f32 %v1475, 0.5
      %v1749 = vmul.f32 %v1524, 0.5
      %v1750 = vtanh.pop %v1526
      %v1751 = vtanh.pop %v1527
      %v1752 = vtanh.pop %v1528
      %v1753 = vtanh.pop %v1529
      %v1754 = vtanh.pop %v1530
      %v1755 = vtanh.pop %v1531
      %v1756 = vtanh.pop %v1532
      %v1757 = vtanh.pop %v1533
      %v1758 = vtanh.pop %v1534
      %v1759 = vtanh.pop %v1535
      %v1760 = vtanh.pop %v1536
      %v1761 = vtanh.pop %v1537
      %v1762 = vtanh.pop %v1538
      %v1763 = vtanh.pop %v1539
      %v1764 = vtanh.pop %v1540
      %v1765 = vtanh.pop %v1541
      %v1766 = vtanh.pop %v1542
      %v1767 = vtanh.pop %v1543
      %v1768 = vtanh.pop %v1544
      %v1769 = vtanh.pop %v1545
      %v1770 = vtanh.pop %v1546
      %v1771 = vtanh.pop %v1547
      %v1772 = vtanh.pop %v1548
      %v1773 = vtanh.pop %v1549
      %v1774 = vtanh.pop %v1550
      %v1775 = vtanh.pop %v1551
      %v1776 = vtanh.pop %v1552
      %v1777 = vtanh.pop %v1553
      %v1778 = vtanh.pop %v1554
      %v1779 = vtanh.pop %v1555
      %v1780 = vtanh.pop %v1556
      %v1781 = vtanh.pop %v1557
      %v1782 = vtanh.pop %v1558
      %v1783 = vtanh.pop %v1559
      %v1784 = vtanh.pop %v1560
      %v1785 = vtanh.pop %v1561
      %v1786 = vtanh.pop %v1562
      %v1787 = vtanh.pop %v1563
      %v1788 = vtanh.pop %v1564
      %v1789 = vtanh.pop %v1565
      %v1790 = vtanh.pop %v1566
      %v1791 = vtanh.pop %v1567
      %v1792 = vtanh.pop %v1568
      %v1793 = vtanh.pop %v1569
      %v1794 = vtanh.pop %v1570
      %v1795 = vtanh.pop %v1571
      %v1796 = vtanh.pop %v1572
      %v1797 = vtanh.pop %v1573
      %v1798 = vtanh.pop %v1574
      %v1799 = vtanh.pop %v1575
      %v1800 = vtanh.pop %v1576
      %v1801 = vtanh.pop %v1577
      %v1802 = vtanh.pop %v1578
      %v1803 = vtanh.pop %v1579
      %v1804 = vtanh.pop %v1580
      %v1805 = vtanh.pop %v1581
      %v1806 = vtanh.pop %v1582
      %v1807 = vtanh.pop %v1583
      %v1808 = vtanh.pop %v1584
      %v1809 = vtanh.pop %v1585
      %v1810 = vtanh.pop %v1586
      %v1811 = vtanh.pop %v1587
      %v1812 = vtanh.pop %v1588
      %v1813 = vtanh.pop %v1589
      %v1814 = vtanh.pop %v1590
      %v1815 = vtanh.pop %v1591
      %v1816 = vtanh.pop %v1592
      %v1817 = vtanh.pop %v1593
      %v1818 = vtanh.pop %v1594
      %v1819 = vtanh.pop %v1595
      %v1820 = vtanh.pop %v1596
      %v1821 = vtanh.pop %v1597
      %v1822 = vtanh.pop %v1598
      %v1823 = vtanh.pop %v1599
      %v1824 = vtanh.pop %v1600
      %v1825 = vtanh.pop %v1601
      %v1826 = vtanh.pop %v1602
      %v1827 = vtanh.pop %v1603
      %v1828 = vtanh.pop %v1604
      %v1829 = vtanh.pop %v1605
      %v1830 = vtanh.pop %v1606
      %v1831 = vtanh.pop %v1607
      %v1832 = vtanh.pop %v1608
      %v1833 = vtanh.pop %v1609
      %v1834 = vtanh.pop %v1610
      %v1835 = vtanh.pop %v1611
      %v1836 = vtanh.pop %v1612
      %v1837 = vtanh.pop %v1613
      %v1838 = vtanh.pop %v1614
      %v1839 = vtanh.pop %v1615
      %v1840 = vtanh.pop %v1616
      %v1841 = vtanh.pop %v1617
      %v1842 = vtanh.pop %v1618
      %v1843 = vtanh.pop %v1619
      %v1844 = vtanh.pop %v1620
      %v1845 = vtanh.pop %v1621
      %v1846 = vtanh.pop %v1622
      %v1847 = vtanh.pop %v1623
      %v1848 = vtanh.pop %v1624
      %v1849 = vtanh.pop %v1625
      %v1850 = vtanh.pop %v1626
      %v1851 = vtanh.pop %v1627
      %v1852 = vtanh.pop %v1628
      %v1853 = vtanh.pop %v1629
      %v1854 = vtanh.pop %v1630
      %v1855 = vtanh.pop %v1631
      %v1856 = vtanh.pop %v1632
      %v1857 = vtanh.pop %v1633
      %v1858 = vtanh.pop %v1634
      %v1859 = vtanh.pop %v1635
      %v1860 = vtanh.pop %v1636
      %v1861 = vtanh.pop %v1637
      %v1862 = vtanh.pop %v1638
      %v1863 = vtanh.pop %v1639
      %v1864 = vtanh.pop %v1640
      %v1865 = vtanh.pop %v1641
      %v1866 = vtanh.pop %v1642
      %v1867 = vtanh.pop %v1643
      %v1868 = vtanh.pop %v1644
      %v1869 = vtanh.pop %v1645
      %v1870 = vtanh.pop %v1646
      %v1871 = vtanh.pop %v1647
      %v1872 = vtanh.pop %v1648
      %v1873 = vtanh.pop %v1649
      %v1874 = vtanh.pop %v1650
      %v1875 = vtanh.pop %v1651
      %v1876 = vtanh.pop %v1652
      %v1877 = vtanh.pop %v1653
      %v1878 = vtanh.pop %v1654
      %v1879 = vtanh.pop %v1655
      %v1880 = vtanh.pop %v1656
      %v1881 = vtanh.pop %v1657
      %v1882 = vtanh.pop %v1658
      %v1883 = vtanh.pop %v1659
      %v1884 = vtanh.pop %v1660
      %v1885 = vtanh.pop %v1661
      %v1886 = vtanh.pop %v1662
      %v1887 = vtanh.pop %v1663
      %v1888 = vtanh.pop %v1664
      %v1889 = vtanh.pop %v1665
      %v1890 = vtanh.pop %v1666
      %v1891 = vtanh.pop %v1667
      %v1892 = vtanh.pop %v1668
      %v1893 = vtanh.pop %v1669
      %v1894 = vtanh.pop %v1670
      %v1895 = vtanh.pop %v1671
      %v1896 = vtanh.pop %v1672
      %v1897 = vtanh.pop %v1673
      %v1898 = vtanh.pop %v1674
      %v1899 = vtanh.pop %v1675
      %v1900 = vtanh.pop %v1676
      %v1901 = vtanh.pop %v1677
      %v1902 = vtanh.pop %v1678
      %v1903 = vtanh.pop %v1679
      %v1904 = vtanh.pop %v1680
      %v1905 = vtanh.pop %v1681
      %v1906 = vtanh.pop %v1682
      %v1907 = vtanh.pop %v1683
      %v1908 = vtanh.pop %v1684
      %v1909 = vtanh.pop %v1685
      %v1910 = vtanh.pop %v1686
      %v1911 = vtanh.pop %v1687
      %v1912 = vtanh.pop %v1688
      %v1913 = vtanh.pop %v1689
      %v1914 = vtanh.pop %v1690
      %v1915 = vtanh.pop %v1691
      %v1916 = vtanh.pop %v1692
      %v1917 = vtanh.pop %v1693
      %v1918 = vtanh.pop %v1694
      %v1919 = vtanh.pop %v1695
      %v1920 = vtanh.pop %v1696
      %v1921 = vtanh.pop %v1697
      %v1922 = vtanh.pop %v1698
      %v1923 = vtanh.pop %v1699
      %v1924 = vtanh.pop %v1700
      %v1925 = vtanh.pop %v1701
      %v1926 = vtanh.pop %v1702
      %v1927 = vtanh.pop %v1703
      %v1928 = vtanh.pop %v1704
      %v1929 = vtanh.pop %v1705
      %v1930 = vtanh.pop %v1706
      %v1931 = vtanh.pop %v1707
      %v1932 = vtanh.pop %v1708
      %v1933 = vtanh.pop %v1709
      %v1934 = vtanh.pop %v1710
      %v1935 = vtanh.pop %v1711
      %v1936 = vtanh.pop %v1712
      %v1937 = vtanh.pop %v1713
      %v1938 = vtanh.pop %v1714
      %v1939 = vtanh.pop %v1715
      %v1940 = vtanh.pop %v1716
      %v1941 = vtanh.pop %v1717
      %v1942 = vtanh.pop %v1718
      %v1943 = vtanh.pop %v1719
      %v1944 = vtanh.pop %v1720
      %v1945 = vtanh.pop %v1721
      %v1946 = vtanh.pop %v1722
      %v1947 = vtanh.pop %v1723
      %v1948 = vtanh.pop %v1724
      %v1949 = vtanh.pop %v1725
      %v1950 = vtanh.pop %v1726
      %v1951 = vtanh.pop %v1727
      %v1952 = vtanh.pop %v1728
      %v1953 = vtanh.pop %v1729
      %v1954 = vtanh.pop %v1730
      %v1955 = vtanh.pop %v1731
      %v1956 = vtanh.pop %v1732
      %v1957 = vtanh.pop %v1733
      %v1958 = vtanh.pop %v1734
      %v1959 = vtanh.pop %v1735
      %v1960 = vtanh.pop %v1736
      %v1961 = vtanh.pop %v1737
      %v1962 = vtanh.pop %v1738
      %v1963 = vtanh.pop %v1739
      %v1964 = vtanh.pop %v1740
      %v1965 = vtanh.pop %v1741
      %v1966 = vtanh.pop %v1742
      %v1967 = vtanh.pop %v1743
      %v1968 = vtanh.pop %v1744
      %v1969 = vtanh.pop %v1745
      %v1970 = vtanh.pop %v1746
      %v1971 = vtanh.pop %v1747
      %v1972 = vtanh.pop %v1748
      %v1973 = vtanh.pop %v1749
      %v1974 = vadd.f32 %v1750, 1.0
      %v1975 = vadd.f32 %v1751, 1.0
      %v1976 = vadd.f32 %v1752, 1.0
      %v1977 = vadd.f32 %v1753, 1.0
      %v1978 = vadd.f32 %v1754, 1.0
      %v1979 = vadd.f32 %v1755, 1.0
      %v1980 = vadd.f32 %v1756, 1.0
      %v1981 = vadd.f32 %v1757, 1.0
      %v1982 = vadd.f32 %v1758, 1.0
      %v1983 = vadd.f32 %v1759, 1.0
      %v1984 = vadd.f32 %v1760, 1.0
      %v1985 = vadd.f32 %v1761, 1.0
      %v1986 = vadd.f32 %v1762, 1.0
      %v1987 = vadd.f32 %v1763, 1.0
      %v1988 = vadd.f32 %v1764, 1.0
      %v1989 = vadd.f32 %v1765, 1.0
      %v1990 = vadd.f32 %v1766, 1.0
      %v1991 = vadd.f32 %v1767, 1.0
      %v1992 = vadd.f32 %v1768, 1.0
      %v1993 = vadd.f32 %v1769, 1.0
      %v1994 = vadd.f32 %v1770, 1.0
      %v1995 = vadd.f32 %v1771, 1.0
      %v1996 = vadd.f32 %v1772, 1.0
      %v1997 = vadd.f32 %v1773, 1.0
      %v1998 = vadd.f32 %v1774, 1.0
      %v1999 = vadd.f32 %v1775, 1.0
      %v2000 = vadd.f32 %v1776, 1.0
      %v2001 = vadd.f32 %v1777, 1.0
      %v2002 = vadd.f32 %v1778, 1.0
      %v2003 = vadd.f32 %v1779, 1.0
      %v2004 = vadd.f32 %v1780, 1.0
      %v2005 = vadd.f32 %v1781, 1.0
      %v2006 = vadd.f32 %v1782, 1.0
      %v2007 = vadd.f32 %v1783, 1.0
      %v2008 = vadd.f32 %v1784, 1.0
      %v2009 = vadd.f32 %v1785, 1.0
      %v2010 = vadd.f32 %v1786, 1.0
      %v2011 = vadd.f32 %v1787, 1.0
      %v2012 = vadd.f32 %v1788, 1.0
      %v2013 = vadd.f32 %v1789, 1.0
      %v2014 = vadd.f32 %v1790, 1.0
      %v2015 = vadd.f32 %v1791, 1.0
      %v2016 = vadd.f32 %v1792, 1.0
      %v2017 = vadd.f32 %v1793, 1.0
      %v2018 = vadd.f32 %v1794, 1.0
      %v2019 = vadd.f32 %v1795, 1.0
      %v2020 = vadd.f32 %v1796, 1.0
      %v2021 = vadd.f32 %v1797, 1.0
      %v2022 = vadd.f32 %v1798, 1.0
      %v2023 = vadd.f32 %v1799, 1.0
      %v2024 = vadd.f32 %v1800, 1.0
      %v2025 = vadd.f32 %v1801, 1.0
      %v2026 = vadd.f32 %v1802, 1.0
      %v2027 = vadd.f32 %v1803, 1.0
      %v2028 = vadd.f32 %v1804, 1.0
      %v2029 = vadd.f32 %v1805, 1.0
      %v2030 = vadd.f32 %v1806, 1.0
      %v2031 = vadd.f32 %v1807, 1.0
      %v2032 = vadd.f32 %v1808, 1.0
      %v2033 = vadd.f32 %v1809, 1.0
      %v2034 = vadd.f32 %v1810, 1.0
      %v2035 = vadd.f32 %v1811, 1.0
      %v2036 = vadd.f32 %v1812, 1.0
      %v2037 = vadd.f32 %v1813, 1.0
      %v2038 = vadd.f32 %v1814, 1.0
      %v2039 = vadd.f32 %v1815, 1.0
      %v2040 = vadd.f32 %v1816, 1.0
      %v2041 = vadd.f32 %v1817, 1.0
      %v2042 = vadd.f32 %v1818, 1.0
      %v2043 = vadd.f32 %v1819, 1.0
      %v2044 = vadd.f32 %v1820, 1.0
      %v2045 = vadd.f32 %v1821, 1.0
      %v2046 = vadd.f32 %v1822, 1.0
      %v2047 = vadd.f32 %v1823, 1.0
      %v2048 = vadd.f32 %v1824, 1.0
      %v2049 = vadd.f32 %v1825, 1.0
      %v2050 = vadd.f32 %v1826, 1.0
      %v2051 = vadd.f32 %v1827, 1.0
      %v2052 = vadd.f32 %v1828, 1.0
      %v2053 = vadd.f32 %v1829, 1.0
      %v2054 = vadd.f32 %v1830, 1.0
      %v2055 = vadd.f32 %v1831, 1.0
      %v2056 = vadd.f32 %v1832, 1.0
      %v2057 = vadd.f32 %v1833, 1.0
      %v2058 = vadd.f32 %v1834, 1.0
      %v2059 = vadd.f32 %v1835, 1.0
      %v2060 = vadd.f32 %v1836, 1.0
      %v2061 = vadd.f32 %v1837, 1.0
      %v2062 = vadd.f32 %v1838, 1.0
      %v2063 = vadd.f32 %v1839, 1.0
      %v2064 = vadd.f32 %v1840, 1.0
      %v2065 = vadd.f32 %v1841, 1.0
      %v2066 = vadd.f32 %v1842, 1.0
      %v2067 = vadd.f32 %v1843, 1.0
      %v2068 = vadd.f32 %v1844, 1.0
      %v2069 = vadd.f32 %v1845, 1.0
      %v2070 = vadd.f32 %v1846, 1.0
      %v2071 = vadd.f32 %v1847, 1.0
      %v2072 = vadd.f32 %v1848, 1.0
      %v2073 = vadd.f32 %v1849, 1.0
      %v2074 = vadd.f32 %v1850, 1.0
      %v2075 = vadd.f32 %v1851, 1.0
      %v2076 = vadd.f32 %v1852, 1.0
      %v2077 = vadd.f32 %v1853, 1.0
      %v2078 = vadd.f32 %v1854, 1.0
      %v2079 = vadd.f32 %v1855, 1.0
      %v2080 = vadd.f32 %v1856, 1.0
      %v2081 = vadd.f32 %v1857, 1.0
      %v2082 = vadd.f32 %v1858, 1.0
      %v2083 = vadd.f32 %v1859, 1.0
      %v2084 = vadd.f32 %v1860, 1.0
      %v2085 = vadd.f32 %v1861, 1.0
      %v2086 = vadd.f32 %v1862, 1.0
      %v2087 = vadd.f32 %v1863, 1.0
      %v2088 = vadd.f32 %v1864, 1.0
      %v2089 = vadd.f32 %v1865, 1.0
      %v2090 = vadd.f32 %v1866, 1.0
      %v2091 = vadd.f32 %v1867, 1.0
      %v2092 = vadd.f32 %v1868, 1.0
      %v2093 = vadd.f32 %v1869, 1.0
      %v2094 = vadd.f32 %v1870, 1.0
      %v2095 = vadd.f32 %v1871, 1.0
      %v2096 = vadd.f32 %v1872, 1.0
      %v2097 = vadd.f32 %v1873, 1.0
      %v2098 = vadd.f32 %v1874, 1.0
      %v2099 = vadd.f32 %v1875, 1.0
      %v2100 = vadd.f32 %v1876, 1.0
      %v2101 = vadd.f32 %v1877, 1.0
      %v2102 = vadd.f32 %v1878, 1.0
      %v2103 = vadd.f32 %v1879, 1.0
      %v2104 = vadd.f32 %v1880, 1.0
      %v2105 = vadd.f32 %v1881, 1.0
      %v2106 = vadd.f32 %v1882, 1.0
      %v2107 = vadd.f32 %v1883, 1.0
      %v2108 = vadd.f32 %v1884, 1.0
      %v2109 = vadd.f32 %v1885, 1.0
      %v2110 = vadd.f32 %v1886, 1.0
      %v2111 = vadd.f32 %v1887, 1.0
      %v2112 = vadd.f32 %v1888, 1.0
      %v2113 = vadd.f32 %v1889, 1.0
      %v2114 = vadd.f32 %v1890, 1.0
      %v2115 = vadd.f32 %v1891, 1.0
      %v2116 = vadd.f32 %v1892, 1.0
      %v2117 = vadd.f32 %v1893, 1.0
      %v2118 = vadd.f32 %v1894, 1.0
      %v2119 = vadd.f32 %v1895, 1.0
      %v2120 = vadd.f32 %v1896, 1.0
      %v2121 = vadd.f32 %v1897, 1.0
      %v2122 = vadd.f32 %v1898, 1.0
      %v2123 = vadd.f32 %v1899, 1.0
      %v2124 = vadd.f32 %v1900, 1.0
      %v2125 = vadd.f32 %v1901, 1.0
      %v2126 = vadd.f32 %v1902, 1.0
      %v2127 = vadd.f32 %v1903, 1.0
      %v2128 = vadd.f32 %v1904, 1.0
      %v2129 = vadd.f32 %v1905, 1.0
      %v2130 = vadd.f32 %v1906, 1.0
      %v2131 = vadd.f32 %v1907, 1.0
      %v2132 = vadd.f32 %v1908, 1.0
      %v2133 = vadd.f32 %v1909, 1.0
      %v2134 = vadd.f32 %v1910, 1.0
      %v2135 = vadd.f32 %v1911, 1.0
      %v2136 = vadd.f32 %v1912, 1.0
      %v2137 = vadd.f32 %v1913, 1.0
      %v2138 = vadd.f32 %v1914, 1.0
      %v2139 = vadd.f32 %v1915, 1.0
      %v2140 = vadd.f32 %v1916, 1.0
      %v2141 = vadd.f32 %v1917, 1.0
      %v2142 = vadd.f32 %v1918, 1.0
      %v2143 = vadd.f32 %v1919, 1.0
      %v2144 = vadd.f32 %v1920, 1.0
      %v2145 = vadd.f32 %v1921, 1.0
      %v2146 = vadd.f32 %v1922, 1.0
      %v2147 = vadd.f32 %v1923, 1.0
      %v2148 = vadd.f32 %v1924, 1.0
      %v2149 = vadd.f32 %v1925, 1.0
      %v2150 = vadd.f32 %v1926, 1.0
      %v2151 = vadd.f32 %v1927, 1.0
      %v2152 = vadd.f32 %v1928, 1.0
      %v2153 = vadd.f32 %v1929, 1.0
      %v2154 = vadd.f32 %v1930, 1.0
      %v2155 = vadd.f32 %v1931, 1.0
      %v2156 = vadd.f32 %v1932, 1.0
      %v2157 = vadd.f32 %v1933, 1.0
      %v2158 = vadd.f32 %v1934, 1.0
      %v2159 = vadd.f32 %v1935, 1.0
      %v2160 = vadd.f32 %v1936, 1.0
      %v2161 = vadd.f32 %v1937, 1.0
      %v2162 = vadd.f32 %v1938, 1.0
      %v2163 = vadd.f32 %v1939, 1.0
      %v2164 = vadd.f32 %v1940, 1.0
      %v2165 = vadd.f32 %v1941, 1.0
      %v2166 = vadd.f32 %v1942, 1.0
      %v2167 = vadd.f32 %v1943, 1.0
      %v2168 = vadd.f32 %v1944, 1.0
      %v2169 = vadd.f32 %v1945, 1.0
      %v2170 = vadd.f32 %v1946, 1.0
      %v2171 = vadd.f32 %v1947, 1.0
      %v2172 = vadd.f32 %v1948, 1.0
      %v2173 = vadd.f32 %v1949, 1.0
      %v2174 = vadd.f32 %v1950, 1.0
      %v2175 = vadd.f32 %v1951, 1.0
      %v2176 = vadd.f32 %v1952, 1.0
      %v2177 = vadd.f32 %v1953, 1.0
      %v2178 = vadd.f32 %v1954, 1.0
      %v2179 = vadd.f32 %v1955, 1.0
      %v2180 = vadd.f32 %v1956, 1.0
      %v2181 = vadd.f32 %v1957, 1.0
      %v2182 = vadd.f32 %v1958, 1.0
      %v2183 = vadd.f32 %v1959, 1.0
      %v2184 = vadd.f32 %v1960, 1.0
      %v2185 = vadd.f32 %v1961, 1.0
      %v2186 = vadd.f32 %v1962, 1.0
      %v2187 = vadd.f32 %v1963, 1.0
      %v2188 = vadd.f32 %v1964, 1.0
      %v2189 = vadd.f32 %v1965, 1.0
      %v2190 = vadd.f32 %v1966, 1.0
      %v2191 = vadd.f32 %v1967, 1.0
      %v2192 = vadd.f32 %v1968, 1.0
      %v2193 = vadd.f32 %v1969, 1.0
      %v2194 = vadd.f32 %v1970, 1.0
      %v2195 = vadd.f32 %v1971, 1.0
      %v2196 = vadd.f32 %v1972, 1.0
      %v2197 = vadd.f32 %v1973, 1.0
      %v2198 = vmul.f32 %v1526, %v1974
      %v2199 = vmul.f32 %v1527, %v1975
      %v2200 = vmul.f32 %v1528, %v1976
      %v2201 = vmul.f32 %v1529, %v1977
      %v2202 = vmul.f32 %v1530, %v1978
      %v2203 = vmul.f32 %v1531, %v1979
      %v2204 = vmul.f32 %v1532, %v1980
      %v2205 = vmul.f32 %v1533, %v1981
      %v2206 = vmul.f32 %v1534, %v1982
      %v2207 = vmul.f32 %v1535, %v1983
      %v2208 = vmul.f32 %v1536, %v1984
      %v2209 = vmul.f32 %v1537, %v1985
      %v2210 = vmul.f32 %v1538, %v1986
      %v2211 = vmul.f32 %v1539, %v1987
      %v2212 = vmul.f32 %v1540, %v1988
      %v2213 = vmul.f32 %v1541, %v1989
      %v2214 = vmul.f32 %v1542, %v1990
      %v2215 = vmul.f32 %v1543, %v1991
      %v2216 = vmul.f32 %v1544, %v1992
      %v2217 = vmul.f32 %v1545, %v1993
      %v2218 = vmul.f32 %v1546, %v1994
      %v2219 = vmul.f32 %v1547, %v1995
      %v2220 = vmul.f32 %v1548, %v1996
      %v2221 = vmul.f32 %v1549, %v1997
      %v2222 = vmul.f32 %v1550, %v1998
      %v2223 = vmul.f32 %v1551, %v1999
      %v2224 = vmul.f32 %v1552, %v2000
      %v2225 = vmul.f32 %v1553, %v2001
      %v2226 = vmul.f32 %v1554, %v2002
      %v2227 = vmul.f32 %v1555, %v2003
      %v2228 = vmul.f32 %v1556, %v2004
      %v2229 = vmul.f32 %v1557, %v2005
      %v2230 = vmul.f32 %v1558, %v2006
      %v2231 = vmul.f32 %v1559, %v2007
      %v2232 = vmul.f32 %v1560, %v2008
      %v2233 = vmul.f32 %v1561, %v2009
      %v2234 = vmul.f32 %v1562, %v2010
      %v2235 = vmul.f32 %v1563, %v2011
      %v2236 = vmul.f32 %v1564, %v2012
      %v2237 = vmul.f32 %v1565, %v2013
      %v2238 = vmul.f32 %v1566, %v2014
      %v2239 = vmul.f32 %v1567, %v2015
      %v2240 = vmul.f32 %v1568, %v2016
      %v2241 = vmul.f32 %v1569, %v2017
      %v2242 = vmul.f32 %v1570, %v2018
      %v2243 = vmul.f32 %v1571, %v2019
      %v2244 = vmul.f32 %v1572, %v2020
      %v2245 = vmul.f32 %v1573, %v2021
      %v2246 = vmul.f32 %v1574, %v2022
      %v2247 = vmul.f32 %v1575, %v2023
      %v2248 = vmul.f32 %v1576, %v2024
      %v2249 = vmul.f32 %v1577, %v2025
      %v2250 = vmul.f32 %v1578, %v2026
      %v2251 = vmul.f32 %v1579, %v2027
      %v2252 = vmul.f32 %v1580, %v2028
      %v2253 = vmul.f32 %v1581, %v2029
      %v2254 = vmul.f32 %v1582, %v2030
      %v2255 = vmul.f32 %v1583, %v2031
      %v2256 = vmul.f32 %v1584, %v2032
      %v2257 = vmul.f32 %v1585, %v2033
      %v2258 = vmul.f32 %v1586, %v2034
      %v2259 = vmul.f32 %v1587, %v2035
      %v2260 = vmul.f32 %v1588, %v2036
      %v2261 = vmul.f32 %v1589, %v2037
      %v2262 = vmul.f32 %v1590, %v2038
      %v2263 = vmul.f32 %v1591, %v2039
      %v2264 = vmul.f32 %v1592, %v2040
      %v2265 = vmul.f32 %v1593, %v2041
      %v2266 = vmul.f32 %v1594, %v2042
      %v2267 = vmul.f32 %v1595, %v2043
      %v2268 = vmul.f32 %v1596, %v2044
      %v2269 = vmul.f32 %v1597, %v2045
      %v2270 = vmul.f32 %v1598, %v2046
      %v2271 = vmul.f32 %v1599, %v2047
      %v2272 = vmul.f32 %v1600, %v2048
      %v2273 = vmul.f32 %v1601, %v2049
      %v2274 = vmul.f32 %v1602, %v2050
      %v2275 = vmul.f32 %v1603, %v2051
      %v2276 = vmul.f32 %v1604, %v2052
      %v2277 = vmul.f32 %v1605, %v2053
      %v2278 = vmul.f32 %v1606, %v2054
      %v2279 = vmul.f32 %v1607, %v2055
      %v2280 = vmul.f32 %v1608, %v2056
      %v2281 = vmul.f32 %v1609, %v2057
      %v2282 = vmul.f32 %v1610, %v2058
      %v2283 = vmul.f32 %v1611, %v2059
      %v2284 = vmul.f32 %v1612, %v2060
      %v2285 = vmul.f32 %v1613, %v2061
      %v2286 = vmul.f32 %v1614, %v2062
      %v2287 = vmul.f32 %v1615, %v2063
      %v2288 = vmul.f32 %v1616, %v2064
      %v2289 = vmul.f32 %v1617, %v2065
      %v2290 = vmul.f32 %v1618, %v2066
      %v2291 = vmul.f32 %v1619, %v2067
      %v2292 = vmul.f32 %v1620, %v2068
      %v2293 = vmul.f32 %v1621, %v2069
      %v2294 = vmul.f32 %v1622, %v2070
      %v2295 = vmul.f32 %v1623, %v2071
      %v2296 = vmul.f32 %v1624, %v2072
      %v2297 = vmul.f32 %v1625, %v2073
      %v2298 = vmul.f32 %v1626, %v2074
      %v2299 = vmul.f32 %v1627, %v2075
      %v2300 = vmul.f32 %v1628, %v2076
      %v2301 = vmul.f32 %v1629, %v2077
      %v2302 = vmul.f32 %v1630, %v2078
      %v2303 = vmul.f32 %v1631, %v2079
      %v2304 = vmul.f32 %v1632, %v2080
      %v2305 = vmul.f32 %v1633, %v2081
      %v2306 = vmul.f32 %v1634, %v2082
      %v2307 = vmul.f32 %v1635, %v2083
      %v2308 = vmul.f32 %v1636, %v2084
      %v2309 = vmul.f32 %v1637, %v2085
      %v2310 = vmul.f32 %v1638, %v2086
      %v2311 = vmul.f32 %v1639, %v2087
      %v2312 = vmul.f32 %v1640, %v2088
      %v2313 = vmul.f32 %v1641, %v2089
      %v2314 = vmul.f32 %v1642, %v2090
      %v2315 = vmul.f32 %v1643, %v2091
      %v2316 = vmul.f32 %v1644, %v2092
      %v2317 = vmul.f32 %v1645, %v2093
      %v2318 = vmul.f32 %v1646, %v2094
      %v2319 = vmul.f32 %v1647, %v2095
      %v2320 = vmul.f32 %v1648, %v2096
      %v2321 = vmul.f32 %v1649, %v2097
      %v2322 = vmul.f32 %v1650, %v2098
      %v2323 = vmul.f32 %v1651, %v2099
      %v2324 = vmul.f32 %v1652, %v2100
      %v2325 = vmul.f32 %v1653, %v2101
      %v2326 = vmul.f32 %v1654, %v2102
      %v2327 = vmul.f32 %v1655, %v2103
      %v2328 = vmul.f32 %v1656, %v2104
      %v2329 = vmul.f32 %v1657, %v2105
      %v2330 = vmul.f32 %v1658, %v2106
      %v2331 = vmul.f32 %v1659, %v2107
      %v2332 = vmul.f32 %v1660, %v2108
      %v2333 = vmul.f32 %v1661, %v2109
      %v2334 = vmul.f32 %v1662, %v2110
      %v2335 = vmul.f32 %v1663, %v2111
      %v2336 = vmul.f32 %v1664, %v2112
      %v2337 = vmul.f32 %v1665, %v2113
      %v2338 = vmul.f32 %v1666, %v2114
      %v2339 = vmul.f32 %v1667, %v2115
      %v2340 = vmul.f32 %v1668, %v2116
      %v2341 = vmul.f32 %v1669, %v2117
      %v2342 = vmul.f32 %v1670, %v2118
      %v2343 = vmul.f32 %v1671, %v2119
      %v2344 = vmul.f32 %v1672, %v2120
      %v2345 = vmul.f32 %v1673, %v2121
      %v2346 = vmul.f32 %v1674, %v2122
      %v2347 = vmul.f32 %v1675, %v2123
      %v2348 = vmul.f32 %v1676, %v2124
      %v2349 = vmul.f32 %v1677, %v2125
      %v2350 = vmul.f32 %v1678, %v2126
      %v2351 = vmul.f32 %v1679, %v2127
      %v2352 = vmul.f32 %v1680, %v2128
      %v2353 = vmul.f32 %v1681, %v2129
      %v2354 = vmul.f32 %v1682, %v2130
      %v2355 = vmul.f32 %v1683, %v2131
      %v2356 = vmul.f32 %v1684, %v2132
      %v2357 = vmul.f32 %v1685, %v2133
      %v2358 = vmul.f32 %v1686, %v2134
      %v2359 = vmul.f32 %v1687, %v2135
      %v2360 = vmul.f32 %v1688, %v2136
      %v2361 = vmul.f32 %v1689, %v2137
      %v2362 = vmul.f32 %v1690, %v2138
      %v2363 = vmul.f32 %v1691, %v2139
      %v2364 = vmul.f32 %v1692, %v2140
      %v2365 = vmul.f32 %v1693, %v2141
      %v2366 = vmul.f32 %v1694, %v2142
      %v2367 = vmul.f32 %v1695, %v2143
      %v2368 = vmul.f32 %v1696, %v2144
      %v2369 = vmul.f32 %v1697, %v2145
      %v2370 = vmul.f32 %v1698, %v2146
      %v2371 = vmul.f32 %v1699, %v2147
      %v2372 = vmul.f32 %v1700, %v2148
      %v2373 = vmul.f32 %v1701, %v2149
      %v2374 = vmul.f32 %v1702, %v2150
      %v2375 = vmul.f32 %v1703, %v2151
      %v2376 = vmul.f32 %v1704, %v2152
      %v2377 = vmul.f32 %v1705, %v2153
      %v2378 = vmul.f32 %v1706, %v2154
      %v2379 = vmul.f32 %v1707, %v2155
      %v2380 = vmul.f32 %v1708, %v2156
      %v2381 = vmul.f32 %v1709, %v2157
      %v2382 = vmul.f32 %v1710, %v2158
      %v2383 = vmul.f32 %v1711, %v2159
      %v2384 = vmul.f32 %v1712, %v2160
      %v2385 = vmul.f32 %v1713, %v2161
      %v2386 = vmul.f32 %v1714, %v2162
      %v2387 = vmul.f32 %v1715, %v2163
      %v2388 = vmul.f32 %v1716, %v2164
      %v2389 = vmul.f32 %v1717, %v2165
      %v2390 = vmul.f32 %v1718, %v2166
      %v2391 = vmul.f32 %v1719, %v2167
      %v2392 = vmul.f32 %v1720, %v2168
      %v2393 = vmul.f32 %v1721, %v2169
      %v2394 = vmul.f32 %v1722, %v2170
      %v2395 = vmul.f32 %v1723, %v2171
      %v2396 = vmul.f32 %v1724, %v2172
      %v2397 = vmul.f32 %v1725, %v2173
      %v2398 = vmul.f32 %v1726, %v2174
      %v2399 = vmul.f32 %v1727, %v2175
      %v2400 = vmul.f32 %v1728, %v2176
      %v2401 = vmul.f32 %v1729, %v2177
      %v2402 = vmul.f32 %v1730, %v2178
      %v2403 = vmul.f32 %v1731, %v2179
      %v2404 = vmul.f32 %v1732, %v2180
      %v2405 = vmul.f32 %v1733, %v2181
      %v2406 = vmul.f32 %v1734, %v2182
      %v2407 = vmul.f32 %v1735, %v2183
      %v2408 = vmul.f32 %v1736, %v2184
      %v2409 = vmul.f32 %v1737, %v2185
      %v2410 = vmul.f32 %v1738, %v2186
      %v2411 = vmul.f32 %v1739, %v2187
      %v2412 = vmul.f32 %v1740, %v2188
      %v2413 = vmul.f32 %v1741, %v2189
      %v2414 = vmul.f32 %v1742, %v2190
      %v2415 = vmul.f32 %v1743, %v2191
      %v2416 = vmul.f32 %v1744, %v2192
      %v2417 = vmul.f32 %v1745, %v2193
      %v2418 = vmul.f32 %v1746, %v2194
      %v2419 = vmul.f32 %v1747, %v2195
      %v2420 = vmul.f32 %v1748, %v2196
      %v2421 = vmul.f32 %v1749, %v2197
      %v2422 = vld [vmem:[%s283] sm:$0xff]
      %v2423 = vld [vmem:[%s283 + $0x8] sm:$0xff]
      %v2424 = vld [vmem:[%s283 + $0x10] sm:$0xff]
      %v2425 = vld [vmem:[%s283 + $0x18] sm:$0xff]
      %v2426 = vld [vmem:[%s283 + $0x20] sm:$0xff]
      %v2427 = vld [vmem:[%s283 + $0x28] sm:$0xff]
      %v2428 = vld [vmem:[%s283 + $0x30] sm:$0xff]
      %v2429 = vld [vmem:[%s283 + $0x38] sm:$0xff]
      %v2430 = vld [vmem:[%s283 + $0x40] sm:$0xff]
      %v2431 = vld [vmem:[%s283 + $0x48] sm:$0xff]
      %v2432 = vld [vmem:[%s283 + $0x50] sm:$0xff]
      %v2433 = vld [vmem:[%s283 + $0x58] sm:$0xff]
      %v2434 = vld [vmem:[%s283 + $0x60] sm:$0xff]
      %v2435 = vld [vmem:[%s283 + $0x68] sm:$0xff]
      %v2436 = vadd.f32 %v2198, %v2212
      %v2437 = vadd.f32 %v2436, %v2226
      %v2438 = vadd.f32 %v2437, %v2240
      %v2439 = vadd.f32 %v2438, %v2254
      %v2440 = vadd.f32 %v2439, %v2268
      %v2441 = vadd.f32 %v2440, %v2282
      %v2442 = vadd.f32 %v2441, %v2296
      %v2443 = vadd.f32 %v2442, %v2310
      %v2444 = vadd.f32 %v2443, %v2324
      %v2445 = vadd.f32 %v2444, %v2338
      %v2446 = vadd.f32 %v2445, %v2352
      %v2447 = vadd.f32 %v2446, %v2366
      %v2448 = vadd.f32 %v2447, %v2380
      %v2449 = vadd.f32 %v2448, %v2394
      %v2450 = vadd.f32 %v2449, %v2408
      %v2451 = vadd.f32 %v2199, %v2213
      %v2452 = vadd.f32 %v2451, %v2227
      %v2453 = vadd.f32 %v2452, %v2241
      %v2454 = vadd.f32 %v2453, %v2255
      %v2455 = vadd.f32 %v2454, %v2269
      %v2456 = vadd.f32 %v2455, %v2283
      %v2457 = vadd.f32 %v2456, %v2297
      %v2458 = vadd.f32 %v2457, %v2311
      %v2459 = vadd.f32 %v2458, %v2325
      %v2460 = vadd.f32 %v2459, %v2339
      %v2461 = vadd.f32 %v2460, %v2353
      %v2462 = vadd.f32 %v2461, %v2367
      %v2463 = vadd.f32 %v2462, %v2381
      %v2464 = vadd.f32 %v2463, %v2395
      %v2465 = vadd.f32 %v2464, %v2409
      %v2466 = vadd.f32 %v2200, %v2214
      %v2467 = vadd.f32 %v2466, %v2228
      %v2468 = vadd.f32 %v2467, %v2242
      %v2469 = vadd.f32 %v2468, %v2256
      %v2470 = vadd.f32 %v2469, %v2270
      %v2471 = vadd.f32 %v2470, %v2284
      %v2472 = vadd.f32 %v2471, %v2298
      %v2473 = vadd.f32 %v2472, %v2312
      %v2474 = vadd.f32 %v2473, %v2326
      %v2475 = vadd.f32 %v2474, %v2340
      %v2476 = vadd.f32 %v2475, %v2354
      %v2477 = vadd.f32 %v2476, %v2368
      %v2478 = vadd.f32 %v2477, %v2382
      %v2479 = vadd.f32 %v2478, %v2396
      %v2480 = vadd.f32 %v2479, %v2410
      %v2481 = vadd.f32 %v2201, %v2215
      %v2482 = vadd.f32 %v2481, %v2229
      %v2483 = vadd.f32 %v2482, %v2243
      %v2484 = vadd.f32 %v2483, %v2257
      %v2485 = vadd.f32 %v2484, %v2271
      %v2486 = vadd.f32 %v2485, %v2285
      %v2487 = vadd.f32 %v2486, %v2299
      %v2488 = vadd.f32 %v2487, %v2313
      %v2489 = vadd.f32 %v2488, %v2327
      %v2490 = vadd.f32 %v2489, %v2341
      %v2491 = vadd.f32 %v2490, %v2355
      %v2492 = vadd.f32 %v2491, %v2369
      %v2493 = vadd.f32 %v2492, %v2383
      %v2494 = vadd.f32 %v2493, %v2397
      %v2495 = vadd.f32 %v2494, %v2411
      %v2496 = vadd.f32 %v2202, %v2216
      %v2497 = vadd.f32 %v2496, %v2230
      %v2498 = vadd.f32 %v2497, %v2244
      %v2499 = vadd.f32 %v2498, %v2258
      %v2500 = vadd.f32 %v2499, %v2272
      %v2501 = vadd.f32 %v2500, %v2286
      %v2502 = vadd.f32 %v2501, %v2300
      %v2503 = vadd.f32 %v2502, %v2314
      %v2504 = vadd.f32 %v2503, %v2328
      %v2505 = vadd.f32 %v2504, %v2342
      %v2506 = vadd.f32 %v2505, %v2356
      %v2507 = vadd.f32 %v2506, %v2370
      %v2508 = vadd.f32 %v2507, %v2384
      %v2509 = vadd.f32 %v2508, %v2398
      %v2510 = vadd.f32 %v2509, %v2412
      %v2511 = vadd.f32 %v2203, %v2217
      %v2512 = vadd.f32 %v2511, %v2231
      %v2513 = vadd.f32 %v2512, %v2245
      %v2514 = vadd.f32 %v2513, %v2259
      %v2515 = vadd.f32 %v2514, %v2273
      %v2516 = vadd.f32 %v2515, %v2287
      %v2517 = vadd.f32 %v2516, %v2301
      %v2518 = vadd.f32 %v2517, %v2315
      %v2519 = vadd.f32 %v2518, %v2329
      %v2520 = vadd.f32 %v2519, %v2343
      %v2521 = vadd.f32 %v2520, %v2357
      %v2522 = vadd.f32 %v2521, %v2371
      %v2523 = vadd.f32 %v2522, %v2385
      %v2524 = vadd.f32 %v2523, %v2399
      %v2525 = vadd.f32 %v2524, %v2413
      %v2526 = vadd.f32 %v2204, %v2218
      %v2527 = vadd.f32 %v2526, %v2232
      %v2528 = vadd.f32 %v2527, %v2246
      %v2529 = vadd.f32 %v2528, %v2260
      %v2530 = vadd.f32 %v2529, %v2274
      %v2531 = vadd.f32 %v2530, %v2288
      %v2532 = vadd.f32 %v2531, %v2302
      %v2533 = vadd.f32 %v2532, %v2316
      %v2534 = vadd.f32 %v2533, %v2330
      %v2535 = vadd.f32 %v2534, %v2344
      %v2536 = vadd.f32 %v2535, %v2358
      %v2537 = vadd.f32 %v2536, %v2372
      %v2538 = vadd.f32 %v2537, %v2386
      %v2539 = vadd.f32 %v2538, %v2400
      %v2540 = vadd.f32 %v2539, %v2414
      %v2541 = vadd.f32 %v2205, %v2219
      %v2542 = vadd.f32 %v2541, %v2233
      %v2543 = vadd.f32 %v2542, %v2247
      %v2544 = vadd.f32 %v2543, %v2261
      %v2545 = vadd.f32 %v2544, %v2275
      %v2546 = vadd.f32 %v2545, %v2289
      %v2547 = vadd.f32 %v2546, %v2303
      %v2548 = vadd.f32 %v2547, %v2317
      %v2549 = vadd.f32 %v2548, %v2331
      %v2550 = vadd.f32 %v2549, %v2345
      %v2551 = vadd.f32 %v2550, %v2359
      %v2552 = vadd.f32 %v2551, %v2373
      %v2553 = vadd.f32 %v2552, %v2387
      %v2554 = vadd.f32 %v2553, %v2401
      %v2555 = vadd.f32 %v2554, %v2415
      %v2556 = vadd.f32 %v2206, %v2220
      %v2557 = vadd.f32 %v2556, %v2234
      %v2558 = vadd.f32 %v2557, %v2248
      %v2559 = vadd.f32 %v2558, %v2262
      %v2560 = vadd.f32 %v2559, %v2276
      %v2561 = vadd.f32 %v2560, %v2290
      %v2562 = vadd.f32 %v2561, %v2304
      %v2563 = vadd.f32 %v2562, %v2318
      %v2564 = vadd.f32 %v2563, %v2332
      %v2565 = vadd.f32 %v2564, %v2346
      %v2566 = vadd.f32 %v2565, %v2360
      %v2567 = vadd.f32 %v2566, %v2374
      %v2568 = vadd.f32 %v2567, %v2388
      %v2569 = vadd.f32 %v2568, %v2402
      %v2570 = vadd.f32 %v2569, %v2416
      %v2571 = vadd.f32 %v2207, %v2221
      %v2572 = vadd.f32 %v2571, %v2235
      %v2573 = vadd.f32 %v2572, %v2249
      %v2574 = vadd.f32 %v2573, %v2263
      %v2575 = vadd.f32 %v2574, %v2277
      %v2576 = vadd.f32 %v2575, %v2291
      %v2577 = vadd.f32 %v2576, %v2305
      %v2578 = vadd.f32 %v2577, %v2319
      %v2579 = vadd.f32 %v2578, %v2333
      %v2580 = vadd.f32 %v2579, %v2347
      %v2581 = vadd.f32 %v2580, %v2361
      %v2582 = vadd.f32 %v2581, %v2375
      %v2583 = vadd.f32 %v2582, %v2389
      %v2584 = vadd.f32 %v2583, %v2403
      %v2585 = vadd.f32 %v2584, %v2417
      %v2586 = vadd.f32 %v2208, %v2222
      %v2587 = vadd.f32 %v2586, %v2236
      %v2588 = vadd.f32 %v2587, %v2250
      %v2589 = vadd.f32 %v2588, %v2264
      %v2590 = vadd.f32 %v2589, %v2278
      %v2591 = vadd.f32 %v2590, %v2292
      %v2592 = vadd.f32 %v2591, %v2306
      %v2593 = vadd.f32 %v2592, %v2320
      %v2594 = vadd.f32 %v2593, %v2334
      %v2595 = vadd.f32 %v2594, %v2348
      %v2596 = vadd.f32 %v2595, %v2362
      %v2597 = vadd.f32 %v2596, %v2376
      %v2598 = vadd.f32 %v2597, %v2390
      %v2599 = vadd.f32 %v2598, %v2404
      %v2600 = vadd.f32 %v2599, %v2418
      %v2601 = vadd.f32 %v2209, %v2223
      %v2602 = vadd.f32 %v2601, %v2237
      %v2603 = vadd.f32 %v2602, %v2251
      %v2604 = vadd.f32 %v2603, %v2265
      %v2605 = vadd.f32 %v2604, %v2279
      %v2606 = vadd.f32 %v2605, %v2293
      %v2607 = vadd.f32 %v2606, %v2307
      %v2608 = vadd.f32 %v2607, %v2321
      %v2609 = vadd.f32 %v2608, %v2335
      %v2610 = vadd.f32 %v2609, %v2349
      %v2611 = vadd.f32 %v2610, %v2363
      %v2612 = vadd.f32 %v2611, %v2377
      %v2613 = vadd.f32 %v2612, %v2391
      %v2614 = vadd.f32 %v2613, %v2405
      %v2615 = vadd.f32 %v2614, %v2419
      %v2616 = vadd.f32 %v2210, %v2224
      %v2617 = vadd.f32 %v2616, %v2238
      %v2618 = vadd.f32 %v2617, %v2252
      %v2619 = vadd.f32 %v2618, %v2266
      %v2620 = vadd.f32 %v2619, %v2280
      %v2621 = vadd.f32 %v2620, %v2294
      %v2622 = vadd.f32 %v2621, %v2308
      %v2623 = vadd.f32 %v2622, %v2322
      %v2624 = vadd.f32 %v2623, %v2336
      %v2625 = vadd.f32 %v2624, %v2350
      %v2626 = vadd.f32 %v2625, %v2364
      %v2627 = vadd.f32 %v2626, %v2378
      %v2628 = vadd.f32 %v2627, %v2392
      %v2629 = vadd.f32 %v2628, %v2406
      %v2630 = vadd.f32 %v2629, %v2420
      %v2631 = vadd.f32 %v2211, %v2225
      %v2632 = vadd.f32 %v2631, %v2239
      %v2633 = vadd.f32 %v2632, %v2253
      %v2634 = vadd.f32 %v2633, %v2267
      %v2635 = vadd.f32 %v2634, %v2281
      %v2636 = vadd.f32 %v2635, %v2295
      %v2637 = vadd.f32 %v2636, %v2309
      %v2638 = vadd.f32 %v2637, %v2323
      %v2639 = vadd.f32 %v2638, %v2337
      %v2640 = vadd.f32 %v2639, %v2351
      %v2641 = vadd.f32 %v2640, %v2365
      %v2642 = vadd.f32 %v2641, %v2379
      %v2643 = vadd.f32 %v2642, %v2393
      %v2644 = vadd.f32 %v2643, %v2407
      %v2645 = vadd.f32 %v2644, %v2421
      %v2646 = vadd.f32 %v2422, %v2450
      %v2647 = vadd.f32 %v2423, %v2465
      %v2648 = vadd.f32 %v2424, %v2480
      %v2649 = vadd.f32 %v2425, %v2495
      %v2650 = vadd.f32 %v2426, %v2510
      %v2651 = vadd.f32 %v2427, %v2525
      %v2652 = vadd.f32 %v2428, %v2540
      %v2653 = vadd.f32 %v2429, %v2555
      %v2654 = vadd.f32 %v2430, %v2570
      %v2655 = vadd.f32 %v2431, %v2585
      %v2656 = vadd.f32 %v2432, %v2600
      %v2657 = vadd.f32 %v2433, %v2615
      %v2658 = vadd.f32 %v2434, %v2630
      %v2659 = vadd.f32 %v2435, %v2645
      %2660 = vst [vmem:[%s283] sm:$0xff] %v2646
      %2661 = vst [vmem:[%s283 + $0x8] sm:$0xff] %v2647
      %2662 = vst [vmem:[%s283 + $0x10] sm:$0xff] %v2648
      %2663 = vst [vmem:[%s283 + $0x18] sm:$0xff] %v2649
      %2664 = vst [vmem:[%s283 + $0x20] sm:$0xff] %v2650
      %2665 = vst [vmem:[%s283 + $0x28] sm:$0xff] %v2651
      %2666 = vst [vmem:[%s283 + $0x30] sm:$0xff] %v2652
      %2667 = vst [vmem:[%s283 + $0x38] sm:$0xff] %v2653
      %2668 = vst [vmem:[%s283 + $0x40] sm:$0xff] %v2654
      %2669 = vst [vmem:[%s283 + $0x48] sm:$0xff] %v2655
      %2670 = vst [vmem:[%s283 + $0x50] sm:$0xff] %v2656
      %2671 = vst [vmem:[%s283 + $0x58] sm:$0xff] %v2657
      %2672 = vst [vmem:[%s283 + $0x60] sm:$0xff] %v2658
      %2673 = vst [vmem:[%s283 + $0x68] sm:$0xff] %v2659
      %p2674 = scmp.lt.s32.totalorder %s21, 1
      %s2675 = scalar_select %p2674, %s21, 1
      %p2676 = scmp.lt.s32.totalorder %s22, 1
      %s2677 = scalar_select %p2676, %s22, 1
      %s2678 = smul.addr %s2677, 14
      %s2679 = smul.addr %s2675, 28
      %s2680 = sadd.s32 %s2678, %s2679
      %s2681 = smul.addr %s2680, 8
      %s2682 = scalar_lea.vmem %s5, %s2681
      // Predicated region
      $region45: #{emotion_model_forward.2} parent=39 // pred_check
        %p2683 = pneg %p169
      $region46: #{emotion_model_forward.2} parent=39 // pred_check_branch
        %2685 = sbr.rel (%p2683) target = $region48
      $region47: #{emotion_model_forward.2} parent=39 // pred_region
        _
      $region48: #{emotion_model_forward.2} parent=39 // pred_fallthru
        _
    $region40: #{emotion_model_forward.2} parent=5 // pred_fallthru
      _
    %p2686 = scmp.le.s32.totalorder 2, %s11
    // Predicated region
    $region49: #{emotion_model_forward.2} parent=5 // pred_check
      %p2687 = pneg %p2686
    $region50: #{emotion_model_forward.2} parent=5 // pred_check_branch
      %2689 = sbr.rel (%p2687) target = $region52
    $region51: #{emotion_model_forward.2} parent=5 // pred_region
      %s2690 = ssub.s32 %s11, 2
      // Predicated region
      $region53: #{emotion_model_forward.2} parent=51 // pred_check
        %p2691 = pneg %p175
      $region54: #{emotion_model_forward.2} parent=51 // pred_check_branch
        %2693 = sbr.rel (%p2691) target = $region56
      $region55: #{emotion_model_forward.2} parent=51 // pred_region
        %p2694 = scmp.lt.s32.totalorder %s24, 1
        %s2695 = scalar_select %p2694, %s24, 1
        %p2696 = scmp.lt.s32.totalorder %s25, 1
        %s2697 = scalar_select %p2696, %s25, 1
        %s2698 = smul.addr %s2697, 14
        %s2699 = smul.addr %s2695, 28
        %s2700 = sadd.s32 %s2698, %s2699
        %s2701 = smul.addr %s2700, 8
        %s2702 = scalar_lea.vmem %s5, %s2701
      $region56: #{emotion_model_forward.2} parent=51 // pred_fallthru
        _
    $region52: #{emotion_model_forward.2} parent=5 // pred_fallthru
      _
  $region6: #{emotion_model_forward.2} parent=0 // loop_footer
    %s15 = sadd.s32 1, %s11
  $region7: #{emotion_model_forward.2} parent=0 // loop_footer_branch
    %10 = sbr.rel target = $region3
  $region8: #{emotion_model_forward.2} parent=0 // loop_exit
    _

// kernel: emotion_model_forward.3
$region0: #{emotion_model_forward.3}
  #allocation0 [shape = 'u32[]', space=smem, size = 0x4, offset = 0x4, fixed_abs, tag = 'smem constant byte address 0x4 - core index']
  #allocation1 [shape = 'u32[72,128]{1,0:T(1,128)}', space=vmem, size = 0x9000, scoped, tag = 'internal scratch']
  %s0 = inlined_call_operand.vmem [shape: bf16[2,1792], index: 0, kind: input, shape index: {}]
  %s1 = inlined_call_operand.vmem [shape: bf16[1792,512], index: 1, kind: input, shape index: {}]
  %s2 = inlined_call_operand.vmem [shape: f32[1,512], index: 2, kind: input, shape index: {}]
  %s3 = inlined_call_operand.vmem [shape: bf16[512,128], index: 3, kind: input, shape index: {}]
  %s4 = inlined_call_operand.vmem [shape: f32[1,128], index: 4, kind: input, shape index: {}]
  %s5 = inlined_call_operand.hbm [shape: f32[2,128], index: 5, kind: output, shape index: {}]
  %s6 = sld [smem:[#allocation0]]
  $region30: #{emotion_model_forward.3} parent=0
    _
  %s8 = ssub.s32 1, %s6
  %s9 = scalar_select 0, %s8, %s6
  $region1: #{emotion_model_forward.3} parent=0
    #allocation2 [shape = 'u8[1024]{0}', space=vmem, size = 0x400, scoped, tag = 'output window, operand 0, single buffered']
    #allocation3 [shape = 's32[1]{0}', space=sflag, size = 0x4, scoped, tag = 'scoped memory for emotion_model_forward.3']
    %10 = vsyncpa [#allocation3], 0
    // Predicated region
    $region2: #{emotion_model_forward.3} parent=1 // pred_check
      _
    $region3: #{emotion_model_forward.3} parent=1 // pred_check_branch
      %12 = sbr.rel (0) target = $region5
    $region4: #{emotion_model_forward.3} parent=1 // pred_region
      _
    $region5: #{emotion_model_forward.3} parent=1 // pred_fallthru
      _
    // Predicated region
    $region6: #{emotion_model_forward.3} parent=1 // pred_check
      _
    $region7: #{emotion_model_forward.3} parent=1 // pred_check_branch
      %14 = sbr.rel (0) target = $region9
    $region8: #{emotion_model_forward.3} parent=1 // pred_region
      _
    $region9: #{emotion_model_forward.3} parent=1 // pred_fallthru
      _
    // Predicated region
    $region10: #{emotion_model_forward.3} parent=1 // pred_check
      _
    $region11: #{emotion_model_forward.3} parent=1 // pred_check_branch
      %16 = sbr.rel (0) target = $region13
    $region12: #{emotion_model_forward.3} parent=1 // pred_region
      _
    $region13: #{emotion_model_forward.3} parent=1 // pred_fallthru
      _
    // Predicated region
    $region14: #{emotion_model_forward.3} parent=1 // pred_check
      _
    $region15: #{emotion_model_forward.3} parent=1 // pred_check_branch
      %18 = sbr.rel (0) target = $region17
    $region16: #{emotion_model_forward.3} parent=1 // pred_region
      _
    $region17: #{emotion_model_forward.3} parent=1 // pred_fallthru
      _
    // Predicated region
    $region18: #{emotion_model_forward.3} parent=1 // pred_check
      _
    $region19: #{emotion_model_forward.3} parent=1 // pred_check_branch
      %20 = sbr.rel (0) target = $region21
    $region20: #{emotion_model_forward.3} parent=1 // pred_region
      _
    $region21: #{emotion_model_forward.3} parent=1 // pred_fallthru
      _
    %v21 = vld [vmem:[%s0] sm:$0xff]
    %v22 = vld [vmem:[%s0 + $0x8] sm:$0x3f]
    %v23 = vld [vmem:[%s1] sm:$0xff]
    %v24 = vld [vmem:[%s1 + $0x8] sm:$0xff]
    %v25 = vld [vmem:[%s1 + $0x10] sm:$0xff]
    %v26 = vld [vmem:[%s1 + $0x18] sm:$0xff]
    %v27 = vld [vmem:[%s1 + $0x20] sm:$0xff]
    %v28 = vld [vmem:[%s1 + $0x28] sm:$0xff]
    %v29 = vld [vmem:[%s1 + $0x30] sm:$0xff]
    %v30 = vld [vmem:[%s1 + $0x38] sm:$0xff]
    %v31 = vld [vmem:[%s1 + $0x40] sm:$0xff]
    %v32 = vld [vmem:[%s1 + $0x48] sm:$0xff]
    %v33 = vld [vmem:[%s1 + $0x50] sm:$0xff]
    %v34 = vld [vmem:[%s1 + $0x58] sm:$0xff]
    %v35 = vld [vmem:[%s1 + $0x60] sm:$0xff]
    %v36 = vld [vmem:[%s1 + $0x68] sm:$0xff]
    %v37 = vld [vmem:[%s1 + $0x70] sm:$0xff]
    %v38 = vld [vmem:[%s1 + $0x78] sm:$0xff]
    %v39 = vld [vmem:[%s1 + $0x80] sm:$0xff]
    %v40 = vld [vmem:[%s1 + $0x88] sm:$0xff]
    %v41 = vld [vmem:[%s1 + $0x90] sm:$0xff]
    %v42 = vld [vmem:[%s1 + $0x98] sm:$0xff]
    %v43 = vld [vmem:[%s1 + $0xa0] sm:$0xff]
    %v44 = vld [vmem:[%s1 + $0xa8] sm:$0xff]
    %v45 = vld [vmem:[%s1 + $0xb0] sm:$0xff]
    %v46 = vld [vmem:[%s1 + $0xb8] sm:$0xff]
    %v47 = vld [vmem:[%s1 + $0xc0] sm:$0xff]
    %v48 = vld [vmem:[%s1 + $0xc8] sm:$0xff]
    %v49 = vld [vmem:[%s1 + $0xd0] sm:$0xff]
    %v50 = vld [vmem:[%s1 + $0xd8] sm:$0xff]
    %v51 = vld [vmem:[%s1 + $0xe0] sm:$0xff]
    %v52 = vld [vmem:[%s1 + $0xe8] sm:$0xff]
    %v53 = vld [vmem:[%s1 + $0xf0] sm:$0xff]
    %v54 = vld [vmem:[%s1 + $0xf8] sm:$0xff]
    %v55 = vld [vmem:[%s1 + $0x100] sm:$0xff]
    %v56 = vld [vmem:[%s1 + $0x108] sm:$0xff]
    %v57 = vld [vmem:[%s1 + $0x110] sm:$0xff]
    %v58 = vld [vmem:[%s1 + $0x118] sm:$0xff]
    %v59 = vld [vmem:[%s1 + $0x120] sm:$0xff]
    %v60 = vld [vmem:[%s1 + $0x128] sm:$0xff]
    %v61 = vld [vmem:[%s1 + $0x130] sm:$0xff]
    %v62 = vld [vmem:[%s1 + $0x138] sm:$0xff]
    %v63 = vld [vmem:[%s1 + $0x140] sm:$0xff]
    %v64 = vld [vmem:[%s1 + $0x148] sm:$0xff]
    %v65 = vld [vmem:[%s1 + $0x150] sm:$0xff]
    %v66 = vld [vmem:[%s1 + $0x158] sm:$0xff]
    %v67 = vld [vmem:[%s1 + $0x160] sm:$0xff]
    %v68 = vld [vmem:[%s1 + $0x168] sm:$0xff]
    %v69 = vld [vmem:[%s1 + $0x170] sm:$0xff]
    %v70 = vld [vmem:[%s1 + $0x178] sm:$0xff]
    %v71 = vld [vmem:[%s1 + $0x180] sm:$0xff]
    %v72 = vld [vmem:[%s1 + $0x188] sm:$0xff]
    %v73 = vld [vmem:[%s1 + $0x190] sm:$0xff]
    %v74 = vld [vmem:[%s1 + $0x198] sm:$0xff]
    %v75 = vld [vmem:[%s1 + $0x1a0] sm:$0xff]
    %v76 = vld [vmem:[%s1 + $0x1a8] sm:$0xff]
    %v77 = vld [vmem:[%s1 + $0x1b0] sm:$0xff]
    %v78 = vld [vmem:[%s1 + $0x1b8] sm:$0xff]
    %v79 = vld [vmem:[%s1 + $0x1c0] sm:$0xff]
    %v80 = vld [vmem:[%s1 + $0x1c8] sm:$0xff]
    %v81 = vld [vmem:[%s1 + $0x1d0] sm:$0xff]
    %v82 = vld [vmem:[%s1 + $0x1d8] sm:$0xff]
    %v83 = vld [vmem:[%s1 + $0x1e0] sm:$0xff]
    %v84 = vld [vmem:[%s1 + $0x1e8] sm:$0xff]
    %v85 = vld [vmem:[%s1 + $0x1f0] sm:$0xff]
    %v86 = vld [vmem:[%s1 + $0x1f8] sm:$0xff]
    %v87 = vld [vmem:[%s1 + $0x200] sm:$0xff]
    %v88 = vld [vmem:[%s1 + $0x208] sm:$0xff]
    %v89 = vld [vmem:[%s1 + $0x210] sm:$0xff]
    %v90 = vld [vmem:[%s1 + $0x218] sm:$0xff]
    %v91 = vld [vmem:[%s1 + $0x220] sm:$0xff]
    %v92 = vld [vmem:[%s1 + $0x228] sm:$0xff]
    %v93 = vld [vmem:[%s1 + $0x230] sm:$0xff]
    %v94 = vld [vmem:[%s1 + $0x238] sm:$0xff]
    %v95 = vld [vmem:[%s1 + $0x240] sm:$0xff]
    %v96 = vld [vmem:[%s1 + $0x248] sm:$0xff]
    %v97 = vld [vmem:[%s1 + $0x250] sm:$0xff]
    %v98 = vld [vmem:[%s1 + $0x258] sm:$0xff]
    %v99 = vld [vmem:[%s1 + $0x260] sm:$0xff]
    %v100 = vld [vmem:[%s1 + $0x268] sm:$0xff]
    %v101 = vld [vmem:[%s1 + $0x270] sm:$0xff]
    %v102 = vld [vmem:[%s1 + $0x278] sm:$0xff]
    %v103 = vld [vmem:[%s1 + $0x280] sm:$0xff]
    %v104 = vld [vmem:[%s1 + $0x288] sm:$0xff]
    %v105 = vld [vmem:[%s1 + $0x290] sm:$0xff]
    %v106 = vld [vmem:[%s1 + $0x298] sm:$0xff]
    %v107 = vld [vmem:[%s1 + $0x2a0] sm:$0xff]
    %v108 = vld [vmem:[%s1 + $0x2a8] sm:$0xff]
    %v109 = vld [vmem:[%s1 + $0x2b0] sm:$0xff]
    %v110 = vld [vmem:[%s1 + $0x2b8] sm:$0xff]
    %v111 = vld [vmem:[%s1 + $0x2c0] sm:$0xff]
    %v112 = vld [vmem:[%s1 + $0x2c8] sm:$0xff]
    %v113 = vld [vmem:[%s1 + $0x2d0] sm:$0xff]
    %v114 = vld [vmem:[%s1 + $0x2d8] sm:$0xff]
    %v115 = vld [vmem:[%s1 + $0x2e0] sm:$0xff]
    %v116 = vld [vmem:[%s1 + $0x2e8] sm:$0xff]
    %v117 = vld [vmem:[%s1 + $0x2f0] sm:$0xff]
    %v118 = vld [vmem:[%s1 + $0x2f8] sm:$0xff]
    %v119 = vld [vmem:[%s1 + $0x300] sm:$0xff]
    %v120 = vld [vmem:[%s1 + $0x308] sm:$0xff]
    %v121 = vld [vmem:[%s1 + $0x310] sm:$0xff]
    %v122 = vld [vmem:[%s1 + $0x318] sm:$0xff]
    %v123 = vld [vmem:[%s1 + $0x320] sm:$0xff]
    %v124 = vld [vmem:[%s1 + $0x328] sm:$0xff]
    %v125 = vld [vmem:[%s1 + $0x330] sm:$0xff]
    %v126 = vld [vmem:[%s1 + $0x338] sm:$0xff]
    %v127 = vld [vmem:[%s1 + $0x340] sm:$0xff]
    %v128 = vld [vmem:[%s1 + $0x348] sm:$0xff]
    %v129 = vld [vmem:[%s1 + $0x350] sm:$0xff]
    %v130 = vld [vmem:[%s1 + $0x358] sm:$0xff]
    %v131 = vld [vmem:[%s1 + $0x360] sm:$0xff]
    %v132 = vld [vmem:[%s1 + $0x368] sm:$0xff]
    %v133 = vld [vmem:[%s1 + $0x370] sm:$0xff]
    %v134 = vld [vmem:[%s1 + $0x378] sm:$0xff]
    %v135 = vld [vmem:[%s1 + $0x380] sm:$0xff]
    %v136 = vld [vmem:[%s1 + $0x388] sm:$0xff]
    %v137 = vld [vmem:[%s1 + $0x390] sm:$0xff]
    %v138 = vld [vmem:[%s1 + $0x398] sm:$0xff]
    %v139 = vld [vmem:[%s1 + $0x3a0] sm:$0xff]
    %v140 = vld [vmem:[%s1 + $0x3a8] sm:$0xff]
    %v141 = vld [vmem:[%s1 + $0x3b0] sm:$0xff]
    %v142 = vld [vmem:[%s1 + $0x3b8] sm:$0xff]
    %v143 = vld [vmem:[%s1 + $0x3c0] sm:$0xff]
    %v144 = vld [vmem:[%s1 + $0x3c8] sm:$0xff]
    %v145 = vld [vmem:[%s1 + $0x3d0] sm:$0xff]
    %v146 = vld [vmem:[%s1 + $0x3d8] sm:$0xff]
    %v147 = vld [vmem:[%s1 + $0x3e0] sm:$0xff]
    %v148 = vld [vmem:[%s1 + $0x3e8] sm:$0xff]
    %v149 = vld [vmem:[%s1 + $0x3f0] sm:$0xff]
    %v150 = vld [vmem:[%s1 + $0x3f8] sm:$0xff]
    %v151 = vld [vmem:[%s1 + $0x400] sm:$0xff]
    %v152 = vld [vmem:[%s1 + $0x408] sm:$0xff]
    %v153 = vld [vmem:[%s1 + $0x410] sm:$0xff]
    %v154 = vld [vmem:[%s1 + $0x418] sm:$0xff]
    %v155 = vld [vmem:[%s1 + $0x420] sm:$0xff]
    %v156 = vld [vmem:[%s1 + $0x428] sm:$0xff]
    %v157 = vld [vmem:[%s1 + $0x430] sm:$0xff]
    %v158 = vld [vmem:[%s1 + $0x438] sm:$0xff]
    %v159 = vld [vmem:[%s1 + $0x440] sm:$0xff]
    %v160 = vld [vmem:[%s1 + $0x448] sm:$0xff]
    %v161 = vld [vmem:[%s1 + $0x450] sm:$0xff]
    %v162 = vld [vmem:[%s1 + $0x458] sm:$0xff]
    %v163 = vld [vmem:[%s1 + $0x460] sm:$0xff]
    %v164 = vld [vmem:[%s1 + $0x468] sm:$0xff]
    %v165 = vld [vmem:[%s1 + $0x470] sm:$0xff]
    %v166 = vld [vmem:[%s1 + $0x478] sm:$0xff]
    %v167 = vld [vmem:[%s1 + $0x480] sm:$0xff]
    %v168 = vld [vmem:[%s1 + $0x488] sm:$0xff]
    %v169 = vld [vmem:[%s1 + $0x490] sm:$0xff]
    %v170 = vld [vmem:[%s1 + $0x498] sm:$0xff]
    %v171 = vld [vmem:[%s1 + $0x4a0] sm:$0xff]
    %v172 = vld [vmem:[%s1 + $0x4a8] sm:$0xff]
    %v173 = vld [vmem:[%s1 + $0x4b0] sm:$0xff]
    %v174 = vld [vmem:[%s1 + $0x4b8] sm:$0xff]
    %v175 = vld [vmem:[%s1 + $0x4c0] sm:$0xff]
    %v176 = vld [vmem:[%s1 + $0x4c8] sm:$0xff]
    %v177 = vld [vmem:[%s1 + $0x4d0] sm:$0xff]
    %v178 = vld [vmem:[%s1 + $0x4d8] sm:$0xff]
    %v179 = vld [vmem:[%s1 + $0x4e0] sm:$0xff]
    %v180 = vld [vmem:[%s1 + $0x4e8] sm:$0xff]
    %v181 = vld [vmem:[%s1 + $0x4f0] sm:$0xff]
    %v182 = vld [vmem:[%s1 + $0x4f8] sm:$0xff]
    %v183 = vld [vmem:[%s1 + $0x500] sm:$0xff]
    %v184 = vld [vmem:[%s1 + $0x508] sm:$0xff]
    %v185 = vld [vmem:[%s1 + $0x510] sm:$0xff]
    %v186 = vld [vmem:[%s1 + $0x518] sm:$0xff]
    %v187 = vld [vmem:[%s1 + $0x520] sm:$0xff]
    %v188 = vld [vmem:[%s1 + $0x528] sm:$0xff]
    %v189 = vld [vmem:[%s1 + $0x530] sm:$0xff]
    %v190 = vld [vmem:[%s1 + $0x538] sm:$0xff]
    %v191 = vld [vmem:[%s1 + $0x540] sm:$0xff]
    %v192 = vld [vmem:[%s1 + $0x548] sm:$0xff]
    %v193 = vld [vmem:[%s1 + $0x550] sm:$0xff]
    %v194 = vld [vmem:[%s1 + $0x558] sm:$0xff]
    %v195 = vld [vmem:[%s1 + $0x560] sm:$0xff]
    %v196 = vld [vmem:[%s1 + $0x568] sm:$0xff]
    %v197 = vld [vmem:[%s1 + $0x570] sm:$0xff]
    %v198 = vld [vmem:[%s1 + $0x578] sm:$0xff]
    %v199 = vld [vmem:[%s1 + $0x580] sm:$0xff]
    %v200 = vld [vmem:[%s1 + $0x588] sm:$0xff]
    %v201 = vld [vmem:[%s1 + $0x590] sm:$0xff]
    %v202 = vld [vmem:[%s1 + $0x598] sm:$0xff]
    %v203 = vld [vmem:[%s1 + $0x5a0] sm:$0xff]
    %v204 = vld [vmem:[%s1 + $0x5a8] sm:$0xff]
    %v205 = vld [vmem:[%s1 + $0x5b0] sm:$0xff]
    %v206 = vld [vmem:[%s1 + $0x5b8] sm:$0xff]
    %v207 = vld [vmem:[%s1 + $0x5c0] sm:$0xff]
    %v208 = vld [vmem:[%s1 + $0x5c8] sm:$0xff]
    %v209 = vld [vmem:[%s1 + $0x5d0] sm:$0xff]
    %v210 = vld [vmem:[%s1 + $0x5d8] sm:$0xff]
    %v211 = vld [vmem:[%s1 + $0x5e0] sm:$0xff]
    %v212 = vld [vmem:[%s1 + $0x5e8] sm:$0xff]
    %v213 = vld [vmem:[%s1 + $0x5f0] sm:$0xff]
    %v214 = vld [vmem:[%s1 + $0x5f8] sm:$0xff]
    %v215 = vld [vmem:[%s1 + $0x600] sm:$0xff]
    %v216 = vld [vmem:[%s1 + $0x608] sm:$0xff]
    %v217 = vld [vmem:[%s1 + $0x610] sm:$0xff]
    %v218 = vld [vmem:[%s1 + $0x618] sm:$0xff]
    %v219 = vld [vmem:[%s1 + $0x620] sm:$0xff]
    %v220 = vld [vmem:[%s1 + $0x628] sm:$0xff]
    %v221 = vld [vmem:[%s1 + $0x630] sm:$0xff]
    %v222 = vld [vmem:[%s1 + $0x638] sm:$0xff]
    %v223 = vld [vmem:[%s1 + $0x640] sm:$0xff]
    %v224 = vld [vmem:[%s1 + $0x648] sm:$0xff]
    %v225 = vld [vmem:[%s1 + $0x650] sm:$0xff]
    %v226 = vld [vmem:[%s1 + $0x658] sm:$0xff]
    %v227 = vld [vmem:[%s1 + $0x660] sm:$0xff]
    %v228 = vld [vmem:[%s1 + $0x668] sm:$0xff]
    %v229 = vld [vmem:[%s1 + $0x670] sm:$0xff]
    %v230 = vld [vmem:[%s1 + $0x678] sm:$0xff]
    %v231 = vld [vmem:[%s1 + $0x680] sm:$0xff]
    %v232 = vld [vmem:[%s1 + $0x688] sm:$0xff]
    %v233 = vld [vmem:[%s1 + $0x690] sm:$0xff]
    %v234 = vld [vmem:[%s1 + $0x698] sm:$0xff]
    %v235 = vld [vmem:[%s1 + $0x6a0] sm:$0xff]
    %v236 = vld [vmem:[%s1 + $0x6a8] sm:$0xff]
    %v237 = vld [vmem:[%s1 + $0x6b0] sm:$0xff]
    %v238 = vld [vmem:[%s1 + $0x6b8] sm:$0xff]
    %v239 = vld [vmem:[%s1 + $0x6c0] sm:$0xff]
    %v240 = vld [vmem:[%s1 + $0x6c8] sm:$0xff]
    %v241 = vld [vmem:[%s1 + $0x6d0] sm:$0xff]
    %v242 = vld [vmem:[%s1 + $0x6d8] sm:$0xff]
    %v243 = vld [vmem:[%s1 + $0x6e0] sm:$0xff]
    %v244 = vld [vmem:[%s1 + $0x6e8] sm:$0xff]
    %v245 = vld [vmem:[%s1 + $0x6f0] sm:$0xff]
    %v246 = vld [vmem:[%s1 + $0x6f8] sm:$0xff]
    %v247 = vld [vmem:[%s1 + $0x700] sm:$0xff]
    %v248 = vld [vmem:[%s1 + $0x708] sm:$0xff]
    %v249 = vld [vmem:[%s1 + $0x710] sm:$0xff]
    %v250 = vld [vmem:[%s1 + $0x718] sm:$0xff]
    %v251 = vld [vmem:[%s1 + $0x720] sm:$0xff]
    %v252 = vld [vmem:[%s1 + $0x728] sm:$0xff]
    %v253 = vld [vmem:[%s1 + $0x730] sm:$0xff]
    %v254 = vld [vmem:[%s1 + $0x738] sm:$0xff]
    %v255 = vld [vmem:[%s1 + $0x740] sm:$0xff]
    %v256 = vld [vmem:[%s1 + $0x748] sm:$0xff]
    %v257 = vld [vmem:[%s1 + $0x750] sm:$0xff]
    %v258 = vld [vmem:[%s1 + $0x758] sm:$0xff]
    %v259 = vld [vmem:[%s1 + $0x760] sm:$0xff]
    %v260 = vld [vmem:[%s1 + $0x768] sm:$0xff]
    %v261 = vld [vmem:[%s1 + $0x770] sm:$0xff]
    %v262 = vld [vmem:[%s1 + $0x778] sm:$0xff]
    %v263 = vld [vmem:[%s1 + $0x780] sm:$0xff]
    %v264 = vld [vmem:[%s1 + $0x788] sm:$0xff]
    %v265 = vld [vmem:[%s1 + $0x790] sm:$0xff]
    %v266 = vld [vmem:[%s1 + $0x798] sm:$0xff]
    %v267 = vld [vmem:[%s1 + $0x7a0] sm:$0xff]
    %v268 = vld [vmem:[%s1 + $0x7a8] sm:$0xff]
    %v269 = vld [vmem:[%s1 + $0x7b0] sm:$0xff]
    %v270 = vld [vmem:[%s1 + $0x7b8] sm:$0xff]
    %v271 = vld [vmem:[%s1 + $0x7c0] sm:$0xff]
    %v272 = vld [vmem:[%s1 + $0x7c8] sm:$0xff]
    %v273 = vld [vmem:[%s1 + $0x7d0] sm:$0xff]
    %v274 = vld [vmem:[%s1 + $0x7d8] sm:$0xff]
    %v275 = vld [vmem:[%s1 + $0x7e0] sm:$0xff]
    %v276 = vld [vmem:[%s1 + $0x7e8] sm:$0xff]
    %v277 = vld [vmem:[%s1 + $0x7f0] sm:$0xff]
    %v278 = vld [vmem:[%s1 + $0x7f8] sm:$0xff]
    %v279 = vld [vmem:[%s1 + $0x800] sm:$0xff]
    %v280 = vld [vmem:[%s1 + $0x808] sm:$0xff]
    %v281 = vld [vmem:[%s1 + $0x810] sm:$0xff]
    %v282 = vld [vmem:[%s1 + $0x818] sm:$0xff]
    %v283 = vld [vmem:[%s1 + $0x820] sm:$0xff]
    %v284 = vld [vmem:[%s1 + $0x828] sm:$0xff]
    %v285 = vld [vmem:[%s1 + $0x830] sm:$0xff]
    %v286 = vld [vmem:[%s1 + $0x838] sm:$0xff]
    %v287 = vld [vmem:[%s1 + $0x840] sm:$0xff]
    %v288 = vld [vmem:[%s1 + $0x848] sm:$0xff]
    %v289 = vld [vmem:[%s1 + $0x850] sm:$0xff]
    %v290 = vld [vmem:[%s1 + $0x858] sm:$0xff]
    %v291 = vld [vmem:[%s1 + $0x860] sm:$0xff]
    %v292 = vld [vmem:[%s1 + $0x868] sm:$0xff]
    %v293 = vld [vmem:[%s1 + $0x870] sm:$0xff]
    %v294 = vld [vmem:[%s1 + $0x878] sm:$0xff]
    %v295 = vld [vmem:[%s1 + $0x880] sm:$0xff]
    %v296 = vld [vmem:[%s1 + $0x888] sm:$0xff]
    %v297 = vld [vmem:[%s1 + $0x890] sm:$0xff]
    %v298 = vld [vmem:[%s1 + $0x898] sm:$0xff]
    %v299 = vld [vmem:[%s1 + $0x8a0] sm:$0xff]
    %v300 = vld [vmem:[%s1 + $0x8a8] sm:$0xff]
    %v301 = vld [vmem:[%s1 + $0x8b0] sm:$0xff]
    %v302 = vld [vmem:[%s1 + $0x8b8] sm:$0xff]
    %v303 = vld [vmem:[%s1 + $0x8c0] sm:$0xff]
    %v304 = vld [vmem:[%s1 + $0x8c8] sm:$0xff]
    %v305 = vld [vmem:[%s1 + $0x8d0] sm:$0xff]
    %v306 = vld [vmem:[%s1 + $0x8d8] sm:$0xff]
    %v307 = vld [vmem:[%s1 + $0x8e0] sm:$0xff]
    %v308 = vld [vmem:[%s1 + $0x8e8] sm:$0xff]
    %v309 = vld [vmem:[%s1 + $0x8f0] sm:$0xff]
    %v310 = vld [vmem:[%s1 + $0x8f8] sm:$0xff]
    %v311 = vld [vmem:[%s1 + $0x900] sm:$0xff]
    %v312 = vld [vmem:[%s1 + $0x908] sm:$0xff]
    %v313 = vld [vmem:[%s1 + $0x910] sm:$0xff]
    %v314 = vld [vmem:[%s1 + $0x918] sm:$0xff]
    %v315 = vld [vmem:[%s1 + $0x920] sm:$0xff]
    %v316 = vld [vmem:[%s1 + $0x928] sm:$0xff]
    %v317 = vld [vmem:[%s1 + $0x930] sm:$0xff]
    %v318 = vld [vmem:[%s1 + $0x938] sm:$0xff]
    %v319 = vld [vmem:[%s1 + $0x940] sm:$0xff]
    %v320 = vld [vmem:[%s1 + $0x948] sm:$0xff]
    %v321 = vld [vmem:[%s1 + $0x950] sm:$0xff]
    %v322 = vld [vmem:[%s1 + $0x958] sm:$0xff]
    %v323 = vld [vmem:[%s1 + $0x960] sm:$0xff]
    %v324 = vld [vmem:[%s1 + $0x968] sm:$0xff]
    %v325 = vld [vmem:[%s1 + $0x970] sm:$0xff]
    %v326 = vld [vmem:[%s1 + $0x978] sm:$0xff]
    %v327 = vld [vmem:[%s1 + $0x980] sm:$0xff]
    %v328 = vld [vmem:[%s1 + $0x988] sm:$0xff]
    %v329 = vld [vmem:[%s1 + $0x990] sm:$0xff]
    %v330 = vld [vmem:[%s1 + $0x998] sm:$0xff]
    %v331 = vld [vmem:[%s1 + $0x9a0] sm:$0xff]
    %v332 = vld [vmem:[%s1 + $0x9a8] sm:$0xff]
    %v333 = vld [vmem:[%s1 + $0x9b0] sm:$0xff]
    %v334 = vld [vmem:[%s1 + $0x9b8] sm:$0xff]
    %v335 = vld [vmem:[%s1 + $0x9c0] sm:$0xff]
    %v336 = vld [vmem:[%s1 + $0x9c8] sm:$0xff]
    %v337 = vld [vmem:[%s1 + $0x9d0] sm:$0xff]
    %v338 = vld [vmem:[%s1 + $0x9d8] sm:$0xff]
    %v339 = vld [vmem:[%s1 + $0x9e0] sm:$0xff]
    %v340 = vld [vmem:[%s1 + $0x9e8] sm:$0xff]
    %v341 = vld [vmem:[%s1 + $0x9f0] sm:$0xff]
    %v342 = vld [vmem:[%s1 + $0x9f8] sm:$0xff]
    %v343 = vld [vmem:[%s1 + $0xa00] sm:$0xff]
    %v344 = vld [vmem:[%s1 + $0xa08] sm:$0xff]
    %v345 = vld [vmem:[%s1 + $0xa10] sm:$0xff]
    %v346 = vld [vmem:[%s1 + $0xa18] sm:$0xff]
    %v347 = vld [vmem:[%s1 + $0xa20] sm:$0xff]
    %v348 = vld [vmem:[%s1 + $0xa28] sm:$0xff]
    %v349 = vld [vmem:[%s1 + $0xa30] sm:$0xff]
    %v350 = vld [vmem:[%s1 + $0xa38] sm:$0xff]
    %v351 = vld [vmem:[%s1 + $0xa40] sm:$0xff]
    %v352 = vld [vmem:[%s1 + $0xa48] sm:$0xff]
    %v353 = vld [vmem:[%s1 + $0xa50] sm:$0xff]
    %v354 = vld [vmem:[%s1 + $0xa58] sm:$0xff]
    %v355 = vld [vmem:[%s1 + $0xa60] sm:$0xff]
    %v356 = vld [vmem:[%s1 + $0xa68] sm:$0xff]
    %v357 = vld [vmem:[%s1 + $0xa70] sm:$0xff]
    %v358 = vld [vmem:[%s1 + $0xa78] sm:$0xff]
    %v359 = vld [vmem:[%s1 + $0xa80] sm:$0xff]
    %v360 = vld [vmem:[%s1 + $0xa88] sm:$0xff]
    %v361 = vld [vmem:[%s1 + $0xa90] sm:$0xff]
    %v362 = vld [vmem:[%s1 + $0xa98] sm:$0xff]
    %v363 = vld [vmem:[%s1 + $0xaa0] sm:$0xff]
    %v364 = vld [vmem:[%s1 + $0xaa8] sm:$0xff]
    %v365 = vld [vmem:[%s1 + $0xab0] sm:$0xff]
    %v366 = vld [vmem:[%s1 + $0xab8] sm:$0xff]
    %v367 = vld [vmem:[%s1 + $0xac0] sm:$0xff]
    %v368 = vld [vmem:[%s1 + $0xac8] sm:$0xff]
    %v369 = vld [vmem:[%s1 + $0xad0] sm:$0xff]
    %v370 = vld [vmem:[%s1 + $0xad8] sm:$0xff]
    %v371 = vld [vmem:[%s1 + $0xae0] sm:$0xff]
    %v372 = vld [vmem:[%s1 + $0xae8] sm:$0xff]
    %v373 = vld [vmem:[%s1 + $0xaf0] sm:$0xff]
    %v374 = vld [vmem:[%s1 + $0xaf8] sm:$0xff]
    %v375 = vld [vmem:[%s1 + $0xb00] sm:$0xff]
    %v376 = vld [vmem:[%s1 + $0xb08] sm:$0xff]
    %v377 = vld [vmem:[%s1 + $0xb10] sm:$0xff]
    %v378 = vld [vmem:[%s1 + $0xb18] sm:$0xff]
    %v379 = vld [vmem:[%s1 + $0xb20] sm:$0xff]
    %v380 = vld [vmem:[%s1 + $0xb28] sm:$0xff]
    %v381 = vld [vmem:[%s1 + $0xb30] sm:$0xff]
    %v382 = vld [vmem:[%s1 + $0xb38] sm:$0xff]
    %v383 = vld [vmem:[%s1 + $0xb40] sm:$0xff]
    %v384 = vld [vmem:[%s1 + $0xb48] sm:$0xff]
    %v385 = vld [vmem:[%s1 + $0xb50] sm:$0xff]
    %v386 = vld [vmem:[%s1 + $0xb58] sm:$0xff]
    %v387 = vld [vmem:[%s1 + $0xb60] sm:$0xff]
    %v388 = vld [vmem:[%s1 + $0xb68] sm:$0xff]
    %v389 = vld [vmem:[%s1 + $0xb70] sm:$0xff]
    %v390 = vld [vmem:[%s1 + $0xb78] sm:$0xff]
    %v391 = vld [vmem:[%s1 + $0xb80] sm:$0xff]
    %v392 = vld [vmem:[%s1 + $0xb88] sm:$0xff]
    %v393 = vld [vmem:[%s1 + $0xb90] sm:$0xff]
    %v394 = vld [vmem:[%s1 + $0xb98] sm:$0xff]
    %v395 = vld [vmem:[%s1 + $0xba0] sm:$0xff]
    %v396 = vld [vmem:[%s1 + $0xba8] sm:$0xff]
    %v397 = vld [vmem:[%s1 + $0xbb0] sm:$0xff]
    %v398 = vld [vmem:[%s1 + $0xbb8] sm:$0xff]
    %v399 = vld [vmem:[%s1 + $0xbc0] sm:$0xff]
    %v400 = vld [vmem:[%s1 + $0xbc8] sm:$0xff]
    %v401 = vld [vmem:[%s1 + $0xbd0] sm:$0xff]
    %v402 = vld [vmem:[%s1 + $0xbd8] sm:$0xff]
    %v403 = vld [vmem:[%s1 + $0xbe0] sm:$0xff]
    %v404 = vld [vmem:[%s1 + $0xbe8] sm:$0xff]
    %v405 = vld [vmem:[%s1 + $0xbf0] sm:$0xff]
    %v406 = vld [vmem:[%s1 + $0xbf8] sm:$0xff]
    %v407 = vld [vmem:[%s1 + $0xc00] sm:$0xff]
    %v408 = vld [vmem:[%s1 + $0xc08] sm:$0xff]
    %v409 = vld [vmem:[%s1 + $0xc10] sm:$0xff]
    %v410 = vld [vmem:[%s1 + $0xc18] sm:$0xff]
    %v411 = vld [vmem:[%s1 + $0xc20] sm:$0xff]
    %v412 = vld [vmem:[%s1 + $0xc28] sm:$0xff]
    %v413 = vld [vmem:[%s1 + $0xc30] sm:$0xff]
    %v414 = vld [vmem:[%s1 + $0xc38] sm:$0xff]
    %v415 = vld [vmem:[%s1 + $0xc40] sm:$0xff]
    %v416 = vld [vmem:[%s1 + $0xc48] sm:$0xff]
    %v417 = vld [vmem:[%s1 + $0xc50] sm:$0xff]
    %v418 = vld [vmem:[%s1 + $0xc58] sm:$0xff]
    %v419 = vld [vmem:[%s1 + $0xc60] sm:$0xff]
    %v420 = vld [vmem:[%s1 + $0xc68] sm:$0xff]
    %v421 = vld [vmem:[%s1 + $0xc70] sm:$0xff]
    %v422 = vld [vmem:[%s1 + $0xc78] sm:$0xff]
    %v423 = vld [vmem:[%s1 + $0xc80] sm:$0xff]
    %v424 = vld [vmem:[%s1 + $0xc88] sm:$0xff]
    %v425 = vld [vmem:[%s1 + $0xc90] sm:$0xff]
    %v426 = vld [vmem:[%s1 + $0xc98] sm:$0xff]
    %v427 = vld [vmem:[%s1 + $0xca0] sm:$0xff]
    %v428 = vld [vmem:[%s1 + $0xca8] sm:$0xff]
    %v429 = vld [vmem:[%s1 + $0xcb0] sm:$0xff]
    %v430 = vld [vmem:[%s1 + $0xcb8] sm:$0xff]
    %v431 = vld [vmem:[%s1 + $0xcc0] sm:$0xff]
    %v432 = vld [vmem:[%s1 + $0xcc8] sm:$0xff]
    %v433 = vld [vmem:[%s1 + $0xcd0] sm:$0xff]
    %v434 = vld [vmem:[%s1 + $0xcd8] sm:$0xff]
    %v435 = vld [vmem:[%s1 + $0xce0] sm:$0xff]
    %v436 = vld [vmem:[%s1 + $0xce8] sm:$0xff]
    %v437 = vld [vmem:[%s1 + $0xcf0] sm:$0xff]
    %v438 = vld [vmem:[%s1 + $0xcf8] sm:$0xff]
    %v439 = vld [vmem:[%s1 + $0xd00] sm:$0xff]
    %v440 = vld [vmem:[%s1 + $0xd08] sm:$0xff]
    %v441 = vld [vmem:[%s1 + $0xd10] sm:$0xff]
    %v442 = vld [vmem:[%s1 + $0xd18] sm:$0xff]
    %v443 = vld [vmem:[%s1 + $0xd20] sm:$0xff]
    %v444 = vld [vmem:[%s1 + $0xd28] sm:$0xff]
    %v445 = vld [vmem:[%s1 + $0xd30] sm:$0xff]
    %v446 = vld [vmem:[%s1 + $0xd38] sm:$0xff]
    %v447 = vld [vmem:[%s1 + $0xd40] sm:$0xff]
    %v448 = vld [vmem:[%s1 + $0xd48] sm:$0xff]
    %v449 = vld [vmem:[%s1 + $0xd50] sm:$0xff]
    %v450 = vld [vmem:[%s1 + $0xd58] sm:$0xff]
    %v451 = vld [vmem:[%s1 + $0xd60] sm:$0xff]
    %v452 = vld [vmem:[%s1 + $0xd68] sm:$0xff]
    %v453 = vld [vmem:[%s1 + $0xd70] sm:$0xff]
    %v454 = vld [vmem:[%s1 + $0xd78] sm:$0xff]
    %v455 = vld [vmem:[%s1 + $0xd80] sm:$0xff]
    %v456 = vld [vmem:[%s1 + $0xd88] sm:$0xff]
    %v457 = vld [vmem:[%s1 + $0xd90] sm:$0xff]
    %v458 = vld [vmem:[%s1 + $0xd98] sm:$0xff]
    %v459 = vld [vmem:[%s1 + $0xda0] sm:$0xff]
    %v460 = vld [vmem:[%s1 + $0xda8] sm:$0xff]
    %v461 = vld [vmem:[%s1 + $0xdb0] sm:$0xff]
    %v462 = vld [vmem:[%s1 + $0xdb8] sm:$0xff]
    %v463 = vld [vmem:[%s1 + $0xdc0] sm:$0xff]
    %v464 = vld [vmem:[%s1 + $0xdc8] sm:$0xff]
    %v465 = vld [vmem:[%s1 + $0xdd0] sm:$0xff]
    %v466 = vld [vmem:[%s1 + $0xdd8] sm:$0xff]
    %v467 = vld [vmem:[%s1 + $0xde0] sm:$0xff]
    %v468 = vld [vmem:[%s1 + $0xde8] sm:$0xff]
    %v469 = vld [vmem:[%s1 + $0xdf0] sm:$0xff]
    %v470 = vld [vmem:[%s1 + $0xdf8] sm:$0xff]
    %v471 = vld [vmem:[%s2] sm:$0xf]
    %v473 = vperm.slane %v471, 0
    %v474 = vperm.slane %v471, 1
    %v475 = vperm.slane %v471, 2
    %v476 = vperm.slane %v471, 3
    %482 = vst [vmem:[#allocation1] ss:$9 sm:$0xff] %v21
    %v483 = vld [vmem:[#allocation1] sm:$0xff]
    %v484 = vld [vmem:[#allocation1 + $0x9] sm:$0xff]
    %v485 = vld [vmem:[#allocation1 + $0x12] sm:$0xff]
    %v486 = vld [vmem:[#allocation1 + $0x1b] sm:$0xff]
    %v487 = vld [vmem:[#allocation1 + $0x24] sm:$0xff]
    %v488 = vld [vmem:[#allocation1 + $0x2d] sm:$0xff]
    %v489 = vld [vmem:[#allocation1 + $0x36] sm:$0xff]
    %v490 = vld [vmem:[#allocation1 + $0x3f] sm:$0xff]
    %492 = vst [vmem:[#allocation1] ss:$9 sm:$0xff] %v22
    %v493 = vld [vmem:[#allocation1] sm:$0xff]
    %v494 = vld [vmem:[#allocation1 + $0x9] sm:$0xff]
    %v495 = vld [vmem:[#allocation1 + $0x12] sm:$0xff]
    %v496 = vld [vmem:[#allocation1 + $0x1b] sm:$0xff]
    %v497 = vld [vmem:[#allocation1 + $0x24] sm:$0xff]
    %v498 = vld [vmem:[#allocation1 + $0x2d] sm:$0xff]
    %v961 = vunpack.c.l.b16 %v23
    %v962 = vunpack.c.h.b16 %v23
    %v963 = vunpack.c.l.b16 %v24
    %v964 = vunpack.c.h.b16 %v24
    %v965 = vunpack.c.l.b16 %v25
    %v966 = vunpack.c.h.b16 %v25
    %v967 = vunpack.c.l.b16 %v26
    %v968 = vunpack.c.h.b16 %v26
    %v969 = vunpack.c.l.b16 %v27
    %v970 = vunpack.c.h.b16 %v27
    %v971 = vunpack.c.l.b16 %v28
    %v972 = vunpack.c.h.b16 %v28
    %v973 = vunpack.c.l.b16 %v29
    %v974 = vunpack.c.h.b16 %v29
    %v975 = vunpack.c.l.b16 %v30
    %v976 = vunpack.c.h.b16 %v30
    %v977 = vunpack.c.l.b16 %v31
    %v978 = vunpack.c.h.b16 %v31
    %v979 = vunpack.c.l.b16 %v32
    %v980 = vunpack.c.h.b16 %v32
    %v981 = vunpack.c.l.b16 %v33
    %v982 = vunpack.c.h.b16 %v33
    %v983 = vunpack.c.l.b16 %v34
    %v984 = vunpack.c.h.b16 %v34
    %v985 = vunpack.c.l.b16 %v35
    %v986 = vunpack.c.h.b16 %v35
    %v987 = vunpack.c.l.b16 %v36
    %v988 = vunpack.c.h.b16 %v36
    %v989 = vunpack.c.l.b16 %v37
    %v990 = vunpack.c.h.b16 %v37
    %v991 = vunpack.c.l.b16 %v38
    %v992 = vunpack.c.h.b16 %v38
    %v993 = vunpack.c.l.b16 %v39
    %v994 = vunpack.c.h.b16 %v39
    %v995 = vunpack.c.l.b16 %v40
    %v996 = vunpack.c.h.b16 %v40
    %v997 = vunpack.c.l.b16 %v41
    %v998 = vunpack.c.h.b16 %v41
    %v999 = vunpack.c.l.b16 %v42
    %v1000 = vunpack.c.h.b16 %v42
    %v1001 = vunpack.c.l.b16 %v43
    %v1002 = vunpack.c.h.b16 %v43
    %v1003 = vunpack.c.l.b16 %v44
    %v1004 = vunpack.c.h.b16 %v44
    %v1005 = vunpack.c.l.b16 %v45
    %v1006 = vunpack.c.h.b16 %v45
    %v1007 = vunpack.c.l.b16 %v46
    %v1008 = vunpack.c.h.b16 %v46
    %v1009 = vunpack.c.l.b16 %v47
    %v1010 = vunpack.c.h.b16 %v47
    %v1011 = vunpack.c.l.b16 %v48
    %v1012 = vunpack.c.h.b16 %v48
    %v1013 = vunpack.c.l.b16 %v49
    %v1014 = vunpack.c.h.b16 %v49
    %v1015 = vunpack.c.l.b16 %v50
    %v1016 = vunpack.c.h.b16 %v50
    %v1017 = vunpack.c.l.b16 %v51
    %v1018 = vunpack.c.h.b16 %v51
    %v1019 = vunpack.c.l.b16 %v52
    %v1020 = vunpack.c.h.b16 %v52
    %v1021 = vunpack.c.l.b16 %v53
    %v1022 = vunpack.c.h.b16 %v53
    %v1023 = vunpack.c.l.b16 %v54
    %v1024 = vunpack.c.h.b16 %v54
    %v1025 = vunpack.c.l.b16 %v55
    %v1026 = vunpack.c.h.b16 %v55
    %v1027 = vunpack.c.l.b16 %v56
    %v1028 = vunpack.c.h.b16 %v56
    %v1029 = vunpack.c.l.b16 %v57
    %v1030 = vunpack.c.h.b16 %v57
    %v1031 = vunpack.c.l.b16 %v58
    %v1032 = vunpack.c.h.b16 %v58
    %v1033 = vunpack.c.l.b16 %v59
    %v1034 = vunpack.c.h.b16 %v59
    %v1035 = vunpack.c.l.b16 %v60
    %v1036 = vunpack.c.h.b16 %v60
    %v1037 = vunpack.c.l.b16 %v61
    %v1038 = vunpack.c.h.b16 %v61
    %v1039 = vunpack.c.l.b16 %v62
    %v1040 = vunpack.c.h.b16 %v62
    %v1041 = vunpack.c.l.b16 %v63
    %v1042 = vunpack.c.h.b16 %v63
    %v1043 = vunpack.c.l.b16 %v64
    %v1044 = vunpack.c.h.b16 %v64
    %v1045 = vunpack.c.l.b16 %v65
    %v1046 = vunpack.c.h.b16 %v65
    %v1047 = vunpack.c.l.b16 %v66
    %v1048 = vunpack.c.h.b16 %v66
    %v1049 = vunpack.c.l.b16 %v67
    %v1050 = vunpack.c.h.b16 %v67
    %v1051 = vunpack.c.l.b16 %v68
    %v1052 = vunpack.c.h.b16 %v68
    %v1053 = vunpack.c.l.b16 %v69
    %v1054 = vunpack.c.h.b16 %v69
    %v1055 = vunpack.c.l.b16 %v70
    %v1056 = vunpack.c.h.b16 %v70
    %v1057 = vunpack.c.l.b16 %v71
    %v1058 = vunpack.c.h.b16 %v71
    %v1059 = vunpack.c.l.b16 %v72
    %v1060 = vunpack.c.h.b16 %v72
    %v1061 = vunpack.c.l.b16 %v73
    %v1062 = vunpack.c.h.b16 %v73
    %v1063 = vunpack.c.l.b16 %v74
    %v1064 = vunpack.c.h.b16 %v74
    %v1065 = vunpack.c.l.b16 %v75
    %v1066 = vunpack.c.h.b16 %v75
    %v1067 = vunpack.c.l.b16 %v76
    %v1068 = vunpack.c.h.b16 %v76
    %v1069 = vunpack.c.l.b16 %v77
    %v1070 = vunpack.c.h.b16 %v77
    %v1071 = vunpack.c.l.b16 %v78
    %v1072 = vunpack.c.h.b16 %v78
    %v1073 = vunpack.c.l.b16 %v79
    %v1074 = vunpack.c.h.b16 %v79
    %v1075 = vunpack.c.l.b16 %v80
    %v1076 = vunpack.c.h.b16 %v80
    %v1077 = vunpack.c.l.b16 %v81
    %v1078 = vunpack.c.h.b16 %v81
    %v1079 = vunpack.c.l.b16 %v82
    %v1080 = vunpack.c.h.b16 %v82
    %v1081 = vunpack.c.l.b16 %v83
    %v1082 = vunpack.c.h.b16 %v83
    %v1083 = vunpack.c.l.b16 %v84
    %v1084 = vunpack.c.h.b16 %v84
    %v1085 = vunpack.c.l.b16 %v85
    %v1086 = vunpack.c.h.b16 %v85
    %v1087 = vunpack.c.l.b16 %v86
    %v1088 = vunpack.c.h.b16 %v86
    %v1089 = vunpack.c.l.b16 %v87
    %v1090 = vunpack.c.h.b16 %v87
    %v1091 = vunpack.c.l.b16 %v88
    %v1092 = vunpack.c.h.b16 %v88
    %v1093 = vunpack.c.l.b16 %v89
    %v1094 = vunpack.c.h.b16 %v89
    %v1095 = vunpack.c.l.b16 %v90
    %v1096 = vunpack.c.h.b16 %v90
    %v1097 = vunpack.c.l.b16 %v91
    %v1098 = vunpack.c.h.b16 %v91
    %v1099 = vunpack.c.l.b16 %v92
    %v1100 = vunpack.c.h.b16 %v92
    %v1101 = vunpack.c.l.b16 %v93
    %v1102 = vunpack.c.h.b16 %v93
    %v1103 = vunpack.c.l.b16 %v94
    %v1104 = vunpack.c.h.b16 %v94
    %v1105 = vunpack.c.l.b16 %v95
    %v1106 = vunpack.c.h.b16 %v95
    %v1107 = vunpack.c.l.b16 %v96
    %v1108 = vunpack.c.h.b16 %v96
    %v1109 = vunpack.c.l.b16 %v97
    %v1110 = vunpack.c.h.b16 %v97
    %v1111 = vunpack.c.l.b16 %v98
    %v1112 = vunpack.c.h.b16 %v98
    %v1113 = vunpack.c.l.b16 %v99
    %v1114 = vunpack.c.h.b16 %v99
    %v1115 = vunpack.c.l.b16 %v100
    %v1116 = vunpack.c.h.b16 %v100
    %v1117 = vunpack.c.l.b16 %v101
    %v1118 = vunpack.c.h.b16 %v101
    %v1119 = vunpack.c.l.b16 %v102
    %v1120 = vunpack.c.h.b16 %v102
    %v1121 = vunpack.c.l.b16 %v103
    %v1122 = vunpack.c.h.b16 %v103
    %v1123 = vunpack.c.l.b16 %v104
    %v1124 = vunpack.c.h.b16 %v104
    %v1125 = vunpack.c.l.b16 %v105
    %v1126 = vunpack.c.h.b16 %v105
    %v1127 = vunpack.c.l.b16 %v106
    %v1128 = vunpack.c.h.b16 %v106
    %v1129 = vunpack.c.l.b16 %v107
    %v1130 = vunpack.c.h.b16 %v107
    %v1131 = vunpack.c.l.b16 %v108
    %v1132 = vunpack.c.h.b16 %v108
    %v1133 = vunpack.c.l.b16 %v109
    %v1134 = vunpack.c.h.b16 %v109
    %v1135 = vunpack.c.l.b16 %v110
    %v1136 = vunpack.c.h.b16 %v110
    %v1137 = vunpack.c.l.b16 %v111
    %v1138 = vunpack.c.h.b16 %v111
    %v1139 = vunpack.c.l.b16 %v112
    %v1140 = vunpack.c.h.b16 %v112
    %v1141 = vunpack.c.l.b16 %v113
    %v1142 = vunpack.c.h.b16 %v113
    %v1143 = vunpack.c.l.b16 %v114
    %v1144 = vunpack.c.h.b16 %v114
    %v1145 = vunpack.c.l.b16 %v115
    %v1146 = vunpack.c.h.b16 %v115
    %v1147 = vunpack.c.l.b16 %v116
    %v1148 = vunpack.c.h.b16 %v116
    %v1149 = vunpack.c.l.b16 %v117
    %v1150 = vunpack.c.h.b16 %v117
    %v1151 = vunpack.c.l.b16 %v118
    %v1152 = vunpack.c.h.b16 %v118
    %v1153 = vunpack.c.l.b16 %v119
    %v1154 = vunpack.c.h.b16 %v119
    %v1155 = vunpack.c.l.b16 %v120
    %v1156 = vunpack.c.h.b16 %v120
    %v1157 = vunpack.c.l.b16 %v121
    %v1158 = vunpack.c.h.b16 %v121
    %v1159 = vunpack.c.l.b16 %v122
    %v1160 = vunpack.c.h.b16 %v122
    %v1161 = vunpack.c.l.b16 %v123
    %v1162 = vunpack.c.h.b16 %v123
    %v1163 = vunpack.c.l.b16 %v124
    %v1164 = vunpack.c.h.b16 %v124
    %v1165 = vunpack.c.l.b16 %v125
    %v1166 = vunpack.c.h.b16 %v125
    %v1167 = vunpack.c.l.b16 %v126
    %v1168 = vunpack.c.h.b16 %v126
    %v1169 = vunpack.c.l.b16 %v127
    %v1170 = vunpack.c.h.b16 %v127
    %v1171 = vunpack.c.l.b16 %v128
    %v1172 = vunpack.c.h.b16 %v128
    %v1173 = vunpack.c.l.b16 %v129
    %v1174 = vunpack.c.h.b16 %v129
    %v1175 = vunpack.c.l.b16 %v130
    %v1176 = vunpack.c.h.b16 %v130
    %v1177 = vunpack.c.l.b16 %v131
    %v1178 = vunpack.c.h.b16 %v131
    %v1179 = vunpack.c.l.b16 %v132
    %v1180 = vunpack.c.h.b16 %v132
    %v1181 = vunpack.c.l.b16 %v133
    %v1182 = vunpack.c.h.b16 %v133
    %v1183 = vunpack.c.l.b16 %v134
    %v1184 = vunpack.c.h.b16 %v134
    %v1185 = vunpack.c.l.b16 %v135
    %v1186 = vunpack.c.h.b16 %v135
    %v1187 = vunpack.c.l.b16 %v136
    %v1188 = vunpack.c.h.b16 %v136
    %v1189 = vunpack.c.l.b16 %v137
    %v1190 = vunpack.c.h.b16 %v137
    %v1191 = vunpack.c.l.b16 %v138
    %v1192 = vunpack.c.h.b16 %v138
    %v1193 = vunpack.c.l.b16 %v139
    %v1194 = vunpack.c.h.b16 %v139
    %v1195 = vunpack.c.l.b16 %v140
    %v1196 = vunpack.c.h.b16 %v140
    %v1197 = vunpack.c.l.b16 %v141
    %v1198 = vunpack.c.h.b16 %v141
    %v1199 = vunpack.c.l.b16 %v142
    %v1200 = vunpack.c.h.b16 %v142
    %v1201 = vunpack.c.l.b16 %v143
    %v1202 = vunpack.c.h.b16 %v143
    %v1203 = vunpack.c.l.b16 %v144
    %v1204 = vunpack.c.h.b16 %v144
    %v1205 = vunpack.c.l.b16 %v145
    %v1206 = vunpack.c.h.b16 %v145
    %v1207 = vunpack.c.l.b16 %v146
    %v1208 = vunpack.c.h.b16 %v146
    %v1209 = vunpack.c.l.b16 %v147
    %v1210 = vunpack.c.h.b16 %v147
    %v1211 = vunpack.c.l.b16 %v148
    %v1212 = vunpack.c.h.b16 %v148
    %v1213 = vunpack.c.l.b16 %v149
    %v1214 = vunpack.c.h.b16 %v149
    %v1215 = vunpack.c.l.b16 %v150
    %v1216 = vunpack.c.h.b16 %v150
    %v1217 = vunpack.c.l.b16 %v151
    %v1218 = vunpack.c.h.b16 %v151
    %v1219 = vunpack.c.l.b16 %v152
    %v1220 = vunpack.c.h.b16 %v152
    %v1221 = vunpack.c.l.b16 %v153
    %v1222 = vunpack.c.h.b16 %v153
    %v1223 = vunpack.c.l.b16 %v154
    %v1224 = vunpack.c.h.b16 %v154
    %v1225 = vunpack.c.l.b16 %v155
    %v1226 = vunpack.c.h.b16 %v155
    %v1227 = vunpack.c.l.b16 %v156
    %v1228 = vunpack.c.h.b16 %v156
    %v1229 = vunpack.c.l.b16 %v157
    %v1230 = vunpack.c.h.b16 %v157
    %v1231 = vunpack.c.l.b16 %v158
    %v1232 = vunpack.c.h.b16 %v158
    %v1233 = vunpack.c.l.b16 %v159
    %v1234 = vunpack.c.h.b16 %v159
    %v1235 = vunpack.c.l.b16 %v160
    %v1236 = vunpack.c.h.b16 %v160
    %v1237 = vunpack.c.l.b16 %v161
    %v1238 = vunpack.c.h.b16 %v161
    %v1239 = vunpack.c.l.b16 %v162
    %v1240 = vunpack.c.h.b16 %v162
    %v1241 = vunpack.c.l.b16 %v163
    %v1242 = vunpack.c.h.b16 %v163
    %v1243 = vunpack.c.l.b16 %v164
    %v1244 = vunpack.c.h.b16 %v164
    %v1245 = vunpack.c.l.b16 %v165
    %v1246 = vunpack.c.h.b16 %v165
    %v1247 = vunpack.c.l.b16 %v166
    %v1248 = vunpack.c.h.b16 %v166
    %v1249 = vunpack.c.l.b16 %v167
    %v1250 = vunpack.c.h.b16 %v167
    %v1251 = vunpack.c.l.b16 %v168
    %v1252 = vunpack.c.h.b16 %v168
    %v1253 = vunpack.c.l.b16 %v169
    %v1254 = vunpack.c.h.b16 %v169
    %v1255 = vunpack.c.l.b16 %v170
    %v1256 = vunpack.c.h.b16 %v170
    %v1257 = vunpack.c.l.b16 %v171
    %v1258 = vunpack.c.h.b16 %v171
    %v1259 = vunpack.c.l.b16 %v172
    %v1260 = vunpack.c.h.b16 %v172
    %v1261 = vunpack.c.l.b16 %v173
    %v1262 = vunpack.c.h.b16 %v173
    %v1263 = vunpack.c.l.b16 %v174
    %v1264 = vunpack.c.h.b16 %v174
    %v1265 = vunpack.c.l.b16 %v175
    %v1266 = vunpack.c.h.b16 %v175
    %v1267 = vunpack.c.l.b16 %v176
    %v1268 = vunpack.c.h.b16 %v176
    %v1269 = vunpack.c.l.b16 %v177
    %v1270 = vunpack.c.h.b16 %v177
    %v1271 = vunpack.c.l.b16 %v178
    %v1272 = vunpack.c.h.b16 %v178
    %v1273 = vunpack.c.l.b16 %v179
    %v1274 = vunpack.c.h.b16 %v179
    %v1275 = vunpack.c.l.b16 %v180
    %v1276 = vunpack.c.h.b16 %v180
    %v1277 = vunpack.c.l.b16 %v181
    %v1278 = vunpack.c.h.b16 %v181
    %v1279 = vunpack.c.l.b16 %v182
    %v1280 = vunpack.c.h.b16 %v182
    %v1281 = vunpack.c.l.b16 %v183
    %v1282 = vunpack.c.h.b16 %v183
    %v1283 = vunpack.c.l.b16 %v184
    %v1284 = vunpack.c.h.b16 %v184
    %v1285 = vunpack.c.l.b16 %v185
    %v1286 = vunpack.c.h.b16 %v185
    %v1287 = vunpack.c.l.b16 %v186
    %v1288 = vunpack.c.h.b16 %v186
    %v1289 = vunpack.c.l.b16 %v187
    %v1290 = vunpack.c.h.b16 %v187
    %v1291 = vunpack.c.l.b16 %v188
    %v1292 = vunpack.c.h.b16 %v188
    %v1293 = vunpack.c.l.b16 %v189
    %v1294 = vunpack.c.h.b16 %v189
    %v1295 = vunpack.c.l.b16 %v190
    %v1296 = vunpack.c.h.b16 %v190
    %v1297 = vunpack.c.l.b16 %v191
    %v1298 = vunpack.c.h.b16 %v191
    %v1299 = vunpack.c.l.b16 %v192
    %v1300 = vunpack.c.h.b16 %v192
    %v1301 = vunpack.c.l.b16 %v193
    %v1302 = vunpack.c.h.b16 %v193
    %v1303 = vunpack.c.l.b16 %v194
    %v1304 = vunpack.c.h.b16 %v194
    %v1305 = vunpack.c.l.b16 %v195
    %v1306 = vunpack.c.h.b16 %v195
    %v1307 = vunpack.c.l.b16 %v196
    %v1308 = vunpack.c.h.b16 %v196
    %v1309 = vunpack.c.l.b16 %v197
    %v1310 = vunpack.c.h.b16 %v197
    %v1311 = vunpack.c.l.b16 %v198
    %v1312 = vunpack.c.h.b16 %v198
    %v1313 = vunpack.c.l.b16 %v199
    %v1314 = vunpack.c.h.b16 %v199
    %v1315 = vunpack.c.l.b16 %v200
    %v1316 = vunpack.c.h.b16 %v200
    %v1317 = vunpack.c.l.b16 %v201
    %v1318 = vunpack.c.h.b16 %v201
    %v1319 = vunpack.c.l.b16 %v202
    %v1320 = vunpack.c.h.b16 %v202
    %v1321 = vunpack.c.l.b16 %v203
    %v1322 = vunpack.c.h.b16 %v203
    %v1323 = vunpack.c.l.b16 %v204
    %v1324 = vunpack.c.h.b16 %v204
    %v1325 = vunpack.c.l.b16 %v205
    %v1326 = vunpack.c.h.b16 %v205
    %v1327 = vunpack.c.l.b16 %v206
    %v1328 = vunpack.c.h.b16 %v206
    %v1329 = vunpack.c.l.b16 %v207
    %v1330 = vunpack.c.h.b16 %v207
    %v1331 = vunpack.c.l.b16 %v208
    %v1332 = vunpack.c.h.b16 %v208
    %v1333 = vunpack.c.l.b16 %v209
    %v1334 = vunpack.c.h.b16 %v209
    %v1335 = vunpack.c.l.b16 %v210
    %v1336 = vunpack.c.h.b16 %v210
    %v1337 = vunpack.c.l.b16 %v211
    %v1338 = vunpack.c.h.b16 %v211
    %v1339 = vunpack.c.l.b16 %v212
    %v1340 = vunpack.c.h.b16 %v212
    %v1341 = vunpack.c.l.b16 %v213
    %v1342 = vunpack.c.h.b16 %v213
    %v1343 = vunpack.c.l.b16 %v214
    %v1344 = vunpack.c.h.b16 %v214
    %v1345 = vunpack.c.l.b16 %v215
    %v1346 = vunpack.c.h.b16 %v215
    %v1347 = vunpack.c.l.b16 %v216
    %v1348 = vunpack.c.h.b16 %v216
    %v1349 = vunpack.c.l.b16 %v217
    %v1350 = vunpack.c.h.b16 %v217
    %v1351 = vunpack.c.l.b16 %v218
    %v1352 = vunpack.c.h.b16 %v218
    %v1353 = vunpack.c.l.b16 %v219
    %v1354 = vunpack.c.h.b16 %v219
    %v1355 = vunpack.c.l.b16 %v220
    %v1356 = vunpack.c.h.b16 %v220
    %v1357 = vunpack.c.l.b16 %v221
    %v1358 = vunpack.c.h.b16 %v221
    %v1359 = vunpack.c.l.b16 %v222
    %v1360 = vunpack.c.h.b16 %v222
    %v1361 = vunpack.c.l.b16 %v223
    %v1362 = vunpack.c.h.b16 %v223
    %v1363 = vunpack.c.l.b16 %v224
    %v1364 = vunpack.c.h.b16 %v224
    %v1365 = vunpack.c.l.b16 %v225
    %v1366 = vunpack.c.h.b16 %v225
    %v1367 = vunpack.c.l.b16 %v226
    %v1368 = vunpack.c.h.b16 %v226
    %v1369 = vunpack.c.l.b16 %v227
    %v1370 = vunpack.c.h.b16 %v227
    %v1371 = vunpack.c.l.b16 %v228
    %v1372 = vunpack.c.h.b16 %v228
    %v1373 = vunpack.c.l.b16 %v229
    %v1374 = vunpack.c.h.b16 %v229
    %v1375 = vunpack.c.l.b16 %v230
    %v1376 = vunpack.c.h.b16 %v230
    %v1377 = vunpack.c.l.b16 %v231
    %v1378 = vunpack.c.h.b16 %v231
    %v1379 = vunpack.c.l.b16 %v232
    %v1380 = vunpack.c.h.b16 %v232
    %v1381 = vunpack.c.l.b16 %v233
    %v1382 = vunpack.c.h.b16 %v233
    %v1383 = vunpack.c.l.b16 %v234
    %v1384 = vunpack.c.h.b16 %v234
    %v1385 = vunpack.c.l.b16 %v235
    %v1386 = vunpack.c.h.b16 %v235
    %v1387 = vunpack.c.l.b16 %v236
    %v1388 = vunpack.c.h.b16 %v236
    %v1389 = vunpack.c.l.b16 %v237
    %v1390 = vunpack.c.h.b16 %v237
    %v1391 = vunpack.c.l.b16 %v238
    %v1392 = vunpack.c.h.b16 %v238
    %v1393 = vunpack.c.l.b16 %v239
    %v1394 = vunpack.c.h.b16 %v239
    %v1395 = vunpack.c.l.b16 %v240
    %v1396 = vunpack.c.h.b16 %v240
    %v1397 = vunpack.c.l.b16 %v241
    %v1398 = vunpack.c.h.b16 %v241
    %v1399 = vunpack.c.l.b16 %v242
    %v1400 = vunpack.c.h.b16 %v242
    %v1401 = vunpack.c.l.b16 %v243
    %v1402 = vunpack.c.h.b16 %v243
    %v1403 = vunpack.c.l.b16 %v244
    %v1404 = vunpack.c.h.b16 %v244
    %v1405 = vunpack.c.l.b16 %v245
    %v1406 = vunpack.c.h.b16 %v245
    %v1407 = vunpack.c.l.b16 %v246
    %v1408 = vunpack.c.h.b16 %v246
    %v1409 = vunpack.c.l.b16 %v247
    %v1410 = vunpack.c.h.b16 %v247
    %v1411 = vunpack.c.l.b16 %v248
    %v1412 = vunpack.c.h.b16 %v248
    %v1413 = vunpack.c.l.b16 %v249
    %v1414 = vunpack.c.h.b16 %v249
    %v1415 = vunpack.c.l.b16 %v250
    %v1416 = vunpack.c.h.b16 %v250
    %v1417 = vunpack.c.l.b16 %v251
    %v1418 = vunpack.c.h.b16 %v251
    %v1419 = vunpack.c.l.b16 %v252
    %v1420 = vunpack.c.h.b16 %v252
    %v1421 = vunpack.c.l.b16 %v253
    %v1422 = vunpack.c.h.b16 %v253
    %v1423 = vunpack.c.l.b16 %v254
    %v1424 = vunpack.c.h.b16 %v254
    %v1425 = vunpack.c.l.b16 %v255
    %v1426 = vunpack.c.h.b16 %v255
    %v1427 = vunpack.c.l.b16 %v256
    %v1428 = vunpack.c.h.b16 %v256
    %v1429 = vunpack.c.l.b16 %v257
    %v1430 = vunpack.c.h.b16 %v257
    %v1431 = vunpack.c.l.b16 %v258
    %v1432 = vunpack.c.h.b16 %v258
    %v1433 = vunpack.c.l.b16 %v259
    %v1434 = vunpack.c.h.b16 %v259
    %v1435 = vunpack.c.l.b16 %v260
    %v1436 = vunpack.c.h.b16 %v260
    %v1437 = vunpack.c.l.b16 %v261
    %v1438 = vunpack.c.h.b16 %v261
    %v1439 = vunpack.c.l.b16 %v262
    %v1440 = vunpack.c.h.b16 %v262
    %v1441 = vunpack.c.l.b16 %v263
    %v1442 = vunpack.c.h.b16 %v263
    %v1443 = vunpack.c.l.b16 %v264
    %v1444 = vunpack.c.h.b16 %v264
    %v1445 = vunpack.c.l.b16 %v265
    %v1446 = vunpack.c.h.b16 %v265
    %v1447 = vunpack.c.l.b16 %v266
    %v1448 = vunpack.c.h.b16 %v266
    %v1449 = vunpack.c.l.b16 %v267
    %v1450 = vunpack.c.h.b16 %v267
    %v1451 = vunpack.c.l.b16 %v268
    %v1452 = vunpack.c.h.b16 %v268
    %v1453 = vunpack.c.l.b16 %v269
    %v1454 = vunpack.c.h.b16 %v269
    %v1455 = vunpack.c.l.b16 %v270
    %v1456 = vunpack.c.h.b16 %v270
    %v1457 = vunpack.c.l.b16 %v271
    %v1458 = vunpack.c.h.b16 %v271
    %v1459 = vunpack.c.l.b16 %v272
    %v1460 = vunpack.c.h.b16 %v272
    %v1461 = vunpack.c.l.b16 %v273
    %v1462 = vunpack.c.h.b16 %v273
    %v1463 = vunpack.c.l.b16 %v274
    %v1464 = vunpack.c.h.b16 %v274
    %v1465 = vunpack.c.l.b16 %v275
    %v1466 = vunpack.c.h.b16 %v275
    %v1467 = vunpack.c.l.b16 %v276
    %v1468 = vunpack.c.h.b16 %v276
    %v1469 = vunpack.c.l.b16 %v277
    %v1470 = vunpack.c.h.b16 %v277
    %v1471 = vunpack.c.l.b16 %v278
    %v1472 = vunpack.c.h.b16 %v278
    %v1473 = vunpack.c.l.b16 %v279
    %v1474 = vunpack.c.h.b16 %v279
    %v1475 = vunpack.c.l.b16 %v280
    %v1476 = vunpack.c.h.b16 %v280
    %v1477 = vunpack.c.l.b16 %v281
    %v1478 = vunpack.c.h.b16 %v281
    %v1479 = vunpack.c.l.b16 %v282
    %v1480 = vunpack.c.h.b16 %v282
    %v1481 = vunpack.c.l.b16 %v283
    %v1482 = vunpack.c.h.b16 %v283
    %v1483 = vunpack.c.l.b16 %v284
    %v1484 = vunpack.c.h.b16 %v284
    %v1485 = vunpack.c.l.b16 %v285
    %v1486 = vunpack.c.h.b16 %v285
    %v1487 = vunpack.c.l.b16 %v286
    %v1488 = vunpack.c.h.b16 %v286
    %v1489 = vunpack.c.l.b16 %v287
    %v1490 = vunpack.c.h.b16 %v287
    %v1491 = vunpack.c.l.b16 %v288
    %v1492 = vunpack.c.h.b16 %v288
    %v1493 = vunpack.c.l.b16 %v289
    %v1494 = vunpack.c.h.b16 %v289
    %v1495 = vunpack.c.l.b16 %v290
    %v1496 = vunpack.c.h.b16 %v290
    %v1497 = vunpack.c.l.b16 %v291
    %v1498 = vunpack.c.h.b16 %v291
    %v1499 = vunpack.c.l.b16 %v292
    %v1500 = vunpack.c.h.b16 %v292
    %v1501 = vunpack.c.l.b16 %v293
    %v1502 = vunpack.c.h.b16 %v293
    %v1503 = vunpack.c.l.b16 %v294
    %v1504 = vunpack.c.h.b16 %v294
    %v1505 = vunpack.c.l.b16 %v295
    %v1506 = vunpack.c.h.b16 %v295
    %v1507 = vunpack.c.l.b16 %v296
    %v1508 = vunpack.c.h.b16 %v296
    %v1509 = vunpack.c.l.b16 %v297
    %v1510 = vunpack.c.h.b16 %v297
    %v1511 = vunpack.c.l.b16 %v298
    %v1512 = vunpack.c.h.b16 %v298
    %v1513 = vunpack.c.l.b16 %v299
    %v1514 = vunpack.c.h.b16 %v299
    %v1515 = vunpack.c.l.b16 %v300
    %v1516 = vunpack.c.h.b16 %v300
    %v1517 = vunpack.c.l.b16 %v301
    %v1518 = vunpack.c.h.b16 %v301
    %v1519 = vunpack.c.l.b16 %v302
    %v1520 = vunpack.c.h.b16 %v302
    %v1521 = vunpack.c.l.b16 %v303
    %v1522 = vunpack.c.h.b16 %v303
    %v1523 = vunpack.c.l.b16 %v304
    %v1524 = vunpack.c.h.b16 %v304
    %v1525 = vunpack.c.l.b16 %v305
    %v1526 = vunpack.c.h.b16 %v305
    %v1527 = vunpack.c.l.b16 %v306
    %v1528 = vunpack.c.h.b16 %v306
    %v1529 = vunpack.c.l.b16 %v307
    %v1530 = vunpack.c.h.b16 %v307
    %v1531 = vunpack.c.l.b16 %v308
    %v1532 = vunpack.c.h.b16 %v308
    %v1533 = vunpack.c.l.b16 %v309
    %v1534 = vunpack.c.h.b16 %v309
    %v1535 = vunpack.c.l.b16 %v310
    %v1536 = vunpack.c.h.b16 %v310
    %v1537 = vunpack.c.l.b16 %v311
    %v1538 = vunpack.c.h.b16 %v311
    %v1539 = vunpack.c.l.b16 %v312
    %v1540 = vunpack.c.h.b16 %v312
    %v1541 = vunpack.c.l.b16 %v313
    %v1542 = vunpack.c.h.b16 %v313
    %v1543 = vunpack.c.l.b16 %v314
    %v1544 = vunpack.c.h.b16 %v314
    %v1545 = vunpack.c.l.b16 %v315
    %v1546 = vunpack.c.h.b16 %v315
    %v1547 = vunpack.c.l.b16 %v316
    %v1548 = vunpack.c.h.b16 %v316
    %v1549 = vunpack.c.l.b16 %v317
    %v1550 = vunpack.c.h.b16 %v317
    %v1551 = vunpack.c.l.b16 %v318
    %v1552 = vunpack.c.h.b16 %v318
    %v1553 = vunpack.c.l.b16 %v319
    %v1554 = vunpack.c.h.b16 %v319
    %v1555 = vunpack.c.l.b16 %v320
    %v1556 = vunpack.c.h.b16 %v320
    %v1557 = vunpack.c.l.b16 %v321
    %v1558 = vunpack.c.h.b16 %v321
    %v1559 = vunpack.c.l.b16 %v322
    %v1560 = vunpack.c.h.b16 %v322
    %v1561 = vunpack.c.l.b16 %v323
    %v1562 = vunpack.c.h.b16 %v323
    %v1563 = vunpack.c.l.b16 %v324
    %v1564 = vunpack.c.h.b16 %v324
    %v1565 = vunpack.c.l.b16 %v325
    %v1566 = vunpack.c.h.b16 %v325
    %v1567 = vunpack.c.l.b16 %v326
    %v1568 = vunpack.c.h.b16 %v326
    %v1569 = vunpack.c.l.b16 %v327
    %v1570 = vunpack.c.h.b16 %v327
    %v1571 = vunpack.c.l.b16 %v328
    %v1572 = vunpack.c.h.b16 %v328
    %v1573 = vunpack.c.l.b16 %v329
    %v1574 = vunpack.c.h.b16 %v329
    %v1575 = vunpack.c.l.b16 %v330
    %v1576 = vunpack.c.h.b16 %v330
    %v1577 = vunpack.c.l.b16 %v331
    %v1578 = vunpack.c.h.b16 %v331
    %v1579 = vunpack.c.l.b16 %v332
    %v1580 = vunpack.c.h.b16 %v332
    %v1581 = vunpack.c.l.b16 %v333
    %v1582 = vunpack.c.h.b16 %v333
    %v1583 = vunpack.c.l.b16 %v334
    %v1584 = vunpack.c.h.b16 %v334
    %v1585 = vunpack.c.l.b16 %v335
    %v1586 = vunpack.c.h.b16 %v335
    %v1587 = vunpack.c.l.b16 %v336
    %v1588 = vunpack.c.h.b16 %v336
    %v1589 = vunpack.c.l.b16 %v337
    %v1590 = vunpack.c.h.b16 %v337
    %v1591 = vunpack.c.l.b16 %v338
    %v1592 = vunpack.c.h.b16 %v338
    %v1593 = vunpack.c.l.b16 %v339
    %v1594 = vunpack.c.h.b16 %v339
    %v1595 = vunpack.c.l.b16 %v340
    %v1596 = vunpack.c.h.b16 %v340
    %v1597 = vunpack.c.l.b16 %v341
    %v1598 = vunpack.c.h.b16 %v341
    %v1599 = vunpack.c.l.b16 %v342
    %v1600 = vunpack.c.h.b16 %v342
    %v1601 = vunpack.c.l.b16 %v343
    %v1602 = vunpack.c.h.b16 %v343
    %v1603 = vunpack.c.l.b16 %v344
    %v1604 = vunpack.c.h.b16 %v344
    %v1605 = vunpack.c.l.b16 %v345
    %v1606 = vunpack.c.h.b16 %v345
    %v1607 = vunpack.c.l.b16 %v346
    %v1608 = vunpack.c.h.b16 %v346
    %v1609 = vunpack.c.l.b16 %v347
    %v1610 = vunpack.c.h.b16 %v347
    %v1611 = vunpack.c.l.b16 %v348
    %v1612 = vunpack.c.h.b16 %v348
    %v1613 = vunpack.c.l.b16 %v349
    %v1614 = vunpack.c.h.b16 %v349
    %v1615 = vunpack.c.l.b16 %v350
    %v1616 = vunpack.c.h.b16 %v350
    %v1617 = vunpack.c.l.b16 %v351
    %v1618 = vunpack.c.h.b16 %v351
    %v1619 = vunpack.c.l.b16 %v352
    %v1620 = vunpack.c.h.b16 %v352
    %v1621 = vunpack.c.l.b16 %v353
    %v1622 = vunpack.c.h.b16 %v353
    %v1623 = vunpack.c.l.b16 %v354
    %v1624 = vunpack.c.h.b16 %v354
    %v1625 = vunpack.c.l.b16 %v355
    %v1626 = vunpack.c.h.b16 %v355
    %v1627 = vunpack.c.l.b16 %v356
    %v1628 = vunpack.c.h.b16 %v356
    %v1629 = vunpack.c.l.b16 %v357
    %v1630 = vunpack.c.h.b16 %v357
    %v1631 = vunpack.c.l.b16 %v358
    %v1632 = vunpack.c.h.b16 %v358
    %v1633 = vunpack.c.l.b16 %v359
    %v1634 = vunpack.c.h.b16 %v359
    %v1635 = vunpack.c.l.b16 %v360
    %v1636 = vunpack.c.h.b16 %v360
    %v1637 = vunpack.c.l.b16 %v361
    %v1638 = vunpack.c.h.b16 %v361
    %v1639 = vunpack.c.l.b16 %v362
    %v1640 = vunpack.c.h.b16 %v362
    %v1641 = vunpack.c.l.b16 %v363
    %v1642 = vunpack.c.h.b16 %v363
    %v1643 = vunpack.c.l.b16 %v364
    %v1644 = vunpack.c.h.b16 %v364
    %v1645 = vunpack.c.l.b16 %v365
    %v1646 = vunpack.c.h.b16 %v365
    %v1647 = vunpack.c.l.b16 %v366
    %v1648 = vunpack.c.h.b16 %v366
    %v1649 = vunpack.c.l.b16 %v367
    %v1650 = vunpack.c.h.b16 %v367
    %v1651 = vunpack.c.l.b16 %v368
    %v1652 = vunpack.c.h.b16 %v368
    %v1653 = vunpack.c.l.b16 %v369
    %v1654 = vunpack.c.h.b16 %v369
    %v1655 = vunpack.c.l.b16 %v370
    %v1656 = vunpack.c.h.b16 %v370
    %v1657 = vunpack.c.l.b16 %v371
    %v1658 = vunpack.c.h.b16 %v371
    %v1659 = vunpack.c.l.b16 %v372
    %v1660 = vunpack.c.h.b16 %v372
    %v1661 = vunpack.c.l.b16 %v373
    %v1662 = vunpack.c.h.b16 %v373
    %v1663 = vunpack.c.l.b16 %v374
    %v1664 = vunpack.c.h.b16 %v374
    %v1665 = vunpack.c.l.b16 %v375
    %v1666 = vunpack.c.h.b16 %v375
    %v1667 = vunpack.c.l.b16 %v376
    %v1668 = vunpack.c.h.b16 %v376
    %v1669 = vunpack.c.l.b16 %v377
    %v1670 = vunpack.c.h.b16 %v377
    %v1671 = vunpack.c.l.b16 %v378
    %v1672 = vunpack.c.h.b16 %v378
    %v1673 = vunpack.c.l.b16 %v379
    %v1674 = vunpack.c.h.b16 %v379
    %v1675 = vunpack.c.l.b16 %v380
    %v1676 = vunpack.c.h.b16 %v380
    %v1677 = vunpack.c.l.b16 %v381
    %v1678 = vunpack.c.h.b16 %v381
    %v1679 = vunpack.c.l.b16 %v382
    %v1680 = vunpack.c.h.b16 %v382
    %v1681 = vunpack.c.l.b16 %v383
    %v1682 = vunpack.c.h.b16 %v383
    %v1683 = vunpack.c.l.b16 %v384
    %v1684 = vunpack.c.h.b16 %v384
    %v1685 = vunpack.c.l.b16 %v385
    %v1686 = vunpack.c.h.b16 %v385
    %v1687 = vunpack.c.l.b16 %v386
    %v1688 = vunpack.c.h.b16 %v386
    %v1689 = vunpack.c.l.b16 %v387
    %v1690 = vunpack.c.h.b16 %v387
    %v1691 = vunpack.c.l.b16 %v388
    %v1692 = vunpack.c.h.b16 %v388
    %v1693 = vunpack.c.l.b16 %v389
    %v1694 = vunpack.c.h.b16 %v389
    %v1695 = vunpack.c.l.b16 %v390
    %v1696 = vunpack.c.h.b16 %v390
    %v1697 = vunpack.c.l.b16 %v391
    %v1698 = vunpack.c.h.b16 %v391
    %v1699 = vunpack.c.l.b16 %v392
    %v1700 = vunpack.c.h.b16 %v392
    %v1701 = vunpack.c.l.b16 %v393
    %v1702 = vunpack.c.h.b16 %v393
    %v1703 = vunpack.c.l.b16 %v394
    %v1704 = vunpack.c.h.b16 %v394
    %v1705 = vunpack.c.l.b16 %v395
    %v1706 = vunpack.c.h.b16 %v395
    %v1707 = vunpack.c.l.b16 %v396
    %v1708 = vunpack.c.h.b16 %v396
    %v1709 = vunpack.c.l.b16 %v397
    %v1710 = vunpack.c.h.b16 %v397
    %v1711 = vunpack.c.l.b16 %v398
    %v1712 = vunpack.c.h.b16 %v398
    %v1713 = vunpack.c.l.b16 %v399
    %v1714 = vunpack.c.h.b16 %v399
    %v1715 = vunpack.c.l.b16 %v400
    %v1716 = vunpack.c.h.b16 %v400
    %v1717 = vunpack.c.l.b16 %v401
    %v1718 = vunpack.c.h.b16 %v401
    %v1719 = vunpack.c.l.b16 %v402
    %v1720 = vunpack.c.h.b16 %v402
    %v1721 = vunpack.c.l.b16 %v403
    %v1722 = vunpack.c.h.b16 %v403
    %v1723 = vunpack.c.l.b16 %v404
    %v1724 = vunpack.c.h.b16 %v404
    %v1725 = vunpack.c.l.b16 %v405
    %v1726 = vunpack.c.h.b16 %v405
    %v1727 = vunpack.c.l.b16 %v406
    %v1728 = vunpack.c.h.b16 %v406
    %v1729 = vunpack.c.l.b16 %v407
    %v1730 = vunpack.c.h.b16 %v407
    %v1731 = vunpack.c.l.b16 %v408
    %v1732 = vunpack.c.h.b16 %v408
    %v1733 = vunpack.c.l.b16 %v409
    %v1734 = vunpack.c.h.b16 %v409
    %v1735 = vunpack.c.l.b16 %v410
    %v1736 = vunpack.c.h.b16 %v410
    %v1737 = vunpack.c.l.b16 %v411
    %v1738 = vunpack.c.h.b16 %v411
    %v1739 = vunpack.c.l.b16 %v412
    %v1740 = vunpack.c.h.b16 %v412
    %v1741 = vunpack.c.l.b16 %v413
    %v1742 = vunpack.c.h.b16 %v413
    %v1743 = vunpack.c.l.b16 %v414
    %v1744 = vunpack.c.h.b16 %v414
    %v1745 = vunpack.c.l.b16 %v415
    %v1746 = vunpack.c.h.b16 %v415
    %v1747 = vunpack.c.l.b16 %v416
    %v1748 = vunpack.c.h.b16 %v416
    %v1749 = vunpack.c.l.b16 %v417
    %v1750 = vunpack.c.h.b16 %v417
    %v1751 = vunpack.c.l.b16 %v418
    %v1752 = vunpack.c.h.b16 %v418
    %v1753 = vunpack.c.l.b16 %v419
    %v1754 = vunpack.c.h.b16 %v419
    %v1755 = vunpack.c.l.b16 %v420
    %v1756 = vunpack.c.h.b16 %v420
    %v1757 = vunpack.c.l.b16 %v421
    %v1758 = vunpack.c.h.b16 %v421
    %v1759 = vunpack.c.l.b16 %v422
    %v1760 = vunpack.c.h.b16 %v422
    %v1761 = vunpack.c.l.b16 %v423
    %v1762 = vunpack.c.h.b16 %v423
    %v1763 = vunpack.c.l.b16 %v424
    %v1764 = vunpack.c.h.b16 %v424
    %v1765 = vunpack.c.l.b16 %v425
    %v1766 = vunpack.c.h.b16 %v425
    %v1767 = vunpack.c.l.b16 %v426
    %v1768 = vunpack.c.h.b16 %v426
    %v1769 = vunpack.c.l.b16 %v427
    %v1770 = vunpack.c.h.b16 %v427
    %v1771 = vunpack.c.l.b16 %v428
    %v1772 = vunpack.c.h.b16 %v428
    %v1773 = vunpack.c.l.b16 %v429
    %v1774 = vunpack.c.h.b16 %v429
    %v1775 = vunpack.c.l.b16 %v430
    %v1776 = vunpack.c.h.b16 %v430
    %v1777 = vunpack.c.l.b16 %v431
    %v1778 = vunpack.c.h.b16 %v431
    %v1779 = vunpack.c.l.b16 %v432
    %v1780 = vunpack.c.h.b16 %v432
    %v1781 = vunpack.c.l.b16 %v433
    %v1782 = vunpack.c.h.b16 %v433
    %v1783 = vunpack.c.l.b16 %v434
    %v1784 = vunpack.c.h.b16 %v434
    %v1785 = vunpack.c.l.b16 %v435
    %v1786 = vunpack.c.h.b16 %v435
    %v1787 = vunpack.c.l.b16 %v436
    %v1788 = vunpack.c.h.b16 %v436
    %v1789 = vunpack.c.l.b16 %v437
    %v1790 = vunpack.c.h.b16 %v437
    %v1791 = vunpack.c.l.b16 %v438
    %v1792 = vunpack.c.h.b16 %v438
    %v1793 = vunpack.c.l.b16 %v439
    %v1794 = vunpack.c.h.b16 %v439
    %v1795 = vunpack.c.l.b16 %v440
    %v1796 = vunpack.c.h.b16 %v440
    %v1797 = vunpack.c.l.b16 %v441
    %v1798 = vunpack.c.h.b16 %v441
    %v1799 = vunpack.c.l.b16 %v442
    %v1800 = vunpack.c.h.b16 %v442
    %v1801 = vunpack.c.l.b16 %v443
    %v1802 = vunpack.c.h.b16 %v443
    %v1803 = vunpack.c.l.b16 %v444
    %v1804 = vunpack.c.h.b16 %v444
    %v1805 = vunpack.c.l.b16 %v445
    %v1806 = vunpack.c.h.b16 %v445
    %v1807 = vunpack.c.l.b16 %v446
    %v1808 = vunpack.c.h.b16 %v446
    %v1809 = vunpack.c.l.b16 %v447
    %v1810 = vunpack.c.h.b16 %v447
    %v1811 = vunpack.c.l.b16 %v448
    %v1812 = vunpack.c.h.b16 %v448
    %v1813 = vunpack.c.l.b16 %v449
    %v1814 = vunpack.c.h.b16 %v449
    %v1815 = vunpack.c.l.b16 %v450
    %v1816 = vunpack.c.h.b16 %v450
    %v1817 = vunpack.c.l.b16 %v451
    %v1818 = vunpack.c.h.b16 %v451
    %v1819 = vunpack.c.l.b16 %v452
    %v1820 = vunpack.c.h.b16 %v452
    %v1821 = vunpack.c.l.b16 %v453
    %v1822 = vunpack.c.h.b16 %v453
    %v1823 = vunpack.c.l.b16 %v454
    %v1824 = vunpack.c.h.b16 %v454
    %v1825 = vunpack.c.l.b16 %v455
    %v1826 = vunpack.c.h.b16 %v455
    %v1827 = vunpack.c.l.b16 %v456
    %v1828 = vunpack.c.h.b16 %v456
    %v1829 = vunpack.c.l.b16 %v457
    %v1830 = vunpack.c.h.b16 %v457
    %v1831 = vunpack.c.l.b16 %v458
    %v1832 = vunpack.c.h.b16 %v458
    %v1833 = vunpack.c.l.b16 %v459
    %v1834 = vunpack.c.h.b16 %v459
    %v1835 = vunpack.c.l.b16 %v460
    %v1836 = vunpack.c.h.b16 %v460
    %v1837 = vunpack.c.l.b16 %v461
    %v1838 = vunpack.c.h.b16 %v461
    %v1839 = vunpack.c.l.b16 %v462
    %v1840 = vunpack.c.h.b16 %v462
    %v1841 = vunpack.c.l.b16 %v463
    %v1842 = vunpack.c.h.b16 %v463
    %v1843 = vunpack.c.l.b16 %v464
    %v1844 = vunpack.c.h.b16 %v464
    %v1845 = vunpack.c.l.b16 %v465
    %v1846 = vunpack.c.h.b16 %v465
    %v1847 = vunpack.c.l.b16 %v466
    %v1848 = vunpack.c.h.b16 %v466
    %v1849 = vunpack.c.l.b16 %v467
    %v1850 = vunpack.c.h.b16 %v467
    %v1851 = vunpack.c.l.b16 %v468
    %v1852 = vunpack.c.h.b16 %v468
    %v1853 = vunpack.c.l.b16 %v469
    %v1854 = vunpack.c.h.b16 %v469
    %v1855 = vunpack.c.l.b16 %v470
    %v1856 = vunpack.c.h.b16 %v470
    %v1857 = vpack.c.b16 %v965, %v961
    %v1858 = vpack.c.b16 %v966, %v962
    %v1859 = vpack.c.b16 %v967, %v963
    %v1860 = vpack.c.b16 %v968, %v964
    %v1861 = vpack.c.b16 %v973, %v969
    %v1862 = vpack.c.b16 %v974, %v970
    %v1863 = vpack.c.b16 %v975, %v971
    %v1864 = vpack.c.b16 %v976, %v972
    %v1865 = vpack.c.b16 %v981, %v977
    %v1866 = vpack.c.b16 %v982, %v978
    %v1867 = vpack.c.b16 %v983, %v979
    %v1868 = vpack.c.b16 %v984, %v980
    %v1869 = vpack.c.b16 %v989, %v985
    %v1870 = vpack.c.b16 %v990, %v986
    %v1871 = vpack.c.b16 %v991, %v987
    %v1872 = vpack.c.b16 %v992, %v988
    %v1873 = vpack.c.b16 %v997, %v993
    %v1874 = vpack.c.b16 %v998, %v994
    %v1875 = vpack.c.b16 %v999, %v995
    %v1876 = vpack.c.b16 %v1000, %v996
    %v1877 = vpack.c.b16 %v1005, %v1001
    %v1878 = vpack.c.b16 %v1006, %v1002
    %v1879 = vpack.c.b16 %v1007, %v1003
    %v1880 = vpack.c.b16 %v1008, %v1004
    %v1881 = vpack.c.b16 %v1013, %v1009
    %v1882 = vpack.c.b16 %v1014, %v1010
    %v1883 = vpack.c.b16 %v1015, %v1011
    %v1884 = vpack.c.b16 %v1016, %v1012
    %v1885 = vpack.c.b16 %v1021, %v1017
    %v1886 = vpack.c.b16 %v1022, %v1018
    %v1887 = vpack.c.b16 %v1023, %v1019
    %v1888 = vpack.c.b16 %v1024, %v1020
    %v1889 = vpack.c.b16 %v1029, %v1025
    %v1890 = vpack.c.b16 %v1030, %v1026
    %v1891 = vpack.c.b16 %v1031, %v1027
    %v1892 = vpack.c.b16 %v1032, %v1028
    %v1893 = vpack.c.b16 %v1037, %v1033
    %v1894 = vpack.c.b16 %v1038, %v1034
    %v1895 = vpack.c.b16 %v1039, %v1035
    %v1896 = vpack.c.b16 %v1040, %v1036
    %v1897 = vpack.c.b16 %v1045, %v1041
    %v1898 = vpack.c.b16 %v1046, %v1042
    %v1899 = vpack.c.b16 %v1047, %v1043
    %v1900 = vpack.c.b16 %v1048, %v1044
    %v1901 = vpack.c.b16 %v1053, %v1049
    %v1902 = vpack.c.b16 %v1054, %v1050
    %v1903 = vpack.c.b16 %v1055, %v1051
    %v1904 = vpack.c.b16 %v1056, %v1052
    %v1905 = vpack.c.b16 %v1061, %v1057
    %v1906 = vpack.c.b16 %v1062, %v1058
    %v1907 = vpack.c.b16 %v1063, %v1059
    %v1908 = vpack.c.b16 %v1064, %v1060
    %v1909 = vpack.c.b16 %v1069, %v1065
    %v1910 = vpack.c.b16 %v1070, %v1066
    %v1911 = vpack.c.b16 %v1071, %v1067
    %v1912 = vpack.c.b16 %v1072, %v1068
    %v1913 = vpack.c.b16 %v1077, %v1073
    %v1914 = vpack.c.b16 %v1078, %v1074
    %v1915 = vpack.c.b16 %v1079, %v1075
    %v1916 = vpack.c.b16 %v1080, %v1076
    %v1917 = vpack.c.b16 %v1085, %v1081
    %v1918 = vpack.c.b16 %v1086, %v1082
    %v1919 = vpack.c.b16 %v1087, %v1083
    %v1920 = vpack.c.b16 %v1088, %v1084
    %v1921 = vpack.c.b16 %v1093, %v1089
    %v1922 = vpack.c.b16 %v1094, %v1090
    %v1923 = vpack.c.b16 %v1095, %v1091
    %v1924 = vpack.c.b16 %v1096, %v1092
    %v1925 = vpack.c.b16 %v1101, %v1097
    %v1926 = vpack.c.b16 %v1102, %v1098
    %v1927 = vpack.c.b16 %v1103, %v1099
    %v1928 = vpack.c.b16 %v1104, %v1100
    %v1929 = vpack.c.b16 %v1109, %v1105
    %v1930 = vpack.c.b16 %v1110, %v1106
    %v1931 = vpack.c.b16 %v1111, %v1107
    %v1932 = vpack.c.b16 %v1112, %v1108
    %v1933 = vpack.c.b16 %v1117, %v1113
    %v1934 = vpack.c.b16 %v1118, %v1114
    %v1935 = vpack.c.b16 %v1119, %v1115
    %v1936 = vpack.c.b16 %v1120, %v1116
    %v1937 = vpack.c.b16 %v1125, %v1121
    %v1938 = vpack.c.b16 %v1126, %v1122
    %v1939 = vpack.c.b16 %v1127, %v1123
    %v1940 = vpack.c.b16 %v1128, %v1124
    %v1941 = vpack.c.b16 %v1133, %v1129
    %v1942 = vpack.c.b16 %v1134, %v1130
    %v1943 = vpack.c.b16 %v1135, %v1131
    %v1944 = vpack.c.b16 %v1136, %v1132
    %v1945 = vpack.c.b16 %v1141, %v1137
    %v1946 = vpack.c.b16 %v1142, %v1138
    %v1947 = vpack.c.b16 %v1143, %v1139
    %v1948 = vpack.c.b16 %v1144, %v1140
    %v1949 = vpack.c.b16 %v1149, %v1145
    %v1950 = vpack.c.b16 %v1150, %v1146
    %v1951 = vpack.c.b16 %v1151, %v1147
    %v1952 = vpack.c.b16 %v1152, %v1148
    %v1953 = vpack.c.b16 %v1157, %v1153
    %v1954 = vpack.c.b16 %v1158, %v1154
    %v1955 = vpack.c.b16 %v1159, %v1155
    %v1956 = vpack.c.b16 %v1160, %v1156
    %v1957 = vpack.c.b16 %v1165, %v1161
    %v1958 = vpack.c.b16 %v1166, %v1162
    %v1959 = vpack.c.b16 %v1167, %v1163
    %v1960 = vpack.c.b16 %v1168, %v1164
    %v1961 = vpack.c.b16 %v1173, %v1169
    %v1962 = vpack.c.b16 %v1174, %v1170
    %v1963 = vpack.c.b16 %v1175, %v1171
    %v1964 = vpack.c.b16 %v1176, %v1172
    %v1965 = vpack.c.b16 %v1181, %v1177
    %v1966 = vpack.c.b16 %v1182, %v1178
    %v1967 = vpack.c.b16 %v1183, %v1179
    %v1968 = vpack.c.b16 %v1184, %v1180
    %v1969 = vpack.c.b16 %v1189, %v1185
    %v1970 = vpack.c.b16 %v1190, %v1186
    %v1971 = vpack.c.b16 %v1191, %v1187
    %v1972 = vpack.c.b16 %v1192, %v1188
    %v1973 = vpack.c.b16 %v1197, %v1193
    %v1974 = vpack.c.b16 %v1198, %v1194
    %v1975 = vpack.c.b16 %v1199, %v1195
    %v1976 = vpack.c.b16 %v1200, %v1196
    %v1977 = vpack.c.b16 %v1205, %v1201
    %v1978 = vpack.c.b16 %v1206, %v1202
    %v1979 = vpack.c.b16 %v1207, %v1203
    %v1980 = vpack.c.b16 %v1208, %v1204
    %v1981 = vpack.c.b16 %v1213, %v1209
    %v1982 = vpack.c.b16 %v1214, %v1210
    %v1983 = vpack.c.b16 %v1215, %v1211
    %v1984 = vpack.c.b16 %v1216, %v1212
    %v1985 = vpack.c.b16 %v1221, %v1217
    %v1986 = vpack.c.b16 %v1222, %v1218
    %v1987 = vpack.c.b16 %v1223, %v1219
    %v1988 = vpack.c.b16 %v1224, %v1220
    %v1989 = vpack.c.b16 %v1229, %v1225
    %v1990 = vpack.c.b16 %v1230, %v1226
    %v1991 = vpack.c.b16 %v1231, %v1227
    %v1992 = vpack.c.b16 %v1232, %v1228
    %v1993 = vpack.c.b16 %v1237, %v1233
    %v1994 = vpack.c.b16 %v1238, %v1234
    %v1995 = vpack.c.b16 %v1239, %v1235
    %v1996 = vpack.c.b16 %v1240, %v1236
    %v1997 = vpack.c.b16 %v1245, %v1241
    %v1998 = vpack.c.b16 %v1246, %v1242
    %v1999 = vpack.c.b16 %v1247, %v1243
    %v2000 = vpack.c.b16 %v1248, %v1244
    %v2001 = vpack.c.b16 %v1253, %v1249
    %v2002 = vpack.c.b16 %v1254, %v1250
    %v2003 = vpack.c.b16 %v1255, %v1251
    %v2004 = vpack.c.b16 %v1256, %v1252
    %v2005 = vpack.c.b16 %v1261, %v1257
    %v2006 = vpack.c.b16 %v1262, %v1258
    %v2007 = vpack.c.b16 %v1263, %v1259
    %v2008 = vpack.c.b16 %v1264, %v1260
    %v2009 = vpack.c.b16 %v1269, %v1265
    %v2010 = vpack.c.b16 %v1270, %v1266
    %v2011 = vpack.c.b16 %v1271, %v1267
    %v2012 = vpack.c.b16 %v1272, %v1268
    %v2013 = vpack.c.b16 %v1277, %v1273
    %v2014 = vpack.c.b16 %v1278, %v1274
    %v2015 = vpack.c.b16 %v1279, %v1275
    %v2016 = vpack.c.b16 %v1280, %v1276
    %v2017 = vpack.c.b16 %v1285, %v1281
    %v2018 = vpack.c.b16 %v1286, %v1282
    %v2019 = vpack.c.b16 %v1287, %v1283
    %v2020 = vpack.c.b16 %v1288, %v1284
    %v2021 = vpack.c.b16 %v1293, %v1289
    %v2022 = vpack.c.b16 %v1294, %v1290
    %v2023 = vpack.c.b16 %v1295, %v1291
    %v2024 = vpack.c.b16 %v1296, %v1292
    %v2025 = vpack.c.b16 %v1301, %v1297
    %v2026 = vpack.c.b16 %v1302, %v1298
    %v2027 = vpack.c.b16 %v1303, %v1299
    %v2028 = vpack.c.b16 %v1304, %v1300
    %v2029 = vpack.c.b16 %v1309, %v1305
    %v2030 = vpack.c.b16 %v1310, %v1306
    %v2031 = vpack.c.b16 %v1311, %v1307
    %v2032 = vpack.c.b16 %v1312, %v1308
    %v2033 = vpack.c.b16 %v1317, %v1313
    %v2034 = vpack.c.b16 %v1318, %v1314
    %v2035 = vpack.c.b16 %v1319, %v1315
    %v2036 = vpack.c.b16 %v1320, %v1316
    %v2037 = vpack.c.b16 %v1325, %v1321
    %v2038 = vpack.c.b16 %v1326, %v1322
    %v2039 = vpack.c.b16 %v1327, %v1323
    %v2040 = vpack.c.b16 %v1328, %v1324
    %v2041 = vpack.c.b16 %v1333, %v1329
    %v2042 = vpack.c.b16 %v1334, %v1330
    %v2043 = vpack.c.b16 %v1335, %v1331
    %v2044 = vpack.c.b16 %v1336, %v1332
    %v2045 = vpack.c.b16 %v1341, %v1337
    %v2046 = vpack.c.b16 %v1342, %v1338
    %v2047 = vpack.c.b16 %v1343, %v1339
    %v2048 = vpack.c.b16 %v1344, %v1340
    %v2049 = vpack.c.b16 %v1349, %v1345
    %v2050 = vpack.c.b16 %v1350, %v1346
    %v2051 = vpack.c.b16 %v1351, %v1347
    %v2052 = vpack.c.b16 %v1352, %v1348
    %v2053 = vpack.c.b16 %v1357, %v1353
    %v2054 = vpack.c.b16 %v1358, %v1354
    %v2055 = vpack.c.b16 %v1359, %v1355
    %v2056 = vpack.c.b16 %v1360, %v1356
    %v2057 = vpack.c.b16 %v1365, %v1361
    %v2058 = vpack.c.b16 %v1366, %v1362
    %v2059 = vpack.c.b16 %v1367, %v1363
    %v2060 = vpack.c.b16 %v1368, %v1364
    %v2061 = vpack.c.b16 %v1373, %v1369
    %v2062 = vpack.c.b16 %v1374, %v1370
    %v2063 = vpack.c.b16 %v1375, %v1371
    %v2064 = vpack.c.b16 %v1376, %v1372
    %v2065 = vpack.c.b16 %v1381, %v1377
    %v2066 = vpack.c.b16 %v1382, %v1378
    %v2067 = vpack.c.b16 %v1383, %v1379
    %v2068 = vpack.c.b16 %v1384, %v1380
    %v2069 = vpack.c.b16 %v1389, %v1385
    %v2070 = vpack.c.b16 %v1390, %v1386
    %v2071 = vpack.c.b16 %v1391, %v1387
    %v2072 = vpack.c.b16 %v1392, %v1388
    %v2073 = vpack.c.b16 %v1397, %v1393
    %v2074 = vpack.c.b16 %v1398, %v1394
    %v2075 = vpack.c.b16 %v1399, %v1395
    %v2076 = vpack.c.b16 %v1400, %v1396
    %v2077 = vpack.c.b16 %v1405, %v1401
    %v2078 = vpack.c.b16 %v1406, %v1402
    %v2079 = vpack.c.b16 %v1407, %v1403
    %v2080 = vpack.c.b16 %v1408, %v1404
    %v2081 = vpack.c.b16 %v1413, %v1409
    %v2082 = vpack.c.b16 %v1414, %v1410
    %v2083 = vpack.c.b16 %v1415, %v1411
    %v2084 = vpack.c.b16 %v1416, %v1412
    %v2085 = vpack.c.b16 %v1421, %v1417
    %v2086 = vpack.c.b16 %v1422, %v1418
    %v2087 = vpack.c.b16 %v1423, %v1419
    %v2088 = vpack.c.b16 %v1424, %v1420
    %v2089 = vpack.c.b16 %v1429, %v1425
    %v2090 = vpack.c.b16 %v1430, %v1426
    %v2091 = vpack.c.b16 %v1431, %v1427
    %v2092 = vpack.c.b16 %v1432, %v1428
    %v2093 = vpack.c.b16 %v1437, %v1433
    %v2094 = vpack.c.b16 %v1438, %v1434
    %v2095 = vpack.c.b16 %v1439, %v1435
    %v2096 = vpack.c.b16 %v1440, %v1436
    %v2097 = vpack.c.b16 %v1445, %v1441
    %v2098 = vpack.c.b16 %v1446, %v1442
    %v2099 = vpack.c.b16 %v1447, %v1443
    %v2100 = vpack.c.b16 %v1448, %v1444
    %v2101 = vpack.c.b16 %v1453, %v1449
    %v2102 = vpack.c.b16 %v1454, %v1450
    %v2103 = vpack.c.b16 %v1455, %v1451
    %v2104 = vpack.c.b16 %v1456, %v1452
    %v2105 = vpack.c.b16 %v1461, %v1457
    %v2106 = vpack.c.b16 %v1462, %v1458
    %v2107 = vpack.c.b16 %v1463, %v1459
    %v2108 = vpack.c.b16 %v1464, %v1460
    %v2109 = vpack.c.b16 %v1469, %v1465
    %v2110 = vpack.c.b16 %v1470, %v1466
    %v2111 = vpack.c.b16 %v1471, %v1467
    %v2112 = vpack.c.b16 %v1472, %v1468
    %v2113 = vpack.c.b16 %v1477, %v1473
    %v2114 = vpack.c.b16 %v1478, %v1474
    %v2115 = vpack.c.b16 %v1479, %v1475
    %v2116 = vpack.c.b16 %v1480, %v1476
    %v2117 = vpack.c.b16 %v1485, %v1481
    %v2118 = vpack.c.b16 %v1486, %v1482
    %v2119 = vpack.c.b16 %v1487, %v1483
    %v2120 = vpack.c.b16 %v1488, %v1484
    %v2121 = vpack.c.b16 %v1493, %v1489
    %v2122 = vpack.c.b16 %v1494, %v1490
    %v2123 = vpack.c.b16 %v1495, %v1491
    %v2124 = vpack.c.b16 %v1496, %v1492
    %v2125 = vpack.c.b16 %v1501, %v1497
    %v2126 = vpack.c.b16 %v1502, %v1498
    %v2127 = vpack.c.b16 %v1503, %v1499
    %v2128 = vpack.c.b16 %v1504, %v1500
    %v2129 = vpack.c.b16 %v1509, %v1505
    %v2130 = vpack.c.b16 %v1510, %v1506
    %v2131 = vpack.c.b16 %v1511, %v1507
    %v2132 = vpack.c.b16 %v1512, %v1508
    %v2133 = vpack.c.b16 %v1517, %v1513
    %v2134 = vpack.c.b16 %v1518, %v1514
    %v2135 = vpack.c.b16 %v1519, %v1515
    %v2136 = vpack.c.b16 %v1520, %v1516
    %v2137 = vpack.c.b16 %v1525, %v1521
    %v2138 = vpack.c.b16 %v1526, %v1522
    %v2139 = vpack.c.b16 %v1527, %v1523
    %v2140 = vpack.c.b16 %v1528, %v1524
    %v2141 = vpack.c.b16 %v1533, %v1529
    %v2142 = vpack.c.b16 %v1534, %v1530
    %v2143 = vpack.c.b16 %v1535, %v1531
    %v2144 = vpack.c.b16 %v1536, %v1532
    %v2145 = vpack.c.b16 %v1541, %v1537
    %v2146 = vpack.c.b16 %v1542, %v1538
    %v2147 = vpack.c.b16 %v1543, %v1539
    %v2148 = vpack.c.b16 %v1544, %v1540
    %v2149 = vpack.c.b16 %v1549, %v1545
    %v2150 = vpack.c.b16 %v1550, %v1546
    %v2151 = vpack.c.b16 %v1551, %v1547
    %v2152 = vpack.c.b16 %v1552, %v1548
    %v2153 = vpack.c.b16 %v1557, %v1553
    %v2154 = vpack.c.b16 %v1558, %v1554
    %v2155 = vpack.c.b16 %v1559, %v1555
    %v2156 = vpack.c.b16 %v1560, %v1556
    %v2157 = vpack.c.b16 %v1565, %v1561
    %v2158 = vpack.c.b16 %v1566, %v1562
    %v2159 = vpack.c.b16 %v1567, %v1563
    %v2160 = vpack.c.b16 %v1568, %v1564
    %v2161 = vpack.c.b16 %v1573, %v1569
    %v2162 = vpack.c.b16 %v1574, %v1570
    %v2163 = vpack.c.b16 %v1575, %v1571
    %v2164 = vpack.c.b16 %v1576, %v1572
    %v2165 = vpack.c.b16 %v1581, %v1577
    %v2166 = vpack.c.b16 %v1582, %v1578
    %v2167 = vpack.c.b16 %v1583, %v1579
    %v2168 = vpack.c.b16 %v1584, %v1580
    %v2169 = vpack.c.b16 %v1589, %v1585
    %v2170 = vpack.c.b16 %v1590, %v1586
    %v2171 = vpack.c.b16 %v1591, %v1587
    %v2172 = vpack.c.b16 %v1592, %v1588
    %v2173 = vpack.c.b16 %v1597, %v1593
    %v2174 = vpack.c.b16 %v1598, %v1594
    %v2175 = vpack.c.b16 %v1599, %v1595
    %v2176 = vpack.c.b16 %v1600, %v1596
    %v2177 = vpack.c.b16 %v1605, %v1601
    %v2178 = vpack.c.b16 %v1606, %v1602
    %v2179 = vpack.c.b16 %v1607, %v1603
    %v2180 = vpack.c.b16 %v1608, %v1604
    %v2181 = vpack.c.b16 %v1613, %v1609
    %v2182 = vpack.c.b16 %v1614, %v1610
    %v2183 = vpack.c.b16 %v1615, %v1611
    %v2184 = vpack.c.b16 %v1616, %v1612
    %v2185 = vpack.c.b16 %v1621, %v1617
    %v2186 = vpack.c.b16 %v1622, %v1618
    %v2187 = vpack.c.b16 %v1623, %v1619
    %v2188 = vpack.c.b16 %v1624, %v1620
    %v2189 = vpack.c.b16 %v1629, %v1625
    %v2190 = vpack.c.b16 %v1630, %v1626
    %v2191 = vpack.c.b16 %v1631, %v1627
    %v2192 = vpack.c.b16 %v1632, %v1628
    %v2193 = vpack.c.b16 %v1637, %v1633
    %v2194 = vpack.c.b16 %v1638, %v1634
    %v2195 = vpack.c.b16 %v1639, %v1635
    %v2196 = vpack.c.b16 %v1640, %v1636
    %v2197 = vpack.c.b16 %v1645, %v1641
    %v2198 = vpack.c.b16 %v1646, %v1642
    %v2199 = vpack.c.b16 %v1647, %v1643
    %v2200 = vpack.c.b16 %v1648, %v1644
    %v2201 = vpack.c.b16 %v1653, %v1649
    %v2202 = vpack.c.b16 %v1654, %v1650
    %v2203 = vpack.c.b16 %v1655, %v1651
    %v2204 = vpack.c.b16 %v1656, %v1652
    %v2205 = vpack.c.b16 %v1661, %v1657
    %v2206 = vpack.c.b16 %v1662, %v1658
    %v2207 = vpack.c.b16 %v1663, %v1659
    %v2208 = vpack.c.b16 %v1664, %v1660
    %v2209 = vpack.c.b16 %v1669, %v1665
    %v2210 = vpack.c.b16 %v1670, %v1666
    %v2211 = vpack.c.b16 %v1671, %v1667
    %v2212 = vpack.c.b16 %v1672, %v1668
    %v2213 = vpack.c.b16 %v1677, %v1673
    %v2214 = vpack.c.b16 %v1678, %v1674
    %v2215 = vpack.c.b16 %v1679, %v1675
    %v2216 = vpack.c.b16 %v1680, %v1676
    %v2217 = vpack.c.b16 %v1685, %v1681
    %v2218 = vpack.c.b16 %v1686, %v1682
    %v2219 = vpack.c.b16 %v1687, %v1683
    %v2220 = vpack.c.b16 %v1688, %v1684
    %v2221 = vpack.c.b16 %v1693, %v1689
    %v2222 = vpack.c.b16 %v1694, %v1690
    %v2223 = vpack.c.b16 %v1695, %v1691
    %v2224 = vpack.c.b16 %v1696, %v1692
    %v2225 = vpack.c.b16 %v1701, %v1697
    %v2226 = vpack.c.b16 %v1702, %v1698
    %v2227 = vpack.c.b16 %v1703, %v1699
    %v2228 = vpack.c.b16 %v1704, %v1700
    %v2229 = vpack.c.b16 %v1709, %v1705
    %v2230 = vpack.c.b16 %v1710, %v1706
    %v2231 = vpack.c.b16 %v1711, %v1707
    %v2232 = vpack.c.b16 %v1712, %v1708
    %v2233 = vpack.c.b16 %v1717, %v1713
    %v2234 = vpack.c.b16 %v1718, %v1714
    %v2235 = vpack.c.b16 %v1719, %v1715
    %v2236 = vpack.c.b16 %v1720, %v1716
    %v2237 = vpack.c.b16 %v1725, %v1721
    %v2238 = vpack.c.b16 %v1726, %v1722
    %v2239 = vpack.c.b16 %v1727, %v1723
    %v2240 = vpack.c.b16 %v1728, %v1724
    %v2241 = vpack.c.b16 %v1733, %v1729
    %v2242 = vpack.c.b16 %v1734, %v1730
    %v2243 = vpack.c.b16 %v1735, %v1731
    %v2244 = vpack.c.b16 %v1736, %v1732
    %v2245 = vpack.c.b16 %v1741, %v1737
    %v2246 = vpack.c.b16 %v1742, %v1738
    %v2247 = vpack.c.b16 %v1743, %v1739
    %v2248 = vpack.c.b16 %v1744, %v1740
    %v2249 = vpack.c.b16 %v1749, %v1745
    %v2250 = vpack.c.b16 %v1750, %v1746
    %v2251 = vpack.c.b16 %v1751, %v1747
    %v2252 = vpack.c.b16 %v1752, %v1748
    %v2253 = vpack.c.b16 %v1757, %v1753
    %v2254 = vpack.c.b16 %v1758, %v1754
    %v2255 = vpack.c.b16 %v1759, %v1755
    %v2256 = vpack.c.b16 %v1760, %v1756
    %v2257 = vpack.c.b16 %v1765, %v1761
    %v2258 = vpack.c.b16 %v1766, %v1762
    %v2259 = vpack.c.b16 %v1767, %v1763
    %v2260 = vpack.c.b16 %v1768, %v1764
    %v2261 = vpack.c.b16 %v1773, %v1769
    %v2262 = vpack.c.b16 %v1774, %v1770
    %v2263 = vpack.c.b16 %v1775, %v1771
    %v2264 = vpack.c.b16 %v1776, %v1772
    %v2265 = vpack.c.b16 %v1781, %v1777
    %v2266 = vpack.c.b16 %v1782, %v1778
    %v2267 = vpack.c.b16 %v1783, %v1779
    %v2268 = vpack.c.b16 %v1784, %v1780
    %v2269 = vpack.c.b16 %v1789, %v1785
    %v2270 = vpack.c.b16 %v1790, %v1786
    %v2271 = vpack.c.b16 %v1791, %v1787
    %v2272 = vpack.c.b16 %v1792, %v1788
    %v2273 = vpack.c.b16 %v1797, %v1793
    %v2274 = vpack.c.b16 %v1798, %v1794
    %v2275 = vpack.c.b16 %v1799, %v1795
    %v2276 = vpack.c.b16 %v1800, %v1796
    %v2277 = vpack.c.b16 %v1805, %v1801
    %v2278 = vpack.c.b16 %v1806, %v1802
    %v2279 = vpack.c.b16 %v1807, %v1803
    %v2280 = vpack.c.b16 %v1808, %v1804
    %v2281 = vpack.c.b16 %v1813, %v1809
    %v2282 = vpack.c.b16 %v1814, %v1810
    %v2283 = vpack.c.b16 %v1815, %v1811
    %v2284 = vpack.c.b16 %v1816, %v1812
    %v2285 = vpack.c.b16 %v1821, %v1817
    %v2286 = vpack.c.b16 %v1822, %v1818
    %v2287 = vpack.c.b16 %v1823, %v1819
    %v2288 = vpack.c.b16 %v1824, %v1820
    %v2289 = vpack.c.b16 %v1829, %v1825
    %v2290 = vpack.c.b16 %v1830, %v1826
    %v2291 = vpack.c.b16 %v1831, %v1827
    %v2292 = vpack.c.b16 %v1832, %v1828
    %v2293 = vpack.c.b16 %v1837, %v1833
    %v2294 = vpack.c.b16 %v1838, %v1834
    %v2295 = vpack.c.b16 %v1839, %v1835
    %v2296 = vpack.c.b16 %v1840, %v1836
    %v2297 = vpack.c.b16 %v1845, %v1841
    %v2298 = vpack.c.b16 %v1846, %v1842
    %v2299 = vpack.c.b16 %v1847, %v1843
    %v2300 = vpack.c.b16 %v1848, %v1844
    %v2301 = vpack.c.b16 %v1853, %v1849
    %v2302 = vpack.c.b16 %v1854, %v1850
    %v2303 = vpack.c.b16 %v1855, %v1851
    %v2304 = vpack.c.b16 %v1856, %v1852
    %2753 = vmatpush.bf16.msra.mxu0 %v1885
    %2754 = vmatpush.bf16.msra.mxu0 %v1881
    %2755 = vmatpush.bf16.msra.mxu0 %v1877
    %2756 = vmatpush.bf16.msra.mxu0 %v1873
    %2757 = vmatpush.bf16.msra.mxu0 %v1869
    %2758 = vmatpush.bf16.msra.mxu0 %v1865
    %2759 = vmatpush.bf16.msra.mxu0 %v1861
    %2760 = vmatpush.bf16.msra.mxu0 %v1857
    %2761 = vmatmul.bf16.gmra.mxu0 %v483
    %v2762 = vpop.f32.mrf.mxu0
    %v2763 = vadd.f32 %v473, %v2762
    %v2764 = vpop.f32.mrf.mxu0
    %2765 = vdwg.mxu0
    %2766 = vmatpush.bf16.msra.mxu0 %v1917
    %2767 = vmatpush.bf16.msra.mxu0 %v1913
    %2768 = vmatpush.bf16.msra.mxu0 %v1909
    %2769 = vmatpush.bf16.msra.mxu0 %v1905
    %2770 = vmatpush.bf16.msra.mxu0 %v1901
    %2771 = vmatpush.bf16.msra.mxu0 %v1897
    %2772 = vmatpush.bf16.msra.mxu0 %v1893
    %2773 = vmatpush.bf16.msra.mxu0 %v1889
    %2774 = vmatmul.bf16.gmra.mxu0 %v484
    %v2775 = vpop.f32.mrf.mxu0
    %v2776 = vadd.f32 %v2763, %v2775
    %v2777 = vpop.f32.mrf.mxu0
    %2778 = vdwg.mxu0
    %2779 = vmatpush.bf16.msra.mxu0 %v1949
    %2780 = vmatpush.bf16.msra.mxu0 %v1945
    %2781 = vmatpush.bf16.msra.mxu0 %v1941
    %2782 = vmatpush.bf16.msra.mxu0 %v1937
    %2783 = vmatpush.bf16.msra.mxu0 %v1933
    %2784 = vmatpush.bf16.msra.mxu0 %v1929
    %2785 = vmatpush.bf16.msra.mxu0 %v1925
    %2786 = vmatpush.bf16.msra.mxu0 %v1921
    %2787 = vmatmul.bf16.gmra.mxu0 %v485
    %v2788 = vpop.f32.mrf.mxu0
    %v2789 = vadd.f32 %v2776, %v2788
    %v2790 = vpop.f32.mrf.mxu0
    %2791 = vdwg.mxu0
    %2792 = vmatpush.bf16.msra.mxu0 %v1981
    %2793 = vmatpush.bf16.msra.mxu0 %v1977
    %2794 = vmatpush.bf16.msra.mxu0 %v1973
    %2795 = vmatpush.bf16.msra.mxu0 %v1969
    %2796 = vmatpush.bf16.msra.mxu0 %v1965
    %2797 = vmatpush.bf16.msra.mxu0 %v1961
    %2798 = vmatpush.bf16.msra.mxu0 %v1957
    %2799 = vmatpush.bf16.msra.mxu0 %v1953
    %2800 = vmatmul.bf16.gmra.mxu0 %v486
    %v2801 = vpop.f32.mrf.mxu0
    %v2802 = vadd.f32 %v2789, %v2801
    %v2803 = vpop.f32.mrf.mxu0
    %2804 = vdwg.mxu0
    %2805 = vmatpush.bf16.msra.mxu0 %v2013
    %2806 = vmatpush.bf16.msra.mxu0 %v2009
    %2807 = vmatpush.bf16.msra.mxu0 %v2005
    %2808 = vmatpush.bf16.msra.mxu0 %v2001
    %2809 = vmatpush.bf16.msra.mxu0 %v1997
    %2810 = vmatpush.bf16.msra.mxu0 %v1993
    %2811 = vmatpush.bf16.msra.mxu0 %v1989
    %2812 = vmatpush.bf16.msra.mxu0 %v1985
    %2813 = vmatmul.bf16.gmra.mxu0 %v487
    %v2814 = vpop.f32.mrf.mxu0
    %v2815 = vadd.f32 %v2802, %v2814
    %v2816 = vpop.f32.mrf.mxu0
    %2817 = vdwg.mxu0
    %2818 = vmatpush.bf16.msra.mxu0 %v2045
    %2819 = vmatpush.bf16.msra.mxu0 %v2041
    %2820 = vmatpush.bf16.msra.mxu0 %v2037
    %2821 = vmatpush.bf16.msra.mxu0 %v2033
    %2822 = vmatpush.bf16.msra.mxu0 %v2029
    %2823 = vmatpush.bf16.msra.mxu0 %v2025
    %2824 = vmatpush.bf16.msra.mxu0 %v2021
    %2825 = vmatpush.bf16.msra.mxu0 %v2017
    %2826 = vmatmul.bf16.gmra.mxu0 %v488
    %v2827 = vpop.f32.mrf.mxu0
    %v2828 = vadd.f32 %v2815, %v2827
    %v2829 = vpop.f32.mrf.mxu0
    %2830 = vdwg.mxu0
    %2831 = vmatpush.bf16.msra.mxu0 %v2077
    %2832 = vmatpush.bf16.msra.mxu0 %v2073
    %2833 = vmatpush.bf16.msra.mxu0 %v2069
    %2834 = vmatpush.bf16.msra.mxu0 %v2065
    %2835 = vmatpush.bf16.msra.mxu0 %v2061
    %2836 = vmatpush.bf16.msra.mxu0 %v2057
    %2837 = vmatpush.bf16.msra.mxu0 %v2053
    %2838 = vmatpush.bf16.msra.mxu0 %v2049
    %2839 = vmatmul.bf16.gmra.mxu0 %v489
    %v2840 = vpop.f32.mrf.mxu0
    %v2841 = vadd.f32 %v2828, %v2840
    %v2842 = vpop.f32.mrf.mxu0
    %2843 = vdwg.mxu0
    %2844 = vmatpush.bf16.msra.mxu0 %v2109
    %2845 = vmatpush.bf16.msra.mxu0 %v2105
    %2846 = vmatpush.bf16.msra.mxu0 %v2101
    %2847 = vmatpush.bf16.msra.mxu0 %v2097
    %2848 = vmatpush.bf16.msra.mxu0 %v2093
    %2849 = vmatpush.bf16.msra.mxu0 %v2089
    %2850 = vmatpush.bf16.msra.mxu0 %v2085
    %2851 = vmatpush.bf16.msra.mxu0 %v2081
    %2852 = vmatmul.bf16.gmra.mxu0 %v490
    %v2853 = vpop.f32.mrf.mxu0
    %v2854 = vadd.f32 %v2841, %v2853
    %v2855 = vpop.f32.mrf.mxu0
    %2856 = vdwg.mxu0
    %2857 = vmatpush.bf16.msra.mxu0 %v2141
    %2858 = vmatpush.bf16.msra.mxu0 %v2137
    %2859 = vmatpush.bf16.msra.mxu0 %v2133
    %2860 = vmatpush.bf16.msra.mxu0 %v2129
    %2861 = vmatpush.bf16.msra.mxu0 %v2125
    %2862 = vmatpush.bf16.msra.mxu0 %v2121
    %2863 = vmatpush.bf16.msra.mxu0 %v2117
    %2864 = vmatpush.bf16.msra.mxu0 %v2113
    %2865 = vmatmul.bf16.gmra.mxu0 %v493
    %v2866 = vpop.f32.mrf.mxu0
    %v2867 = vadd.f32 %v2854, %v2866
    %v2868 = vpop.f32.mrf.mxu0
    %2869 = vdwg.mxu0
    %2870 = vmatpush.bf16.msra.mxu0 %v2173
    %2871 = vmatpush.bf16.msra.mxu0 %v2169
    %2872 = vmatpush.bf16.msra.mxu0 %v2165
    %2873 = vmatpush.bf16.msra.mxu0 %v2161
    %2874 = vmatpush.bf16.msra.mxu0 %v2157
    %2875 = vmatpush.bf16.msra.mxu0 %v2153
    %2876 = vmatpush.bf16.msra.mxu0 %v2149
    %2877 = vmatpush.bf16.msra.mxu0 %v2145
    %2878 = vmatmul.bf16.gmra.mxu0 %v494
    %v2879 = vpop.f32.mrf.mxu0
    %v2880 = vadd.f32 %v2867, %v2879
    %v2881 = vpop.f32.mrf.mxu0
    %2882 = vdwg.mxu0
    %2883 = vmatpush.bf16.msra.mxu0 %v2205
    %2884 = vmatpush.bf16.msra.mxu0 %v2201
    %2885 = vmatpush.bf16.msra.mxu0 %v2197
    %2886 = vmatpush.bf16.msra.mxu0 %v2193
    %2887 = vmatpush.bf16.msra.mxu0 %v2189
    %2888 = vmatpush.bf16.msra.mxu0 %v2185
    %2889 = vmatpush.bf16.msra.mxu0 %v2181
    %2890 = vmatpush.bf16.msra.mxu0 %v2177
    %2891 = vmatmul.bf16.gmra.mxu0 %v495
    %v2892 = vpop.f32.mrf.mxu0
    %v2893 = vadd.f32 %v2880, %v2892
    %v2894 = vpop.f32.mrf.mxu0
    %2895 = vdwg.mxu0
    %2896 = vmatpush.bf16.msra.mxu0 %v2237
    %2897 = vmatpush.bf16.msra.mxu0 %v2233
    %2898 = vmatpush.bf16.msra.mxu0 %v2229
    %2899 = vmatpush.bf16.msra.mxu0 %v2225
    %2900 = vmatpush.bf16.msra.mxu0 %v2221
    %2901 = vmatpush.bf16.msra.mxu0 %v2217
    %2902 = vmatpush.bf16.msra.mxu0 %v2213
    %2903 = vmatpush.bf16.msra.mxu0 %v2209
    %2904 = vmatmul.bf16.gmra.mxu0 %v496
    %v2905 = vpop.f32.mrf.mxu0
    %v2906 = vadd.f32 %v2893, %v2905
    %v2907 = vpop.f32.mrf.mxu0
    %2908 = vdwg.mxu0
    %2909 = vmatpush.bf16.msra.mxu0 %v2269
    %2910 = vmatpush.bf16.msra.mxu0 %v2265
    %2911 = vmatpush.bf16.msra.mxu0 %v2261
    %2912 = vmatpush.bf16.msra.mxu0 %v2257
    %2913 = vmatpush.bf16.msra.mxu0 %v2253
    %2914 = vmatpush.bf16.msra.mxu0 %v2249
    %2915 = vmatpush.bf16.msra.mxu0 %v2245
    %2916 = vmatpush.bf16.msra.mxu0 %v2241
    %2917 = vmatmul.bf16.gmra.mxu0 %v497
    %v2918 = vpop.f32.mrf.mxu0
    %v2919 = vadd.f32 %v2906, %v2918
    %v2920 = vpop.f32.mrf.mxu0
    %2921 = vdwg.mxu0
    %2922 = vmatpush.bf16.msra.mxu0 %v2301
    %2923 = vmatpush.bf16.msra.mxu0 %v2297
    %2924 = vmatpush.bf16.msra.mxu0 %v2293
    %2925 = vmatpush.bf16.msra.mxu0 %v2289
    %2926 = vmatpush.bf16.msra.mxu0 %v2285
    %2927 = vmatpush.bf16.msra.mxu0 %v2281
    %2928 = vmatpush.bf16.msra.mxu0 %v2277
    %2929 = vmatpush.bf16.msra.mxu0 %v2273
    %2930 = vmatmul.bf16.gmra.mxu0 %v498
    %v2931 = vpop.f32.mrf.mxu0
    %v2932 = vadd.f32 %v2919, %v2931
    %v2933 = vpop.f32.mrf.mxu0
    %2934 = vdwg.mxu0
    %2935 = vmatpush.bf16.msra.mxu0 %v1886
    %2936 = vmatpush.bf16.msra.mxu0 %v1882
    %2937 = vmatpush.bf16.msra.mxu0 %v1878
    %2938 = vmatpush.bf16.msra.mxu0 %v1874
    %2939 = vmatpush.bf16.msra.mxu0 %v1870
    %2940 = vmatpush.bf16.msra.mxu0 %v1866
    %2941 = vmatpush.bf16.msra.mxu0 %v1862
    %2942 = vmatpush.bf16.msra.mxu0 %v1858
    %2943 = vmatmul.bf16.gmra.mxu0 %v483
    %v2944 = vpop.f32.mrf.mxu0
    %v2945 = vadd.f32 %v474, %v2944
    %v2946 = vpop.f32.mrf.mxu0
    %2947 = vdwg.mxu0
    %2948 = vmatpush.bf16.msra.mxu0 %v1918
    %2949 = vmatpush.bf16.msra.mxu0 %v1914
    %2950 = vmatpush.bf16.msra.mxu0 %v1910
    %2951 = vmatpush.bf16.msra.mxu0 %v1906
    %2952 = vmatpush.bf16.msra.mxu0 %v1902
    %2953 = vmatpush.bf16.msra.mxu0 %v1898
    %2954 = vmatpush.bf16.msra.mxu0 %v1894
    %2955 = vmatpush.bf16.msra.mxu0 %v1890
    %2956 = vmatmul.bf16.gmra.mxu0 %v484
    %v2957 = vpop.f32.mrf.mxu0
    %v2958 = vadd.f32 %v2945, %v2957
    %v2959 = vpop.f32.mrf.mxu0
    %2960 = vdwg.mxu0
    %2961 = vmatpush.bf16.msra.mxu0 %v1950
    %2962 = vmatpush.bf16.msra.mxu0 %v1946
    %2963 = vmatpush.bf16.msra.mxu0 %v1942
    %2964 = vmatpush.bf16.msra.mxu0 %v1938
    %2965 = vmatpush.bf16.msra.mxu0 %v1934
    %2966 = vmatpush.bf16.msra.mxu0 %v1930
    %2967 = vmatpush.bf16.msra.mxu0 %v1926
    %2968 = vmatpush.bf16.msra.mxu0 %v1922
    %2969 = vmatmul.bf16.gmra.mxu0 %v485
    %v2970 = vpop.f32.mrf.mxu0
    %v2971 = vadd.f32 %v2958, %v2970
    %v2972 = vpop.f32.mrf.mxu0
    %2973 = vdwg.mxu0
    %2974 = vmatpush.bf16.msra.mxu0 %v1982
    %2975 = vmatpush.bf16.msra.mxu0 %v1978
    %2976 = vmatpush.bf16.msra.mxu0 %v1974
    %2977 = vmatpush.bf16.msra.mxu0 %v1970
    %2978 = vmatpush.bf16.msra.mxu0 %v1966
    %2979 = vmatpush.bf16.msra.mxu0 %v1962
    %2980 = vmatpush.bf16.msra.mxu0 %v1958
    %2981 = vmatpush.bf16.msra.mxu0 %v1954
    %2982 = vmatmul.bf16.gmra.mxu0 %v486
    %v2983 = vpop.f32.mrf.mxu0
    %v2984 = vadd.f32 %v2971, %v2983
    %v2985 = vpop.f32.mrf.mxu0
    %2986 = vdwg.mxu0
    %2987 = vmatpush.bf16.msra.mxu0 %v2014
    %2988 = vmatpush.bf16.msra.mxu0 %v2010
    %2989 = vmatpush.bf16.msra.mxu0 %v2006
    %2990 = vmatpush.bf16.msra.mxu0 %v2002
    %2991 = vmatpush.bf16.msra.mxu0 %v1998
    %2992 = vmatpush.bf16.msra.mxu0 %v1994
    %2993 = vmatpush.bf16.msra.mxu0 %v1990
    %2994 = vmatpush.bf16.msra.mxu0 %v1986
    %2995 = vmatmul.bf16.gmra.mxu0 %v487
    %v2996 = vpop.f32.mrf.mxu0
    %v2997 = vadd.f32 %v2984, %v2996
    %v2998 = vpop.f32.mrf.mxu0
    %2999 = vdwg.mxu0
    %3000 = vmatpush.bf16.msra.mxu0 %v2046
    %3001 = vmatpush.bf16.msra.mxu0 %v2042
    %3002 = vmatpush.bf16.msra.mxu0 %v2038
    %3003 = vmatpush.bf16.msra.mxu0 %v2034
    %3004 = vmatpush.bf16.msra.mxu0 %v2030
    %3005 = vmatpush.bf16.msra.mxu0 %v2026
    %3006 = vmatpush.bf16.msra.mxu0 %v2022
    %3007 = vmatpush.bf16.msra.mxu0 %v2018
    %3008 = vmatmul.bf16.gmra.mxu0 %v488
    %v3009 = vpop.f32.mrf.mxu0
    %v3010 = vadd.f32 %v2997, %v3009
    %v3011 = vpop.f32.mrf.mxu0
    %3012 = vdwg.mxu0
    %3013 = vmatpush.bf16.msra.mxu0 %v2078
    %3014 = vmatpush.bf16.msra.mxu0 %v2074
    %3015 = vmatpush.bf16.msra.mxu0 %v2070
    %3016 = vmatpush.bf16.msra.mxu0 %v2066
    %3017 = vmatpush.bf16.msra.mxu0 %v2062
    %3018 = vmatpush.bf16.msra.mxu0 %v2058
    %3019 = vmatpush.bf16.msra.mxu0 %v2054
    %3020 = vmatpush.bf16.msra.mxu0 %v2050
    %3021 = vmatmul.bf16.gmra.mxu0 %v489
    %v3022 = vpop.f32.mrf.mxu0
    %v3023 = vadd.f32 %v3010, %v3022
    %v3024 = vpop.f32.mrf.mxu0
    %3025 = vdwg.mxu0
    %3026 = vmatpush.bf16.msra.mxu0 %v2110
    %3027 = vmatpush.bf16.msra.mxu0 %v2106
    %3028 = vmatpush.bf16.msra.mxu0 %v2102
    %3029 = vmatpush.bf16.msra.mxu0 %v2098
    %3030 = vmatpush.bf16.msra.mxu0 %v2094
    %3031 = vmatpush.bf16.msra.mxu0 %v2090
    %3032 = vmatpush.bf16.msra.mxu0 %v2086
    %3033 = vmatpush.bf16.msra.mxu0 %v2082
    %3034 = vmatmul.bf16.gmra.mxu0 %v490
    %v3035 = vpop.f32.mrf.mxu0
    %v3036 = vadd.f32 %v3023, %v3035
    %v3037 = vpop.f32.mrf.mxu0
    %3038 = vdwg.mxu0
    %3039 = vmatpush.bf16.msra.mxu0 %v2142
    %3040 = vmatpush.bf16.msra.mxu0 %v2138
    %3041 = vmatpush.bf16.msra.mxu0 %v2134
    %3042 = vmatpush.bf16.msra.mxu0 %v2130
    %3043 = vmatpush.bf16.msra.mxu0 %v2126
    %3044 = vmatpush.bf16.msra.mxu0 %v2122
    %3045 = vmatpush.bf16.msra.mxu0 %v2118
    %3046 = vmatpush.bf16.msra.mxu0 %v2114
    %3047 = vmatmul.bf16.gmra.mxu0 %v493
    %v3048 = vpop.f32.mrf.mxu0
    %v3049 = vadd.f32 %v3036, %v3048
    %v3050 = vpop.f32.mrf.mxu0
    %3051 = vdwg.mxu0
    %3052 = vmatpush.bf16.msra.mxu0 %v2174
    %3053 = vmatpush.bf16.msra.mxu0 %v2170
    %3054 = vmatpush.bf16.msra.mxu0 %v2166
    %3055 = vmatpush.bf16.msra.mxu0 %v2162
    %3056 = vmatpush.bf16.msra.mxu0 %v2158
    %3057 = vmatpush.bf16.msra.mxu0 %v2154
    %3058 = vmatpush.bf16.msra.mxu0 %v2150
    %3059 = vmatpush.bf16.msra.mxu0 %v2146
    %3060 = vmatmul.bf16.gmra.mxu0 %v494
    %v3061 = vpop.f32.mrf.mxu0
    %v3062 = vadd.f32 %v3049, %v3061
    %v3063 = vpop.f32.mrf.mxu0
    %3064 = vdwg.mxu0
    %3065 = vmatpush.bf16.msra.mxu0 %v2206
    %3066 = vmatpush.bf16.msra.mxu0 %v2202
    %3067 = vmatpush.bf16.msra.mxu0 %v2198
    %3068 = vmatpush.bf16.msra.mxu0 %v2194
    %3069 = vmatpush.bf16.msra.mxu0 %v2190
    %3070 = vmatpush.bf16.msra.mxu0 %v2186
    %3071 = vmatpush.bf16.msra.mxu0 %v2182
    %3072 = vmatpush.bf16.msra.mxu0 %v2178
    %3073 = vmatmul.bf16.gmra.mxu0 %v495
    %v3074 = vpop.f32.mrf.mxu0
    %v3075 = vadd.f32 %v3062, %v3074
    %v3076 = vpop.f32.mrf.mxu0
    %3077 = vdwg.mxu0
    %3078 = vmatpush.bf16.msra.mxu0 %v2238
    %3079 = vmatpush.bf16.msra.mxu0 %v2234
    %3080 = vmatpush.bf16.msra.mxu0 %v2230
    %3081 = vmatpush.bf16.msra.mxu0 %v2226
    %3082 = vmatpush.bf16.msra.mxu0 %v2222
    %3083 = vmatpush.bf16.msra.mxu0 %v2218
    %3084 = vmatpush.bf16.msra.mxu0 %v2214
    %3085 = vmatpush.bf16.msra.mxu0 %v2210
    %3086 = vmatmul.bf16.gmra.mxu0 %v496
    %v3087 = vpop.f32.mrf.mxu0
    %v3088 = vadd.f32 %v3075, %v3087
    %v3089 = vpop.f32.mrf.mxu0
    %3090 = vdwg.mxu0
    %3091 = vmatpush.bf16.msra.mxu0 %v2270
    %3092 = vmatpush.bf16.msra.mxu0 %v2266
    %3093 = vmatpush.bf16.msra.mxu0 %v2262
    %3094 = vmatpush.bf16.msra.mxu0 %v2258
    %3095 = vmatpush.bf16.msra.mxu0 %v2254
    %3096 = vmatpush.bf16.msra.mxu0 %v2250
    %3097 = vmatpush.bf16.msra.mxu0 %v2246
    %3098 = vmatpush.bf16.msra.mxu0 %v2242
    %3099 = vmatmul.bf16.gmra.mxu0 %v497
    %v3100 = vpop.f32.mrf.mxu0
    %v3101 = vadd.f32 %v3088, %v3100
    %v3102 = vpop.f32.mrf.mxu0
    %3103 = vdwg.mxu0
    %3104 = vmatpush.bf16.msra.mxu0 %v2302
    %3105 = vmatpush.bf16.msra.mxu0 %v2298
    %3106 = vmatpush.bf16.msra.mxu0 %v2294
    %3107 = vmatpush.bf16.msra.mxu0 %v2290
    %3108 = vmatpush.bf16.msra.mxu0 %v2286
    %3109 = vmatpush.bf16.msra.mxu0 %v2282
    %3110 = vmatpush.bf16.msra.mxu0 %v2278
    %3111 = vmatpush.bf16.msra.mxu0 %v2274
    %3112 = vmatmul.bf16.gmra.mxu0 %v498
    %v3113 = vpop.f32.mrf.mxu0
    %v3114 = vadd.f32 %v3101, %v3113
    %v3115 = vpop.f32.mrf.mxu0
    %3116 = vdwg.mxu0
    %3117 = vmatpush.bf16.msra.mxu0 %v1887
    %3118 = vmatpush.bf16.msra.mxu0 %v1883
    %3119 = vmatpush.bf16.msra.mxu0 %v1879
    %3120 = vmatpush.bf16.msra.mxu0 %v1875
    %3121 = vmatpush.bf16.msra.mxu0 %v1871
    %3122 = vmatpush.bf16.msra.mxu0 %v1867
    %3123 = vmatpush.bf16.msra.mxu0 %v1863
    %3124 = vmatpush.bf16.msra.mxu0 %v1859
    %3125 = vmatmul.bf16.gmra.mxu0 %v483
    %v3126 = vpop.f32.mrf.mxu0
    %v3127 = vadd.f32 %v475, %v3126
    %v3128 = vpop.f32.mrf.mxu0
    %3129 = vdwg.mxu0
    %3130 = vmatpush.bf16.msra.mxu0 %v1919
    %3131 = vmatpush.bf16.msra.mxu0 %v1915
    %3132 = vmatpush.bf16.msra.mxu0 %v1911
    %3133 = vmatpush.bf16.msra.mxu0 %v1907
    %3134 = vmatpush.bf16.msra.mxu0 %v1903
    %3135 = vmatpush.bf16.msra.mxu0 %v1899
    %3136 = vmatpush.bf16.msra.mxu0 %v1895
    %3137 = vmatpush.bf16.msra.mxu0 %v1891
    %3138 = vmatmul.bf16.gmra.mxu0 %v484
    %v3139 = vpop.f32.mrf.mxu0
    %v3140 = vadd.f32 %v3127, %v3139
    %v3141 = vpop.f32.mrf.mxu0
    %3142 = vdwg.mxu0
    %3143 = vmatpush.bf16.msra.mxu0 %v1951
    %3144 = vmatpush.bf16.msra.mxu0 %v1947
    %3145 = vmatpush.bf16.msra.mxu0 %v1943
    %3146 = vmatpush.bf16.msra.mxu0 %v1939
    %3147 = vmatpush.bf16.msra.mxu0 %v1935
    %3148 = vmatpush.bf16.msra.mxu0 %v1931
    %3149 = vmatpush.bf16.msra.mxu0 %v1927
    %3150 = vmatpush.bf16.msra.mxu0 %v1923
    %3151 = vmatmul.bf16.gmra.mxu0 %v485
    %v3152 = vpop.f32.mrf.mxu0
    %v3153 = vadd.f32 %v3140, %v3152
    %v3154 = vpop.f32.mrf.mxu0
    %3155 = vdwg.mxu0
    %3156 = vmatpush.bf16.msra.mxu0 %v1983
    %3157 = vmatpush.bf16.msra.mxu0 %v1979
    %3158 = vmatpush.bf16.msra.mxu0 %v1975
    %3159 = vmatpush.bf16.msra.mxu0 %v1971
    %3160 = vmatpush.bf16.msra.mxu0 %v1967
    %3161 = vmatpush.bf16.msra.mxu0 %v1963
    %3162 = vmatpush.bf16.msra.mxu0 %v1959
    %3163 = vmatpush.bf16.msra.mxu0 %v1955
    %3164 = vmatmul.bf16.gmra.mxu0 %v486
    %v3165 = vpop.f32.mrf.mxu0
    %v3166 = vadd.f32 %v3153, %v3165
    %v3167 = vpop.f32.mrf.mxu0
    %3168 = vdwg.mxu0
    %3169 = vmatpush.bf16.msra.mxu0 %v2015
    %3170 = vmatpush.bf16.msra.mxu0 %v2011
    %3171 = vmatpush.bf16.msra.mxu0 %v2007
    %3172 = vmatpush.bf16.msra.mxu0 %v2003
    %3173 = vmatpush.bf16.msra.mxu0 %v1999
    %3174 = vmatpush.bf16.msra.mxu0 %v1995
    %3175 = vmatpush.bf16.msra.mxu0 %v1991
    %3176 = vmatpush.bf16.msra.mxu0 %v1987
    %3177 = vmatmul.bf16.gmra.mxu0 %v487
    %v3178 = vpop.f32.mrf.mxu0
    %v3179 = vadd.f32 %v3166, %v3178
    %v3180 = vpop.f32.mrf.mxu0
    %3181 = vdwg.mxu0
    %3182 = vmatpush.bf16.msra.mxu0 %v2047
    %3183 = vmatpush.bf16.msra.mxu0 %v2043
    %3184 = vmatpush.bf16.msra.mxu0 %v2039
    %3185 = vmatpush.bf16.msra.mxu0 %v2035
    %3186 = vmatpush.bf16.msra.mxu0 %v2031
    %3187 = vmatpush.bf16.msra.mxu0 %v2027
    %3188 = vmatpush.bf16.msra.mxu0 %v2023
    %3189 = vmatpush.bf16.msra.mxu0 %v2019
    %3190 = vmatmul.bf16.gmra.mxu0 %v488
    %v3191 = vpop.f32.mrf.mxu0
    %v3192 = vadd.f32 %v3179, %v3191
    %v3193 = vpop.f32.mrf.mxu0
    %3194 = vdwg.mxu0
    %3195 = vmatpush.bf16.msra.mxu0 %v2079
    %3196 = vmatpush.bf16.msra.mxu0 %v2075
    %3197 = vmatpush.bf16.msra.mxu0 %v2071
    %3198 = vmatpush.bf16.msra.mxu0 %v2067
    %3199 = vmatpush.bf16.msra.mxu0 %v2063
    %3200 = vmatpush.bf16.msra.mxu0 %v2059
    %3201 = vmatpush.bf16.msra.mxu0 %v2055
    %3202 = vmatpush.bf16.msra.mxu0 %v2051
    %3203 = vmatmul.bf16.gmra.mxu0 %v489
    %v3204 = vpop.f32.mrf.mxu0
    %v3205 = vadd.f32 %v3192, %v3204
    %v3206 = vpop.f32.mrf.mxu0
    %3207 = vdwg.mxu0
    %3208 = vmatpush.bf16.msra.mxu0 %v2111
    %3209 = vmatpush.bf16.msra.mxu0 %v2107
    %3210 = vmatpush.bf16.msra.mxu0 %v2103
    %3211 = vmatpush.bf16.msra.mxu0 %v2099
    %3212 = vmatpush.bf16.msra.mxu0 %v2095
    %3213 = vmatpush.bf16.msra.mxu0 %v2091
    %3214 = vmatpush.bf16.msra.mxu0 %v2087
    %3215 = vmatpush.bf16.msra.mxu0 %v2083
    %3216 = vmatmul.bf16.gmra.mxu0 %v490
    %v3217 = vpop.f32.mrf.mxu0
    %v3218 = vadd.f32 %v3205, %v3217
    %v3219 = vpop.f32.mrf.mxu0
    %3220 = vdwg.mxu0
    %3221 = vmatpush.bf16.msra.mxu0 %v2143
    %3222 = vmatpush.bf16.msra.mxu0 %v2139
    %3223 = vmatpush.bf16.msra.mxu0 %v2135
    %3224 = vmatpush.bf16.msra.mxu0 %v2131
    %3225 = vmatpush.bf16.msra.mxu0 %v2127
    %3226 = vmatpush.bf16.msra.mxu0 %v2123
    %3227 = vmatpush.bf16.msra.mxu0 %v2119
    %3228 = vmatpush.bf16.msra.mxu0 %v2115
    %3229 = vmatmul.bf16.gmra.mxu0 %v493
    %v3230 = vpop.f32.mrf.mxu0
    %v3231 = vadd.f32 %v3218, %v3230
    %v3232 = vpop.f32.mrf.mxu0
    %3233 = vdwg.mxu0
    %3234 = vmatpush.bf16.msra.mxu0 %v2175
    %3235 = vmatpush.bf16.msra.mxu0 %v2171
    %3236 = vmatpush.bf16.msra.mxu0 %v2167
    %3237 = vmatpush.bf16.msra.mxu0 %v2163
    %3238 = vmatpush.bf16.msra.mxu0 %v2159
    %3239 = vmatpush.bf16.msra.mxu0 %v2155
    %3240 = vmatpush.bf16.msra.mxu0 %v2151
    %3241 = vmatpush.bf16.msra.mxu0 %v2147
    %3242 = vmatmul.bf16.gmra.mxu0 %v494
    %v3243 = vpop.f32.mrf.mxu0
    %v3244 = vadd.f32 %v3231, %v3243
    %v3245 = vpop.f32.mrf.mxu0
    %3246 = vdwg.mxu0
    %3247 = vmatpush.bf16.msra.mxu0 %v2207
    %3248 = vmatpush.bf16.msra.mxu0 %v2203
    %3249 = vmatpush.bf16.msra.mxu0 %v2199
    %3250 = vmatpush.bf16.msra.mxu0 %v2195
    %3251 = vmatpush.bf16.msra.mxu0 %v2191
    %3252 = vmatpush.bf16.msra.mxu0 %v2187
    %3253 = vmatpush.bf16.msra.mxu0 %v2183
    %3254 = vmatpush.bf16.msra.mxu0 %v2179
    %3255 = vmatmul.bf16.gmra.mxu0 %v495
    %v3256 = vpop.f32.mrf.mxu0
    %v3257 = vadd.f32 %v3244, %v3256
    %v3258 = vpop.f32.mrf.mxu0
    %3259 = vdwg.mxu0
    %3260 = vmatpush.bf16.msra.mxu0 %v2239
    %3261 = vmatpush.bf16.msra.mxu0 %v2235
    %3262 = vmatpush.bf16.msra.mxu0 %v2231
    %3263 = vmatpush.bf16.msra.mxu0 %v2227
    %3264 = vmatpush.bf16.msra.mxu0 %v2223
    %3265 = vmatpush.bf16.msra.mxu0 %v2219
    %3266 = vmatpush.bf16.msra.mxu0 %v2215
    %3267 = vmatpush.bf16.msra.mxu0 %v2211
    %3268 = vmatmul.bf16.gmra.mxu0 %v496
    %v3269 = vpop.f32.mrf.mxu0
    %v3270 = vadd.f32 %v3257, %v3269
    %v3271 = vpop.f32.mrf.mxu0
    %3272 = vdwg.mxu0
    %3273 = vmatpush.bf16.msra.mxu0 %v2271
    %3274 = vmatpush.bf16.msra.mxu0 %v2267
    %3275 = vmatpush.bf16.msra.mxu0 %v2263
    %3276 = vmatpush.bf16.msra.mxu0 %v2259
    %3277 = vmatpush.bf16.msra.mxu0 %v2255
    %3278 = vmatpush.bf16.msra.mxu0 %v2251
    %3279 = vmatpush.bf16.msra.mxu0 %v2247
    %3280 = vmatpush.bf16.msra.mxu0 %v2243
    %3281 = vmatmul.bf16.gmra.mxu0 %v497
    %v3282 = vpop.f32.mrf.mxu0
    %v3283 = vadd.f32 %v3270, %v3282
    %v3284 = vpop.f32.mrf.mxu0
    %3285 = vdwg.mxu0
    %3286 = vmatpush.bf16.msra.mxu0 %v2303
    %3287 = vmatpush.bf16.msra.mxu0 %v2299
    %3288 = vmatpush.bf16.msra.mxu0 %v2295
    %3289 = vmatpush.bf16.msra.mxu0 %v2291
    %3290 = vmatpush.bf16.msra.mxu0 %v2287
    %3291 = vmatpush.bf16.msra.mxu0 %v2283
    %3292 = vmatpush.bf16.msra.mxu0 %v2279
    %3293 = vmatpush.bf16.msra.mxu0 %v2275
    %3294 = vmatmul.bf16.gmra.mxu0 %v498
    %v3295 = vpop.f32.mrf.mxu0
    %v3296 = vadd.f32 %v3283, %v3295
    %v3297 = vpop.f32.mrf.mxu0
    %3298 = vdwg.mxu0
    %3299 = vmatpush.bf16.msra.mxu0 %v1888
    %3300 = vmatpush.bf16.msra.mxu0 %v1884
    %3301 = vmatpush.bf16.msra.mxu0 %v1880
    %3302 = vmatpush.bf16.msra.mxu0 %v1876
    %3303 = vmatpush.bf16.msra.mxu0 %v1872
    %3304 = vmatpush.bf16.msra.mxu0 %v1868
    %3305 = vmatpush.bf16.msra.mxu0 %v1864
    %3306 = vmatpush.bf16.msra.mxu0 %v1860
    %3307 = vmatmul.bf16.gmra.mxu0 %v483
    %v3308 = vpop.f32.mrf.mxu0
    %v3309 = vadd.f32 %v476, %v3308
    %v3310 = vpop.f32.mrf.mxu0
    %3311 = vdwg.mxu0
    %3312 = vmatpush.bf16.msra.mxu0 %v1920
    %3313 = vmatpush.bf16.msra.mxu0 %v1916
    %3314 = vmatpush.bf16.msra.mxu0 %v1912
    %3315 = vmatpush.bf16.msra.mxu0 %v1908
    %3316 = vmatpush.bf16.msra.mxu0 %v1904
    %3317 = vmatpush.bf16.msra.mxu0 %v1900
    %3318 = vmatpush.bf16.msra.mxu0 %v1896
    %3319 = vmatpush.bf16.msra.mxu0 %v1892
    %3320 = vmatmul.bf16.gmra.mxu0 %v484
    %v3321 = vpop.f32.mrf.mxu0
    %v3322 = vadd.f32 %v3309, %v3321
    %v3323 = vpop.f32.mrf.mxu0
    %3324 = vdwg.mxu0
    %3325 = vmatpush.bf16.msra.mxu0 %v1952
    %3326 = vmatpush.bf16.msra.mxu0 %v1948
    %3327 = vmatpush.bf16.msra.mxu0 %v1944
    %3328 = vmatpush.bf16.msra.mxu0 %v1940
    %3329 = vmatpush.bf16.msra.mxu0 %v1936
    %3330 = vmatpush.bf16.msra.mxu0 %v1932
    %3331 = vmatpush.bf16.msra.mxu0 %v1928
    %3332 = vmatpush.bf16.msra.mxu0 %v1924
    %3333 = vmatmul.bf16.gmra.mxu0 %v485
    %v3334 = vpop.f32.mrf.mxu0
    %v3335 = vadd.f32 %v3322, %v3334
    %v3336 = vpop.f32.mrf.mxu0
    %3337 = vdwg.mxu0
    %3338 = vmatpush.bf16.msra.mxu0 %v1984
    %3339 = vmatpush.bf16.msra.mxu0 %v1980
    %3340 = vmatpush.bf16.msra.mxu0 %v1976
    %3341 = vmatpush.bf16.msra.mxu0 %v1972
    %3342 = vmatpush.bf16.msra.mxu0 %v1968
    %3343 = vmatpush.bf16.msra.mxu0 %v1964
    %3344 = vmatpush.bf16.msra.mxu0 %v1960
    %3345 = vmatpush.bf16.msra.mxu0 %v1956
    %3346 = vmatmul.bf16.gmra.mxu0 %v486
    %v3347 = vpop.f32.mrf.mxu0
    %v3348 = vadd.f32 %v3335, %v3347
    %v3349 = vpop.f32.mrf.mxu0
    %3350 = vdwg.mxu0
    %3351 = vmatpush.bf16.msra.mxu0 %v2016
    %3352 = vmatpush.bf16.msra.mxu0 %v2012
    %3353 = vmatpush.bf16.msra.mxu0 %v2008
    %3354 = vmatpush.bf16.msra.mxu0 %v2004
    %3355 = vmatpush.bf16.msra.mxu0 %v2000
    %3356 = vmatpush.bf16.msra.mxu0 %v1996
    %3357 = vmatpush.bf16.msra.mxu0 %v1992
    %3358 = vmatpush.bf16.msra.mxu0 %v1988
    %3359 = vmatmul.bf16.gmra.mxu0 %v487
    %v3360 = vpop.f32.mrf.mxu0
    %v3361 = vadd.f32 %v3348, %v3360
    %v3362 = vpop.f32.mrf.mxu0
    %3363 = vdwg.mxu0
    %3364 = vmatpush.bf16.msra.mxu0 %v2048
    %3365 = vmatpush.bf16.msra.mxu0 %v2044
    %3366 = vmatpush.bf16.msra.mxu0 %v2040
    %3367 = vmatpush.bf16.msra.mxu0 %v2036
    %3368 = vmatpush.bf16.msra.mxu0 %v2032
    %3369 = vmatpush.bf16.msra.mxu0 %v2028
    %3370 = vmatpush.bf16.msra.mxu0 %v2024
    %3371 = vmatpush.bf16.msra.mxu0 %v2020
    %3372 = vmatmul.bf16.gmra.mxu0 %v488
    %v3373 = vpop.f32.mrf.mxu0
    %v3374 = vadd.f32 %v3361, %v3373
    %v3375 = vpop.f32.mrf.mxu0
    %3376 = vdwg.mxu0
    %3377 = vmatpush.bf16.msra.mxu0 %v2080
    %3378 = vmatpush.bf16.msra.mxu0 %v2076
    %3379 = vmatpush.bf16.msra.mxu0 %v2072
    %3380 = vmatpush.bf16.msra.mxu0 %v2068
    %3381 = vmatpush.bf16.msra.mxu0 %v2064
    %3382 = vmatpush.bf16.msra.mxu0 %v2060
    %3383 = vmatpush.bf16.msra.mxu0 %v2056
    %3384 = vmatpush.bf16.msra.mxu0 %v2052
    %3385 = vmatmul.bf16.gmra.mxu0 %v489
    %v3386 = vpop.f32.mrf.mxu0
    %v3387 = vadd.f32 %v3374, %v3386
    %v3388 = vpop.f32.mrf.mxu0
    %3389 = vdwg.mxu0
    %3390 = vmatpush.bf16.msra.mxu0 %v2112
    %3391 = vmatpush.bf16.msra.mxu0 %v2108
    %3392 = vmatpush.bf16.msra.mxu0 %v2104
    %3393 = vmatpush.bf16.msra.mxu0 %v2100
    %3394 = vmatpush.bf16.msra.mxu0 %v2096
    %3395 = vmatpush.bf16.msra.mxu0 %v2092
    %3396 = vmatpush.bf16.msra.mxu0 %v2088
    %3397 = vmatpush.bf16.msra.mxu0 %v2084
    %3398 = vmatmul.bf16.gmra.mxu0 %v490
    %v3399 = vpop.f32.mrf.mxu0
    %v3400 = vadd.f32 %v3387, %v3399
    %v3401 = vpop.f32.mrf.mxu0
    %3402 = vdwg.mxu0
    %3403 = vmatpush.bf16.msra.mxu0 %v2144
    %3404 = vmatpush.bf16.msra.mxu0 %v2140
    %3405 = vmatpush.bf16.msra.mxu0 %v2136
    %3406 = vmatpush.bf16.msra.mxu0 %v2132
    %3407 = vmatpush.bf16.msra.mxu0 %v2128
    %3408 = vmatpush.bf16.msra.mxu0 %v2124
    %3409 = vmatpush.bf16.msra.mxu0 %v2120
    %3410 = vmatpush.bf16.msra.mxu0 %v2116
    %3411 = vmatmul.bf16.gmra.mxu0 %v493
    %v3412 = vpop.f32.mrf.mxu0
    %v3413 = vadd.f32 %v3400, %v3412
    %v3414 = vpop.f32.mrf.mxu0
    %3415 = vdwg.mxu0
    %3416 = vmatpush.bf16.msra.mxu0 %v2176
    %3417 = vmatpush.bf16.msra.mxu0 %v2172
    %3418 = vmatpush.bf16.msra.mxu0 %v2168
    %3419 = vmatpush.bf16.msra.mxu0 %v2164
    %3420 = vmatpush.bf16.msra.mxu0 %v2160
    %3421 = vmatpush.bf16.msra.mxu0 %v2156
    %3422 = vmatpush.bf16.msra.mxu0 %v2152
    %3423 = vmatpush.bf16.msra.mxu0 %v2148
    %3424 = vmatmul.bf16.gmra.mxu0 %v494
    %v3425 = vpop.f32.mrf.mxu0
    %v3426 = vadd.f32 %v3413, %v3425
    %v3427 = vpop.f32.mrf.mxu0
    %3428 = vdwg.mxu0
    %3429 = vmatpush.bf16.msra.mxu0 %v2208
    %3430 = vmatpush.bf16.msra.mxu0 %v2204
    %3431 = vmatpush.bf16.msra.mxu0 %v2200
    %3432 = vmatpush.bf16.msra.mxu0 %v2196
    %3433 = vmatpush.bf16.msra.mxu0 %v2192
    %3434 = vmatpush.bf16.msra.mxu0 %v2188
    %3435 = vmatpush.bf16.msra.mxu0 %v2184
    %3436 = vmatpush.bf16.msra.mxu0 %v2180
    %3437 = vmatmul.bf16.gmra.mxu0 %v495
    %v3438 = vpop.f32.mrf.mxu0
    %v3439 = vadd.f32 %v3426, %v3438
    %v3440 = vpop.f32.mrf.mxu0
    %3441 = vdwg.mxu0
    %3442 = vmatpush.bf16.msra.mxu0 %v2240
    %3443 = vmatpush.bf16.msra.mxu0 %v2236
    %3444 = vmatpush.bf16.msra.mxu0 %v2232
    %3445 = vmatpush.bf16.msra.mxu0 %v2228
    %3446 = vmatpush.bf16.msra.mxu0 %v2224
    %3447 = vmatpush.bf16.msra.mxu0 %v2220
    %3448 = vmatpush.bf16.msra.mxu0 %v2216
    %3449 = vmatpush.bf16.msra.mxu0 %v2212
    %3450 = vmatmul.bf16.gmra.mxu0 %v496
    %v3451 = vpop.f32.mrf.mxu0
    %v3452 = vadd.f32 %v3439, %v3451
    %v3453 = vpop.f32.mrf.mxu0
    %3454 = vdwg.mxu0
    %3455 = vmatpush.bf16.msra.mxu0 %v2272
    %3456 = vmatpush.bf16.msra.mxu0 %v2268
    %3457 = vmatpush.bf16.msra.mxu0 %v2264
    %3458 = vmatpush.bf16.msra.mxu0 %v2260
    %3459 = vmatpush.bf16.msra.mxu0 %v2256
    %3460 = vmatpush.bf16.msra.mxu0 %v2252
    %3461 = vmatpush.bf16.msra.mxu0 %v2248
    %3462 = vmatpush.bf16.msra.mxu0 %v2244
    %3463 = vmatmul.bf16.gmra.mxu0 %v497
    %v3464 = vpop.f32.mrf.mxu0
    %v3465 = vadd.f32 %v3452, %v3464
    %v3466 = vpop.f32.mrf.mxu0
    %3467 = vdwg.mxu0
    %3468 = vmatpush.bf16.msra.mxu0 %v2304
    %3469 = vmatpush.bf16.msra.mxu0 %v2300
    %3470 = vmatpush.bf16.msra.mxu0 %v2296
    %3471 = vmatpush.bf16.msra.mxu0 %v2292
    %3472 = vmatpush.bf16.msra.mxu0 %v2288
    %3473 = vmatpush.bf16.msra.mxu0 %v2284
    %3474 = vmatpush.bf16.msra.mxu0 %v2280
    %3475 = vmatpush.bf16.msra.mxu0 %v2276
    %3476 = vmatmul.bf16.gmra.mxu0 %v498
    %v3477 = vpop.f32.mrf.mxu0
    %v3478 = vadd.f32 %v3465, %v3477
    %v3479 = vpop.f32.mrf.mxu0
    %3480 = vdwg.mxu0
    %v3481 = vmul.f32 %v2932, 0.5
    %v3482 = vmul.f32 %v3114, 0.5
    %v3483 = vmul.f32 %v3296, 0.5
    %v3484 = vmul.f32 %v3478, 0.5
    %v3485 = vtanh.pop %v3481
    %v3486 = vtanh.pop %v3482
    %v3487 = vtanh.pop %v3483
    %v3488 = vtanh.pop %v3484
    %v3489 = vadd.f32 %v3485, 1.0
    %v3490 = vadd.f32 %v3486, 1.0
    %v3491 = vadd.f32 %v3487, 1.0
    %v3492 = vadd.f32 %v3488, 1.0
    %v3493 = vmul.f32 %v3481, %v3489
    %v3494 = vmul.f32 %v3482, %v3490
    %v3495 = vmul.f32 %v3483, %v3491
    %v3496 = vmul.f32 %v3484, %v3492
    %v3497 = vpack.c.bf16 %v3493, %v3493
    %v3498 = vpack.c.bf16 %v3494, %v3494
    %v3499 = vpack.c.bf16 %v3495, %v3495
    %v3500 = vpack.c.bf16 %v3496, %v3496
    %v3501 = vld [vmem:[%s3] sm:$0xf]
    %v3502 = vld [vmem:[%s3 + $0x4] sm:$0xf]
    %v3503 = vld [vmem:[%s3 + $0x8] sm:$0xf]
    %v3504 = vld [vmem:[%s3 + $0xc] sm:$0xf]
    %v3505 = vld [vmem:[%s3 + $0x10] sm:$0xf]
    %v3506 = vld [vmem:[%s3 + $0x14] sm:$0xf]
    %v3507 = vld [vmem:[%s3 + $0x18] sm:$0xf]
    %v3508 = vld [vmem:[%s3 + $0x1c] sm:$0xf]
    %v3509 = vld [vmem:[%s3 + $0x20] sm:$0xf]
    %v3510 = vld [vmem:[%s3 + $0x24] sm:$0xf]
    %v3511 = vld [vmem:[%s3 + $0x28] sm:$0xf]
    %v3512 = vld [vmem:[%s3 + $0x2c] sm:$0xf]
    %v3513 = vld [vmem:[%s3 + $0x30] sm:$0xf]
    %v3514 = vld [vmem:[%s3 + $0x34] sm:$0xf]
    %v3515 = vld [vmem:[%s3 + $0x38] sm:$0xf]
    %v3516 = vld [vmem:[%s3 + $0x3c] sm:$0xf]
    %v3517 = vld [vmem:[%s3 + $0x40] sm:$0xf]
    %v3518 = vld [vmem:[%s3 + $0x44] sm:$0xf]
    %v3519 = vld [vmem:[%s3 + $0x48] sm:$0xf]
    %v3520 = vld [vmem:[%s3 + $0x4c] sm:$0xf]
    %v3521 = vld [vmem:[%s3 + $0x50] sm:$0xf]
    %v3522 = vld [vmem:[%s3 + $0x54] sm:$0xf]
    %v3523 = vld [vmem:[%s3 + $0x58] sm:$0xf]
    %v3524 = vld [vmem:[%s3 + $0x5c] sm:$0xf]
    %v3525 = vld [vmem:[%s3 + $0x60] sm:$0xf]
    %v3526 = vld [vmem:[%s3 + $0x64] sm:$0xf]
    %v3527 = vld [vmem:[%s3 + $0x68] sm:$0xf]
    %v3528 = vld [vmem:[%s3 + $0x6c] sm:$0xf]
    %v3529 = vld [vmem:[%s3 + $0x70] sm:$0xf]
    %v3530 = vld [vmem:[%s3 + $0x74] sm:$0xf]
    %v3531 = vld [vmem:[%s3 + $0x78] sm:$0xf]
    %v3532 = vld [vmem:[%s3 + $0x7c] sm:$0xf]
    %v3533 = vld [vmem:[%s3 + $0x80] sm:$0xf]
    %v3534 = vld [vmem:[%s3 + $0x84] sm:$0xf]
    %v3535 = vld [vmem:[%s3 + $0x88] sm:$0xf]
    %v3536 = vld [vmem:[%s3 + $0x8c] sm:$0xf]
    %v3537 = vld [vmem:[%s3 + $0x90] sm:$0xf]
    %v3538 = vld [vmem:[%s3 + $0x94] sm:$0xf]
    %v3539 = vld [vmem:[%s3 + $0x98] sm:$0xf]
    %v3540 = vld [vmem:[%s3 + $0x9c] sm:$0xf]
    %v3541 = vld [vmem:[%s3 + $0xa0] sm:$0xf]
    %v3542 = vld [vmem:[%s3 + $0xa4] sm:$0xf]
    %v3543 = vld [vmem:[%s3 + $0xa8] sm:$0xf]
    %v3544 = vld [vmem:[%s3 + $0xac] sm:$0xf]
    %v3545 = vld [vmem:[%s3 + $0xb0] sm:$0xf]
    %v3546 = vld [vmem:[%s3 + $0xb4] sm:$0xf]
    %v3547 = vld [vmem:[%s3 + $0xb8] sm:$0xf]
    %v3548 = vld [vmem:[%s3 + $0xbc] sm:$0xf]
    %v3549 = vld [vmem:[%s3 + $0xc0] sm:$0xf]
    %v3550 = vld [vmem:[%s3 + $0xc4] sm:$0xf]
    %v3551 = vld [vmem:[%s3 + $0xc8] sm:$0xf]
    %v3552 = vld [vmem:[%s3 + $0xcc] sm:$0xf]
    %v3553 = vld [vmem:[%s3 + $0xd0] sm:$0xf]
    %v3554 = vld [vmem:[%s3 + $0xd4] sm:$0xf]
    %v3555 = vld [vmem:[%s3 + $0xd8] sm:$0xf]
    %v3556 = vld [vmem:[%s3 + $0xdc] sm:$0xf]
    %v3557 = vld [vmem:[%s3 + $0xe0] sm:$0xf]
    %v3558 = vld [vmem:[%s3 + $0xe4] sm:$0xf]
    %v3559 = vld [vmem:[%s3 + $0xe8] sm:$0xf]
    %v3560 = vld [vmem:[%s3 + $0xec] sm:$0xf]
    %v3561 = vld [vmem:[%s3 + $0xf0] sm:$0xf]
    %v3562 = vld [vmem:[%s3 + $0xf4] sm:$0xf]
    %v3563 = vld [vmem:[%s3 + $0xf8] sm:$0xf]
    %v3564 = vld [vmem:[%s3 + $0xfc] sm:$0xf]
    %v3565 = vld [vmem:[%s4] sm:$0x1]
    %v3567 = vperm.slane %v3565, 0
    %v3633 = vunpack.c.l.b16 %v3501
    %v3634 = vunpack.c.l.b16 %v3502
    %v3635 = vunpack.c.l.b16 %v3503
    %v3636 = vunpack.c.l.b16 %v3504
    %v3637 = vunpack.c.l.b16 %v3505
    %v3638 = vunpack.c.l.b16 %v3506
    %v3639 = vunpack.c.l.b16 %v3507
    %v3640 = vunpack.c.l.b16 %v3508
    %v3641 = vunpack.c.l.b16 %v3509
    %v3642 = vunpack.c.l.b16 %v3510
    %v3643 = vunpack.c.l.b16 %v3511
    %v3644 = vunpack.c.l.b16 %v3512
    %v3645 = vunpack.c.l.b16 %v3513
    %v3646 = vunpack.c.l.b16 %v3514
    %v3647 = vunpack.c.l.b16 %v3515
    %v3648 = vunpack.c.l.b16 %v3516
    %v3649 = vunpack.c.l.b16 %v3517
    %v3650 = vunpack.c.l.b16 %v3518
    %v3651 = vunpack.c.l.b16 %v3519
    %v3652 = vunpack.c.l.b16 %v3520
    %v3653 = vunpack.c.l.b16 %v3521
    %v3654 = vunpack.c.l.b16 %v3522
    %v3655 = vunpack.c.l.b16 %v3523
    %v3656 = vunpack.c.l.b16 %v3524
    %v3657 = vunpack.c.l.b16 %v3525
    %v3658 = vunpack.c.l.b16 %v3526
    %v3659 = vunpack.c.l.b16 %v3527
    %v3660 = vunpack.c.l.b16 %v3528
    %v3661 = vunpack.c.l.b16 %v3529
    %v3662 = vunpack.c.l.b16 %v3530
    %v3663 = vunpack.c.l.b16 %v3531
    %v3664 = vunpack.c.l.b16 %v3532
    %v3665 = vunpack.c.l.b16 %v3533
    %v3666 = vunpack.c.l.b16 %v3534
    %v3667 = vunpack.c.l.b16 %v3535
    %v3668 = vunpack.c.l.b16 %v3536
    %v3669 = vunpack.c.l.b16 %v3537
    %v3670 = vunpack.c.l.b16 %v3538
    %v3671 = vunpack.c.l.b16 %v3539
    %v3672 = vunpack.c.l.b16 %v3540
    %v3673 = vunpack.c.l.b16 %v3541
    %v3674 = vunpack.c.l.b16 %v3542
    %v3675 = vunpack.c.l.b16 %v3543
    %v3676 = vunpack.c.l.b16 %v3544
    %v3677 = vunpack.c.l.b16 %v3545
    %v3678 = vunpack.c.l.b16 %v3546
    %v3679 = vunpack.c.l.b16 %v3547
    %v3680 = vunpack.c.l.b16 %v3548
    %v3681 = vunpack.c.l.b16 %v3549
    %v3682 = vunpack.c.l.b16 %v3550
    %v3683 = vunpack.c.l.b16 %v3551
    %v3684 = vunpack.c.l.b16 %v3552
    %v3685 = vunpack.c.l.b16 %v3553
    %v3686 = vunpack.c.l.b16 %v3554
    %v3687 = vunpack.c.l.b16 %v3555
    %v3688 = vunpack.c.l.b16 %v3556
    %v3689 = vunpack.c.l.b16 %v3557
    %v3690 = vunpack.c.l.b16 %v3558
    %v3691 = vunpack.c.l.b16 %v3559
    %v3692 = vunpack.c.l.b16 %v3560
    %v3693 = vunpack.c.l.b16 %v3561
    %v3694 = vunpack.c.l.b16 %v3562
    %v3695 = vunpack.c.l.b16 %v3563
    %v3696 = vunpack.c.l.b16 %v3564
    %v3697 = vpack.c.b16 %v3634, %v3633
    %v3698 = vpack.c.b16 %v3636, %v3635
    %v3699 = vpack.c.b16 %v3638, %v3637
    %v3700 = vpack.c.b16 %v3640, %v3639
    %v3701 = vpack.c.b16 %v3642, %v3641
    %v3702 = vpack.c.b16 %v3644, %v3643
    %v3703 = vpack.c.b16 %v3646, %v3645
    %v3704 = vpack.c.b16 %v3648, %v3647
    %v3705 = vpack.c.b16 %v3650, %v3649
    %v3706 = vpack.c.b16 %v3652, %v3651
    %v3707 = vpack.c.b16 %v3654, %v3653
    %v3708 = vpack.c.b16 %v3656, %v3655
    %v3709 = vpack.c.b16 %v3658, %v3657
    %v3710 = vpack.c.b16 %v3660, %v3659
    %v3711 = vpack.c.b16 %v3662, %v3661
    %v3712 = vpack.c.b16 %v3664, %v3663
    %v3713 = vpack.c.b16 %v3666, %v3665
    %v3714 = vpack.c.b16 %v3668, %v3667
    %v3715 = vpack.c.b16 %v3670, %v3669
    %v3716 = vpack.c.b16 %v3672, %v3671
    %v3717 = vpack.c.b16 %v3674, %v3673
    %v3718 = vpack.c.b16 %v3676, %v3675
    %v3719 = vpack.c.b16 %v3678, %v3677
    %v3720 = vpack.c.b16 %v3680, %v3679
    %v3721 = vpack.c.b16 %v3682, %v3681
    %v3722 = vpack.c.b16 %v3684, %v3683
    %v3723 = vpack.c.b16 %v3686, %v3685
    %v3724 = vpack.c.b16 %v3688, %v3687
    %v3725 = vpack.c.b16 %v3690, %v3689
    %v3726 = vpack.c.b16 %v3692, %v3691
    %v3727 = vpack.c.b16 %v3694, %v3693
    %v3728 = vpack.c.b16 %v3696, %v3695
    %3761 = vmatpush.bf16.msra.mxu0 %v3704
    %3762 = vmatpush.bf16.msra.mxu0 %v3703
    %3763 = vmatpush.bf16.msra.mxu0 %v3702
    %3764 = vmatpush.bf16.msra.mxu0 %v3701
    %3765 = vmatpush.bf16.msra.mxu0 %v3700
    %3766 = vmatpush.bf16.msra.mxu0 %v3699
    %3767 = vmatpush.bf16.msra.mxu0 %v3698
    %3768 = vmatpush.bf16.msra.mxu0 %v3697
    %3769 = vmatmul.bf16.gmra.mxu0 %v3497
    %v3770 = vpop.f32.mrf.mxu0
    %v3771 = vadd.f32 %v3567, %v3770
    %v3772 = vpop.f32.mrf.mxu0
    %3773 = vdwg.mxu0
    %3774 = vmatpush.bf16.msra.mxu0 %v3712
    %3775 = vmatpush.bf16.msra.mxu0 %v3711
    %3776 = vmatpush.bf16.msra.mxu0 %v3710
    %3777 = vmatpush.bf16.msra.mxu0 %v3709
    %3778 = vmatpush.bf16.msra.mxu0 %v3708
    %3779 = vmatpush.bf16.msra.mxu0 %v3707
    %3780 = vmatpush.bf16.msra.mxu0 %v3706
    %3781 = vmatpush.bf16.msra.mxu0 %v3705
    %3782 = vmatmul.bf16.gmra.mxu0 %v3498
    %v3783 = vpop.f32.mrf.mxu0
    %v3784 = vadd.f32 %v3771, %v3783
    %v3785 = vpop.f32.mrf.mxu0
    %3786 = vdwg.mxu0
    %3787 = vmatpush.bf16.msra.mxu0 %v3720
    %3788 = vmatpush.bf16.msra.mxu0 %v3719
    %3789 = vmatpush.bf16.msra.mxu0 %v3718
    %3790 = vmatpush.bf16.msra.mxu0 %v3717
    %3791 = vmatpush.bf16.msra.mxu0 %v3716
    %3792 = vmatpush.bf16.msra.mxu0 %v3715
    %3793 = vmatpush.bf16.msra.mxu0 %v3714
    %3794 = vmatpush.bf16.msra.mxu0 %v3713
    %3795 = vmatmul.bf16.gmra.mxu0 %v3499
    %v3796 = vpop.f32.mrf.mxu0
    %v3797 = vadd.f32 %v3784, %v3796
    %v3798 = vpop.f32.mrf.mxu0
    %3799 = vdwg.mxu0
    %3800 = vmatpush.bf16.msra.mxu0 %v3728
    %3801 = vmatpush.bf16.msra.mxu0 %v3727
    %3802 = vmatpush.bf16.msra.mxu0 %v3726
    %3803 = vmatpush.bf16.msra.mxu0 %v3725
    %3804 = vmatpush.bf16.msra.mxu0 %v3724
    %3805 = vmatpush.bf16.msra.mxu0 %v3723
    %3806 = vmatpush.bf16.msra.mxu0 %v3722
    %3807 = vmatpush.bf16.msra.mxu0 %v3721
    %3808 = vmatmul.bf16.gmra.mxu0 %v3500
    %v3809 = vpop.f32.mrf.mxu0
    %v3810 = vadd.f32 %v3797, %v3809
    %v3811 = vpop.f32.mrf.mxu0
    %3812 = vdwg.mxu0
    %3813 = vst [vmem:[#allocation2] sm:$0x3] %v3810
    // Predicated region
    $region22: #{emotion_model_forward.3} parent=1 // pred_check
      _
    $region23: #{emotion_model_forward.3} parent=1 // pred_check_branch
      %3815 = sbr.rel (0) target = $region25
    $region24: #{emotion_model_forward.3} parent=1 // pred_region
      %3817 = vsyncadd [#allocation3], 0
      %s3819 = sshll.u32 [#allocation2], 4
      %s3820 = int_to_ptr.vmem [resolvable:$true] %s3819
      %s3821 = sshll.u32 %s5, 4
      %s3822 = int_to_ptr.hbm [resolvable:$true] %s3821
      %3824 = dma.vmem_to_hbm [thread:$0]  %s3820, 32, %s3822, [#allocation3]
    $region25: #{emotion_model_forward.3} parent=1 // pred_fallthru
      _
    // Predicated region
    $region26: #{emotion_model_forward.3} parent=1 // pred_check
      _
    $region27: #{emotion_model_forward.3} parent=1 // pred_check_branch
      %3826 = sbr.rel (0) target = $region29
    $region28: #{emotion_model_forward.3} parent=1 // pred_region
      %3828 = dma.done [#allocation3], 32
    $region29: #{emotion_model_forward.3} parent=1 // pred_fallthru
      _
    %3829 = vsyncpa [#allocation3], 1

</llo_original>
